<compile_context>
chip_gen: v5e
topology: v5e:2x2
jax: 0.10.0
libtpu: 0.0.40
codegen_flags: <defaults>
</compile_context>

<pallas_src>
import functools

import jax
import jax.numpy as jnp
from jax import lax
from jax.experimental import pallas as pl
from jax.experimental.pallas import tpu as pltpu

# ----------------------------- model hyper-params (small) -----------------------------
VOCAB_SIZE = 256
D_MODEL = 128
NHEAD = 4
NUM_LAYERS = 2
DIM_FF = 256          # (PyTorch default is 2048; small value chosen for the demo)
MAX_SEQ_LEN = 16
PAD_ID = 0
NEG_INF = -1e30

# rows of the consolidated per-layer vector tensor `vecs` [L, 12, W]
_SA_B_IN, _SA_B_OUT, _LN1_G, _LN1_B = 0, 1, 2, 3
_CA_B_V, _CA_B_OUT, _LN2_G, _LN2_B = 4, 5, 6, 7
_B1, _B2, _LN3_G, _LN3_B = 8, 9, 10, 11


# ------------------------------- in-kernel helpers -------------------------------------
def _layernorm(x, g, b, eps=1e-5):
    """PyTorch-style LayerNorm over the last dim (biased variance), f32 math."""
    mean = jnp.mean(x, axis=-1, keepdims=True)
    xc = x - mean
    var = jnp.mean(xc * xc, axis=-1, keepdims=True)
    return xc * lax.rsqrt(var + eps) * g + b


def _bf16(a):
    return a.astype(jnp.bfloat16)


# --------------------------- fused decoder forward kernel ------------------------------
def _decoder_kernel(x_ref, mem_ref, kpb_ref,
                    sa_w_in, sa_w_out, ca_w_v, ca_w_out, w1_ref, w2_ref, vecs_ref,
                    ow_ref, ob_ref, lng_ref, lnb_ref,
                    logits_ref,
                    x_sc, ctx_sc,
                    *, batch, seq, nhead, scale):
    layer = pl.program_id(0)
    last = pl.num_programs(0) - 1

    @pl.when(layer == 0)
    def _():                                   # load the embedded input slab once
        x_sc[...] = x_ref[...]

    x = x_sc[...]                              # [B*S, D] f32 activation (VMEM-resident)
    D = x.shape[-1]
    Dh = D // nhead
    F = w1_ref.shape[-1]

    vec = vecs_ref[0]                          # [12, W] f32 consolidated per-layer vectors
    sa_b_in = vec[_SA_B_IN, :3 * D]
    sa_b_out = vec[_SA_B_OUT, :D]
    ln1_g, ln1_b = vec[_LN1_G, :D], vec[_LN1_B, :D]
    ca_b_v, ca_b_out = vec[_CA_B_V, :D], vec[_CA_B_OUT, :D]
    ln2_g, ln2_b = vec[_LN2_G, :D], vec[_LN2_B, :D]
    b1 = vec[_B1, :F]
    b2 = vec[_B2, :D]
    ln3_g, ln3_b = vec[_LN3_G, :D], vec[_LN3_B, :D]

    # ---- masked multi-head self-attention (post-norm, eval-mode dropout = id) ----
    qkv = jnp.dot(_bf16(x), sa_w_in[0],
                  preferred_element_type=jnp.float32) + sa_b_in      # [B*S, 3D] f32

    # causal + key-padding additive bias built in-kernel (no [B,S,S] HBM traffic)
    row = lax.broadcasted_iota(jnp.int32, (seq, seq), 0)
    col = lax.broadcasted_iota(jnp.int32, (seq, seq), 1)
    causal = jnp.where(row >= col, jnp.float32(0.0), jnp.float32(NEG_INF))   # [S, S]
    kp_all = kpb_ref[...]                                                    # [B, S] f32

    for b in range(batch):                     # static unroll over the tiny batch
        sl = slice(b * seq, (b + 1) * seq)
        bias = jnp.maximum(causal + kp_all[b:b + 1, :], jnp.float32(NEG_INF))  # [S, S]
        for h in range(nhead):                 # static unroll; lane slices are cheap
            q = qkv[sl, h * Dh:(h + 1) * Dh]
            k = qkv[sl, D + h * Dh:D + (h + 1) * Dh]
            v = qkv[sl, 2 * D + h * Dh:2 * D + (h + 1) * Dh]
            s = lax.dot_general(_bf16(q), _bf16(k), (((1,), (1,)), ((), ())),
                                preferred_element_type=jnp.float32) * scale + bias
            s = s - jnp.max(s, axis=-1, keepdims=True)
            p = jnp.exp(s)
            p = p * pl.reciprocal(jnp.sum(p, axis=-1, keepdims=True), approx=True)
            # write each head's P@V into a static lane slice of the context scratch
            ctx_sc[sl, h * Dh:(h + 1) * Dh] = jnp.dot(
                _bf16(p), _bf16(v), preferred_element_type=jnp.float32)

    attn = jnp.dot(_bf16(ctx_sc[...]), sa_w_out[0],
                   preferred_element_type=jnp.float32) + sa_b_out
    x = _layernorm(x + attn, ln1_g, ln1_b)

    # ---- cross-attention to a single memory token: softmax(1 key) == 1, so the
    #      attention output is just the projected memory value broadcast over S ----
    mem_v = jnp.dot(_bf16(mem_ref[...]), ca_w_v[0],
                    preferred_element_type=jnp.float32) + ca_b_v      # [B, D]
    cross = jnp.dot(_bf16(mem_v), ca_w_out[0],
                    preferred_element_type=jnp.float32) + ca_b_out    # [B, D]
    x3 = x.reshape(batch, seq, D) + cross[:, None, :]
    x = _layernorm(x3.reshape(batch * seq, D), ln2_g, ln2_b)

    # ---- feed-forward (ReLU); intermediate [B*S, dim_ff] never leaves VMEM/vregs ----
    hdn = jnp.maximum(jnp.dot(_bf16(x), w1_ref[0],
                              preferred_element_type=jnp.float32) + b1, 0.0)
    ff = jnp.dot(_bf16(hdn), w2_ref[0],
                 preferred_element_type=jnp.float32) + b2
    x = _layernorm(x + ff, ln3_g, ln3_b)

    x_sc[...] = x                              # carry to next layer

    # ---- fused epilogue on the last layer: final LayerNorm + vocab projection ----
    @pl.when(layer == last)
    def _():
        y = _layernorm(x, lng_ref[0], lnb_ref[0])
        logits_ref[...] = (jnp.dot(_bf16(y), ow_ref[...],
                                   preferred_element_type=jnp.float32)
                           + ob_ref[0]).astype(logits_ref.dtype)


def decoder_stack(x_flat, memory, keypad, layers, ln_g, ln_b, out_w, out_b,
                  *, batch, seq, nhead):
    """Full decoder stack + final norm + vocab projection in ONE pallas_call.

    x_flat:  [B*S, D] embedded input (f32)
    memory:  [B, D]   single memory token per batch (f32)
    keypad:  [B, S]   additive key-padding bias (0 or NEG_INF, f32)
    layers:  dict of stacked per-layer weights (leading axis = layer)
    """
    BS, D = x_flat.shape
    L = layers["sa_w_in"].shape[0]
    F = layers["w1"].shape[-1]
    NV, W = layers["vecs"].shape[1:]
    V = out_w.shape[-1]
    scale = 1.0 / float(D // nhead) ** 0.5

    cmap2 = lambda l: (0, 0)                  # constant blocks: fetched once
    wmap = lambda l: (l, 0, 0)                # per-layer weight streaming (double-buffered)

    in_specs = [
        pl.BlockSpec((BS, D), cmap2),          # x_flat
        pl.BlockSpec((batch, D), cmap2),       # memory
        pl.BlockSpec((batch, seq), cmap2),     # keypad bias (thin; no [B,S,S] in HBM)
        pl.BlockSpec((1, D, 3 * D), wmap),     # sa_w_in   (bf16)
        pl.BlockSpec((1, D, D), wmap),         # sa_w_out  (bf16)
        pl.BlockSpec((1, D, D), wmap),         # ca_w_v    (bf16)
        pl.BlockSpec((1, D, D), wmap),         # ca_w_out  (bf16)
        pl.BlockSpec((1, D, F), wmap),         # w1        (bf16)
        pl.BlockSpec((1, F, D), wmap),         # w2        (bf16)
        pl.BlockSpec((1, NV, W), wmap),        # consolidated per-layer vectors (f32)
        pl.BlockSpec((D, V), cmap2),           # out_w     (bf16)
        pl.BlockSpec((1, V), cmap2),           # out_b
        pl.BlockSpec((1, D), cmap2),           # final ln gamma
        pl.BlockSpec((1, D), cmap2),           # final ln beta
    ]
    return pl.pallas_call(
        functools.partial(_decoder_kernel, batch=batch, seq=seq, nhead=nhead,
                          scale=scale),
        out_shape=jax.ShapeDtypeStruct((BS, V), jnp.float32),
        grid=(L,),                             # layer axis only: weights DMA'd once total
        in_specs=in_specs,
        out_specs=pl.BlockSpec((BS, V), cmap2),
        scratch_shapes=[pltpu.VMEM((BS, D), jnp.float32),   # activation carry
                        pltpu.VMEM((BS, D), jnp.float32)],  # per-head context slab
        compiler_params=pltpu.CompilerParams(
            dimension_semantics=("arbitrary",)),
    )(x_flat, memory, keypad,
      layers["sa_w_in"], layers["sa_w_out"], layers["ca_w_v"], layers["ca_w_out"],
      layers["w1"], layers["w2"], layers["vecs"],
      out_w, out_b.reshape(1, V), ln_g.reshape(1, D), ln_b.reshape(1, D))


# ------------------------------ parameter init (deterministic) ------------------------
def init_params(key, vocab, d_model, nhead, num_layers, dim_ff, max_len, pad_id):
    def nrm(k, shape, s=0.02, dtype=jnp.float32):
        return (jax.random.normal(k, shape, jnp.float32) * s).astype(dtype)

    keys = jax.random.split(key, 3 + num_layers)
    tok_emb = nrm(keys[0], (vocab, d_model), 1.0).at[pad_id].set(0.0)  # padding row zero
    params = {
        "tok_emb": tok_emb,
        "pos_emb": nrm(keys[1], (1, max_len, d_model), 1.0),
        "out_w": nrm(keys[2], (d_model, vocab), dtype=jnp.bfloat16),   # MXU operand: bf16
        "out_b": jnp.zeros((vocab,), jnp.float32),
        "ln_g": jnp.ones((d_model,), jnp.float32),
        "ln_b": jnp.zeros((d_model,), jnp.float32),
    }
    L = num_layers
    layer_keys = [jax.random.split(keys[3 + li], 8) for li in range(L)]

    def stack(idx, shape):
        return jnp.stack([nrm(layer_keys[li][idx], shape, dtype=jnp.bfloat16)
                          for li in range(L)])

    # Consolidated per-layer vectors: one [L, 12, W] tensor (biases zero, LN gammas one).
    W = max(3 * d_model, dim_ff)
    vecs = jnp.zeros((L, 12, W), jnp.float32)
    for row in (_LN1_G, _LN2_G, _LN3_G):
        vecs = vecs.at[:, row, :d_model].set(1.0)

    # NOTE: cross-attention Q/K projections are omitted — with a single memory token the
    # cross softmax is identically 1, so they cannot affect the output.
    params["layers"] = {
        "sa_w_in": stack(0, (d_model, 3 * d_model)),
        "sa_w_out": stack(1, (d_model, d_model)),
        "ca_w_v": stack(4, (d_model, d_model)),
        "ca_w_out": stack(5, (d_model, d_model)),
        "w1": stack(6, (d_model, dim_ff)),
        "w2": stack(7, (dim_ff, d_model)),
        "vecs": vecs,
    }
    return params


# ----------------------------------- forward pass -------------------------------------
def transformer_decoder_forward(params, tgt_ids, memory, *, nhead=NHEAD, pad_id=PAD_ID):
    B, S = tgt_ids.shape
    D = memory.shape[-1]
    V = params["out_b"].shape[0]

    # token-embedding gather + positional embedding (tiny glue, plain JAX)
    x = params["tok_emb"][tgt_ids] * (float(D) ** 0.5) + params["pos_emb"][:, :S, :]
    x_flat = x.reshape(B * S, D).astype(jnp.float32)

    # only the thin key-padding row goes to the kernel; causal mask is built in-kernel
    keypad = jnp.where(tgt_ids == pad_id, jnp.float32(NEG_INF), jnp.float32(0.0))  # [B,S]

    logits_flat = decoder_stack(x_flat, memory.astype(jnp.float32), keypad,
                                params["layers"], params["ln_g"], params["ln_b"],
                                params["out_w"], params["out_b"],
                                batch=B, seq=S, nhead=nhead)
    return logits_flat.reshape(B, S, V)


# ------------------------------------- main --------------------------------------------
if __name__ == "__main__":
    key = jax.random.PRNGKey(0)
    k_par, k_ids, k_mem = jax.random.split(key, 3)

    batch, seq_len = 2, 8
    params = init_params(k_par, VOCAB_SIZE, D_MODEL, NHEAD, NUM_LAYERS,
                         DIM_FF, MAX_SEQ_LEN, PAD_ID)

    # avoid pad tokens so no attention row is fully masked (matches well-formed inputs)
    # TODO(synk): fully key-masked rows give a uniform distribution instead of PyTorch's NaN.
    tgt_ids = jax.random.randint(k_ids, (batch, seq_len), 1, VOCAB_SIZE, dtype=jnp.int32)
    memory = jax.random.normal(k_mem, (batch, D_MODEL), jnp.float32)

    logits = transformer_decoder_forward(params, tgt_ids, memory)
    logits = jax.block_until_ready(logits)

    assert logits.shape == (batch, seq_len, VOCAB_SIZE)
    assert bool(jnp.all(jnp.isfinite(logits)))
    print("KERNEL_OK")
</pallas_src>

<mosaic_0001>
module attributes {stable_mosaic.version = 11 : i64} {
  func.func @_decoder_kernel(%arg0: i32, %arg1: memref<16x128xf32, #tpu.memory_space<vmem>>, %arg2: memref<2x128xf32, #tpu.memory_space<vmem>>, %arg3: memref<2x8xf32, #tpu.memory_space<vmem>>, %arg4: memref<1x128x384xbf16, #tpu.memory_space<vmem>>, %arg5: memref<1x128x128xbf16, #tpu.memory_space<vmem>>, %arg6: memref<1x128x128xbf16, #tpu.memory_space<vmem>>, %arg7: memref<1x128x128xbf16, #tpu.memory_space<vmem>>, %arg8: memref<1x128x256xbf16, #tpu.memory_space<vmem>>, %arg9: memref<1x256x128xbf16, #tpu.memory_space<vmem>>, %arg10: memref<1x12x384xf32, #tpu.memory_space<vmem>>, %arg11: memref<128x256xbf16, #tpu.memory_space<vmem>>, %arg12: memref<1x256xf32, #tpu.memory_space<vmem>>, %arg13: memref<1x128xf32, #tpu.memory_space<vmem>>, %arg14: memref<1x128xf32, #tpu.memory_space<vmem>>, %arg15: memref<16x256xf32, #tpu.memory_space<vmem>>, %arg16: memref<16x128xf32, #tpu.memory_space<vmem>>, %arg17: memref<16x128xf32, #tpu.memory_space<vmem>>) attributes {dimension_semantics = [#tpu.dimension_semantics<arbitrary>], iteration_bounds = array<i64: 2>, scalar_prefetch = 0 : i64, scratch_operands = 2 : i64, tpu.core_type = #tpu.core_type<tc>, window_params = [{pipeline_mode = #tpu.pipeline_mode<synchronous>, transform_indices = @transform_0, window_bounds = array<i64: 16, 128>}, {pipeline_mode = #tpu.pipeline_mode<synchronous>, transform_indices = @transform_1, window_bounds = array<i64: 2, 128>}, {pipeline_mode = #tpu.pipeline_mode<synchronous>, transform_indices = @transform_2, window_bounds = array<i64: 2, 8>}, {transform_indices = @transform_3, window_bounds = array<i64: 1, 128, 384>}, {transform_indices = @transform_4, window_bounds = array<i64: 1, 128, 128>}, {transform_indices = @transform_5, window_bounds = array<i64: 1, 128, 128>}, {transform_indices = @transform_6, window_bounds = array<i64: 1, 128, 128>}, {transform_indices = @transform_7, window_bounds = array<i64: 1, 128, 256>}, {transform_indices = @transform_8, window_bounds = array<i64: 1, 256, 128>}, {transform_indices = @transform_9, window_bounds = array<i64: 1, 12, 384>}, {pipeline_mode = #tpu.pipeline_mode<synchronous>, transform_indices = @transform_10, window_bounds = array<i64: 128, 256>}, {pipeline_mode = #tpu.pipeline_mode<synchronous>, transform_indices = @transform_11, window_bounds = array<i64: 1, 256>}, {pipeline_mode = #tpu.pipeline_mode<synchronous>, transform_indices = @transform_12, window_bounds = array<i64: 1, 128>}, {pipeline_mode = #tpu.pipeline_mode<synchronous>, transform_indices = @transform_13, window_bounds = array<i64: 1, 128>}, {pipeline_mode = #tpu.pipeline_mode<synchronous>, transform_indices = @transform_14, window_bounds = array<i64: 16, 256>}]} {
    %c0_i32 = arith.constant 0 : i32
    %0 = arith.cmpi eq, %arg0, %c0_i32 : i32
    %1 = arith.extui %0 : i1 to i32
    %c0_i32_0 = arith.constant 0 : i32
    %2 = arith.cmpi ne, %1, %c0_i32_0 : i32
    scf.if %2 {
      %c0_109 = arith.constant 0 : index
      %c0_110 = arith.constant 0 : index
      %354 = vector.load %arg1[%c0_109, %c0_110] : memref<16x128xf32, #tpu.memory_space<vmem>>, vector<16x128xf32>
      %c0_111 = arith.constant 0 : index
      %c0_112 = arith.constant 0 : index
      %355 = vector.load %arg16[%c0_111, %c0_112] : memref<16x128xf32, #tpu.memory_space<vmem>>, vector<16x128xf32>
      tpu.vector_store %arg16[%c0_111, %c0_112], %354 {strides = array<i32>} : memref<16x128xf32, #tpu.memory_space<vmem>>, vector<16x128xf32>,
    } else {
    }
    %c0 = arith.constant 0 : index
    %c0_1 = arith.constant 0 : index
    %3 = vector.load %arg16[%c0, %c0_1] : memref<16x128xf32, #tpu.memory_space<vmem>>, vector<16x128xf32>
    %c0_2 = arith.constant 0 : index
    %c0_3 = arith.constant 0 : index
    %c0_4 = arith.constant 0 : index
    %4 = vector.load %arg10[%c0_2, %c0_3, %c0_4] : memref<1x12x384xf32, #tpu.memory_space<vmem>>, vector<1x12x384xf32>
    %5 = vector.shape_cast %4 : vector<1x12x384xf32> to vector<12x384xf32>
    %6 = vector.extract_strided_slice %5 {offsets = [0, 0], sizes = [1, 384], strides = [1, 1]} : vector<12x384xf32> to vector<1x384xf32>
    %7 = vector.shape_cast %6 : vector<1x384xf32> to vector<384xf32>
    %8 = vector.extract_strided_slice %5 {offsets = [1, 0], sizes = [1, 128], strides = [1, 1]} : vector<12x384xf32> to vector<1x128xf32>
    %9 = vector.shape_cast %8 : vector<1x128xf32> to vector<128xf32>
    %10 = vector.extract_strided_slice %5 {offsets = [2, 0], sizes = [1, 128], strides = [1, 1]} : vector<12x384xf32> to vector<1x128xf32>
    %11 = vector.shape_cast %10 : vector<1x128xf32> to vector<128xf32>
    %12 = vector.extract_strided_slice %5 {offsets = [3, 0], sizes = [1, 128], strides = [1, 1]} : vector<12x384xf32> to vector<1x128xf32>
    %13 = vector.shape_cast %12 : vector<1x128xf32> to vector<128xf32>
    %14 = vector.extract_strided_slice %5 {offsets = [4, 0], sizes = [1, 128], strides = [1, 1]} : vector<12x384xf32> to vector<1x128xf32>
    %15 = vector.shape_cast %14 : vector<1x128xf32> to vector<128xf32>
    %16 = vector.extract_strided_slice %5 {offsets = [5, 0], sizes = [1, 128], strides = [1, 1]} : vector<12x384xf32> to vector<1x128xf32>
    %17 = vector.shape_cast %16 : vector<1x128xf32> to vector<128xf32>
    %18 = vector.extract_strided_slice %5 {offsets = [6, 0], sizes = [1, 128], strides = [1, 1]} : vector<12x384xf32> to vector<1x128xf32>
    %19 = vector.shape_cast %18 : vector<1x128xf32> to vector<128xf32>
    %20 = vector.extract_strided_slice %5 {offsets = [7, 0], sizes = [1, 128], strides = [1, 1]} : vector<12x384xf32> to vector<1x128xf32>
    %21 = vector.shape_cast %20 : vector<1x128xf32> to vector<128xf32>
    %22 = vector.extract_strided_slice %5 {offsets = [8, 0], sizes = [1, 256], strides = [1, 1]} : vector<12x384xf32> to vector<1x256xf32>
    %23 = vector.shape_cast %22 : vector<1x256xf32> to vector<256xf32>
    %24 = vector.extract_strided_slice %5 {offsets = [9, 0], sizes = [1, 128], strides = [1, 1]} : vector<12x384xf32> to vector<1x128xf32>
    %25 = vector.shape_cast %24 : vector<1x128xf32> to vector<128xf32>
    %26 = vector.extract_strided_slice %5 {offsets = [10, 0], sizes = [1, 128], strides = [1, 1]} : vector<12x384xf32> to vector<1x128xf32>
    %27 = vector.shape_cast %26 : vector<1x128xf32> to vector<128xf32>
    %28 = vector.extract_strided_slice %5 {offsets = [11, 0], sizes = [1, 128], strides = [1, 1]} : vector<12x384xf32> to vector<1x128xf32>
    %29 = vector.shape_cast %28 : vector<1x128xf32> to vector<128xf32>
    %30 = arith.truncf %3 : vector<16x128xf32> to vector<16x128xbf16>
    %c0_5 = arith.constant 0 : index
    %c0_6 = arith.constant 0 : index
    %c0_7 = arith.constant 0 : index
    %31 = vector.load %arg4[%c0_5, %c0_6, %c0_7] : memref<1x128x384xbf16, #tpu.memory_space<vmem>>, vector<1x128x384xbf16>
    %32 = vector.shape_cast %31 : vector<1x128x384xbf16> to vector<128x384xbf16>
    %cst = arith.constant dense<0.000000e+00> : vector<16x384xf32>
    %33 = tpu.matmul %30, %32, %cst {dimension_numbers = #tpu.dot_dimension_numbers<[1], [0], [0], [1], [0, 0, 1, 1], [], []>} : vector<16x128xbf16>, vector<128x384xbf16>, vector<16x384xf32> -> vector<16x384xf32>
    %34 = vector.shape_cast %7 : vector<384xf32> to vector<1x384xf32>
    %35 = vector.broadcast %34 : vector<1x384xf32> to vector<16x384xf32>
    %36 = arith.addf %33, %35 : vector<16x384xf32>
    %37 = tpu.iota {dimensions = array<i32: 0>} : vector<8x8xi32>
    %38 = tpu.iota {dimensions = array<i32: 1>} : vector<8x8xi32>
    %39 = arith.cmpi sge, %37, %38 : vector<8x8xi32>
    %cst_8 = arith.constant 0.000000e+00 : f32
    %cst_9 = arith.constant -1.000000e+30 : f32
    %40 = vector.broadcast %cst_8 : f32 to vector<8x8xf32>
    %41 = vector.broadcast %cst_9 : f32 to vector<8x8xf32>
    %42 = arith.select %39, %40, %41 : vector<8x8xi1>, vector<8x8xf32>
    %c0_10 = arith.constant 0 : index
    %c0_11 = arith.constant 0 : index
    %43 = vector.load %arg3[%c0_10, %c0_11] : memref<2x8xf32, #tpu.memory_space<vmem>>, vector<2x8xf32>
    %44 = vector.extract_strided_slice %43 {offsets = [0, 0], sizes = [1, 8], strides = [1, 1]} : vector<2x8xf32> to vector<1x8xf32>
    %45 = vector.broadcast %44 : vector<1x8xf32> to vector<8x8xf32>
    %46 = arith.addf %42, %45 : vector<8x8xf32>
    %cst_12 = arith.constant -1.000000e+30 : f32
    %47 = vector.broadcast %cst_12 : f32 to vector<8x8xf32>
    %48 = arith.maximumf %46, %47 : vector<8x8xf32>
    %49 = vector.extract_strided_slice %36 {offsets = [0, 0], sizes = [8, 32], strides = [1, 1]} : vector<16x384xf32> to vector<8x32xf32>
    %50 = vector.extract_strided_slice %36 {offsets = [0, 128], sizes = [8, 32], strides = [1, 1]} : vector<16x384xf32> to vector<8x32xf32>
    %51 = vector.extract_strided_slice %36 {offsets = [0, 256], sizes = [8, 32], strides = [1, 1]} : vector<16x384xf32> to vector<8x32xf32>
    %52 = arith.truncf %49 : vector<8x32xf32> to vector<8x32xbf16>
    %53 = arith.truncf %50 : vector<8x32xf32> to vector<8x32xbf16>
    %cst_13 = arith.constant dense<0.000000e+00> : vector<8x8xf32>
    %54 = tpu.matmul %52, %53, %cst_13 {dimension_numbers = #tpu.dot_dimension_numbers<[1], [1], [0], [0], [0, 0, 1, 0], [], []>} : vector<8x32xbf16>, vector<8x32xbf16>, vector<8x8xf32> -> vector<8x8xf32>
    %cst_14 = arith.constant 0.176776692 : f32
    %55 = vector.broadcast %cst_14 : f32 to vector<8x8xf32>
    %56 = arith.mulf %54, %55 : vector<8x8xf32>
    %57 = arith.addf %56, %48 : vector<8x8xf32>
    %cst_15 = arith.constant dense<0xFF800000> : vector<8xf32>
    %58 = vector.multi_reduction <maximumf>, %57, %cst_15 [1] : vector<8x8xf32> to vector<8xf32>
    %59 = vector.shape_cast %58 : vector<8xf32> to vector<8x1xf32>
    %60 = vector.broadcast %59 : vector<8x1xf32> to vector<8x8xf32>
    %61 = arith.subf %57, %60 : vector<8x8xf32>
    %62 = math.exp %61 : vector<8x8xf32>
    %cst_16 = arith.constant dense<0.000000e+00> : vector<8xf32>
    %63 = vector.multi_reduction <add>, %62, %cst_16 [1] : vector<8x8xf32> to vector<8xf32>
    %64 = vector.shape_cast %63 : vector<8xf32> to vector<8x1xf32>
    %65 = tpu.reciprocal %64 {approx = true} : vector<8x1xf32> -> vector<8x1xf32>
    %66 = vector.broadcast %65 : vector<8x1xf32> to vector<8x8xf32>
    %67 = arith.mulf %62, %66 : vector<8x8xf32>
    %68 = arith.truncf %67 : vector<8x8xf32> to vector<8x8xbf16>
    %69 = arith.truncf %51 : vector<8x32xf32> to vector<8x32xbf16>
    %cst_17 = arith.constant dense<0.000000e+00> : vector<8x32xf32>
    %70 = tpu.matmul %68, %69, %cst_17 {dimension_numbers = #tpu.dot_dimension_numbers<[1], [0], [0], [1], [0, 0, 1, 1], [], []>} : vector<8x8xbf16>, vector<8x32xbf16>, vector<8x32xf32> -> vector<8x32xf32>
    %c0_18 = arith.constant 0 : index
    %c0_19 = arith.constant 0 : index
    %71 = vector.load %arg17[%c0_18, %c0_19] : memref<16x128xf32, #tpu.memory_space<vmem>>, vector<8x32xf32>
    tpu.vector_store %arg17[%c0_18, %c0_19], %70 {strides = array<i32>} : memref<16x128xf32, #tpu.memory_space<vmem>>, vector<8x32xf32>,
    %72 = vector.extract_strided_slice %36 {offsets = [0, 32], sizes = [8, 32], strides = [1, 1]} : vector<16x384xf32> to vector<8x32xf32>
    %73 = vector.extract_strided_slice %36 {offsets = [0, 160], sizes = [8, 32], strides = [1, 1]} : vector<16x384xf32> to vector<8x32xf32>
    %74 = vector.extract_strided_slice %36 {offsets = [0, 288], sizes = [8, 32], strides = [1, 1]} : vector<16x384xf32> to vector<8x32xf32>
    %75 = arith.truncf %72 : vector<8x32xf32> to vector<8x32xbf16>
    %76 = arith.truncf %73 : vector<8x32xf32> to vector<8x32xbf16>
    %cst_20 = arith.constant dense<0.000000e+00> : vector<8x8xf32>
    %77 = tpu.matmul %75, %76, %cst_20 {dimension_numbers = #tpu.dot_dimension_numbers<[1], [1], [0], [0], [0, 0, 1, 0], [], []>} : vector<8x32xbf16>, vector<8x32xbf16>, vector<8x8xf32> -> vector<8x8xf32>
    %cst_21 = arith.constant 0.176776692 : f32
    %78 = vector.broadcast %cst_21 : f32 to vector<8x8xf32>
    %79 = arith.mulf %77, %78 : vector<8x8xf32>
    %80 = arith.addf %79, %48 : vector<8x8xf32>
    %cst_22 = arith.constant dense<0xFF800000> : vector<8xf32>
    %81 = vector.multi_reduction <maximumf>, %80, %cst_22 [1] : vector<8x8xf32> to vector<8xf32>
    %82 = vector.shape_cast %81 : vector<8xf32> to vector<8x1xf32>
    %83 = vector.broadcast %82 : vector<8x1xf32> to vector<8x8xf32>
    %84 = arith.subf %80, %83 : vector<8x8xf32>
    %85 = math.exp %84 : vector<8x8xf32>
    %cst_23 = arith.constant dense<0.000000e+00> : vector<8xf32>
    %86 = vector.multi_reduction <add>, %85, %cst_23 [1] : vector<8x8xf32> to vector<8xf32>
    %87 = vector.shape_cast %86 : vector<8xf32> to vector<8x1xf32>
    %88 = tpu.reciprocal %87 {approx = true} : vector<8x1xf32> -> vector<8x1xf32>
    %89 = vector.broadcast %88 : vector<8x1xf32> to vector<8x8xf32>
    %90 = arith.mulf %85, %89 : vector<8x8xf32>
    %91 = arith.truncf %90 : vector<8x8xf32> to vector<8x8xbf16>
    %92 = arith.truncf %74 : vector<8x32xf32> to vector<8x32xbf16>
    %cst_24 = arith.constant dense<0.000000e+00> : vector<8x32xf32>
    %93 = tpu.matmul %91, %92, %cst_24 {dimension_numbers = #tpu.dot_dimension_numbers<[1], [0], [0], [1], [0, 0, 1, 1], [], []>} : vector<8x8xbf16>, vector<8x32xbf16>, vector<8x32xf32> -> vector<8x32xf32>
    %c0_25 = arith.constant 0 : index
    %c32 = arith.constant 32 : index
    %94 = vector.load %arg17[%c0_25, %c32] : memref<16x128xf32, #tpu.memory_space<vmem>>, vector<8x32xf32>
    tpu.vector_store %arg17[%c0_25, %c32], %93 {strides = array<i32>} : memref<16x128xf32, #tpu.memory_space<vmem>>, vector<8x32xf32>,
    %95 = vector.extract_strided_slice %36 {offsets = [0, 64], sizes = [8, 32], strides = [1, 1]} : vector<16x384xf32> to vector<8x32xf32>
    %96 = vector.extract_strided_slice %36 {offsets = [0, 192], sizes = [8, 32], strides = [1, 1]} : vector<16x384xf32> to vector<8x32xf32>
    %97 = vector.extract_strided_slice %36 {offsets = [0, 320], sizes = [8, 32], strides = [1, 1]} : vector<16x384xf32> to vector<8x32xf32>
    %98 = arith.truncf %95 : vector<8x32xf32> to vector<8x32xbf16>
    %99 = arith.truncf %96 : vector<8x32xf32> to vector<8x32xbf16>
    %cst_26 = arith.constant dense<0.000000e+00> : vector<8x8xf32>
    %100 = tpu.matmul %98, %99, %cst_26 {dimension_numbers = #tpu.dot_dimension_numbers<[1], [1], [0], [0], [0, 0, 1, 0], [], []>} : vector<8x32xbf16>, vector<8x32xbf16>, vector<8x8xf32> -> vector<8x8xf32>
    %cst_27 = arith.constant 0.176776692 : f32
    %101 = vector.broadcast %cst_27 : f32 to vector<8x8xf32>
    %102 = arith.mulf %100, %101 : vector<8x8xf32>
    %103 = arith.addf %102, %48 : vector<8x8xf32>
    %cst_28 = arith.constant dense<0xFF800000> : vector<8xf32>
    %104 = vector.multi_reduction <maximumf>, %103, %cst_28 [1] : vector<8x8xf32> to vector<8xf32>
    %105 = vector.shape_cast %104 : vector<8xf32> to vector<8x1xf32>
    %106 = vector.broadcast %105 : vector<8x1xf32> to vector<8x8xf32>
    %107 = arith.subf %103, %106 : vector<8x8xf32>
    %108 = math.exp %107 : vector<8x8xf32>
    %cst_29 = arith.constant dense<0.000000e+00> : vector<8xf32>
    %109 = vector.multi_reduction <add>, %108, %cst_29 [1] : vector<8x8xf32> to vector<8xf32>
    %110 = vector.shape_cast %109 : vector<8xf32> to vector<8x1xf32>
    %111 = tpu.reciprocal %110 {approx = true} : vector<8x1xf32> -> vector<8x1xf32>
    %112 = vector.broadcast %111 : vector<8x1xf32> to vector<8x8xf32>
    %113 = arith.mulf %108, %112 : vector<8x8xf32>
    %114 = arith.truncf %113 : vector<8x8xf32> to vector<8x8xbf16>
    %115 = arith.truncf %97 : vector<8x32xf32> to vector<8x32xbf16>
    %cst_30 = arith.constant dense<0.000000e+00> : vector<8x32xf32>
    %116 = tpu.matmul %114, %115, %cst_30 {dimension_numbers = #tpu.dot_dimension_numbers<[1], [0], [0], [1], [0, 0, 1, 1], [], []>} : vector<8x8xbf16>, vector<8x32xbf16>, vector<8x32xf32> -> vector<8x32xf32>
    %c0_31 = arith.constant 0 : index
    %c64 = arith.constant 64 : index
    %117 = vector.load %arg17[%c0_31, %c64] : memref<16x128xf32, #tpu.memory_space<vmem>>, vector<8x32xf32>
    tpu.vector_store %arg17[%c0_31, %c64], %116 {strides = array<i32>} : memref<16x128xf32, #tpu.memory_space<vmem>>, vector<8x32xf32>,
    %118 = vector.extract_strided_slice %36 {offsets = [0, 96], sizes = [8, 32], strides = [1, 1]} : vector<16x384xf32> to vector<8x32xf32>
    %119 = vector.extract_strided_slice %36 {offsets = [0, 224], sizes = [8, 32], strides = [1, 1]} : vector<16x384xf32> to vector<8x32xf32>
    %120 = vector.extract_strided_slice %36 {offsets = [0, 352], sizes = [8, 32], strides = [1, 1]} : vector<16x384xf32> to vector<8x32xf32>
    %121 = arith.truncf %118 : vector<8x32xf32> to vector<8x32xbf16>
    %122 = arith.truncf %119 : vector<8x32xf32> to vector<8x32xbf16>
    %cst_32 = arith.constant dense<0.000000e+00> : vector<8x8xf32>
    %123 = tpu.matmul %121, %122, %cst_32 {dimension_numbers = #tpu.dot_dimension_numbers<[1], [1], [0], [0], [0, 0, 1, 0], [], []>} : vector<8x32xbf16>, vector<8x32xbf16>, vector<8x8xf32> -> vector<8x8xf32>
    %cst_33 = arith.constant 0.176776692 : f32
    %124 = vector.broadcast %cst_33 : f32 to vector<8x8xf32>
    %125 = arith.mulf %123, %124 : vector<8x8xf32>
    %126 = arith.addf %125, %48 : vector<8x8xf32>
    %cst_34 = arith.constant dense<0xFF800000> : vector<8xf32>
    %127 = vector.multi_reduction <maximumf>, %126, %cst_34 [1] : vector<8x8xf32> to vector<8xf32>
    %128 = vector.shape_cast %127 : vector<8xf32> to vector<8x1xf32>
    %129 = vector.broadcast %128 : vector<8x1xf32> to vector<8x8xf32>
    %130 = arith.subf %126, %129 : vector<8x8xf32>
    %131 = math.exp %130 : vector<8x8xf32>
    %cst_35 = arith.constant dense<0.000000e+00> : vector<8xf32>
    %132 = vector.multi_reduction <add>, %131, %cst_35 [1] : vector<8x8xf32> to vector<8xf32>
    %133 = vector.shape_cast %132 : vector<8xf32> to vector<8x1xf32>
    %134 = tpu.reciprocal %133 {approx = true} : vector<8x1xf32> -> vector<8x1xf32>
    %135 = vector.broadcast %134 : vector<8x1xf32> to vector<8x8xf32>
    %136 = arith.mulf %131, %135 : vector<8x8xf32>
    %137 = arith.truncf %136 : vector<8x8xf32> to vector<8x8xbf16>
    %138 = arith.truncf %120 : vector<8x32xf32> to vector<8x32xbf16>
    %cst_36 = arith.constant dense<0.000000e+00> : vector<8x32xf32>
    %139 = tpu.matmul %137, %138, %cst_36 {dimension_numbers = #tpu.dot_dimension_numbers<[1], [0], [0], [1], [0, 0, 1, 1], [], []>} : vector<8x8xbf16>, vector<8x32xbf16>, vector<8x32xf32> -> vector<8x32xf32>
    %c0_37 = arith.constant 0 : index
    %c96 = arith.constant 96 : index
    %140 = vector.load %arg17[%c0_37, %c96] : memref<16x128xf32, #tpu.memory_space<vmem>>, vector<8x32xf32>
    tpu.vector_store %arg17[%c0_37, %c96], %139 {strides = array<i32>} : memref<16x128xf32, #tpu.memory_space<vmem>>, vector<8x32xf32>,
    %141 = vector.extract_strided_slice %43 {offsets = [1, 0], sizes = [1, 8], strides = [1, 1]} : vector<2x8xf32> to vector<1x8xf32>
    %142 = vector.broadcast %141 : vector<1x8xf32> to vector<8x8xf32>
    %143 = arith.addf %42, %142 : vector<8x8xf32>
    %cst_38 = arith.constant -1.000000e+30 : f32
    %144 = vector.broadcast %cst_38 : f32 to vector<8x8xf32>
    %145 = arith.maximumf %143, %144 : vector<8x8xf32>
    %146 = vector.extract_strided_slice %36 {offsets = [8, 0], sizes = [8, 32], strides = [1, 1]} : vector<16x384xf32> to vector<8x32xf32>
    %147 = vector.extract_strided_slice %36 {offsets = [8, 128], sizes = [8, 32], strides = [1, 1]} : vector<16x384xf32> to vector<8x32xf32>
    %148 = vector.extract_strided_slice %36 {offsets = [8, 256], sizes = [8, 32], strides = [1, 1]} : vector<16x384xf32> to vector<8x32xf32>
    %149 = arith.truncf %146 : vector<8x32xf32> to vector<8x32xbf16>
    %150 = arith.truncf %147 : vector<8x32xf32> to vector<8x32xbf16>
    %cst_39 = arith.constant dense<0.000000e+00> : vector<8x8xf32>
    %151 = tpu.matmul %149, %150, %cst_39 {dimension_numbers = #tpu.dot_dimension_numbers<[1], [1], [0], [0], [0, 0, 1, 0], [], []>} : vector<8x32xbf16>, vector<8x32xbf16>, vector<8x8xf32> -> vector<8x8xf32>
    %cst_40 = arith.constant 0.176776692 : f32
    %152 = vector.broadcast %cst_40 : f32 to vector<8x8xf32>
    %153 = arith.mulf %151, %152 : vector<8x8xf32>
    %154 = arith.addf %153, %145 : vector<8x8xf32>
    %cst_41 = arith.constant dense<0xFF800000> : vector<8xf32>
    %155 = vector.multi_reduction <maximumf>, %154, %cst_41 [1] : vector<8x8xf32> to vector<8xf32>
    %156 = vector.shape_cast %155 : vector<8xf32> to vector<8x1xf32>
    %157 = vector.broadcast %156 : vector<8x1xf32> to vector<8x8xf32>
    %158 = arith.subf %154, %157 : vector<8x8xf32>
    %159 = math.exp %158 : vector<8x8xf32>
    %cst_42 = arith.constant dense<0.000000e+00> : vector<8xf32>
    %160 = vector.multi_reduction <add>, %159, %cst_42 [1] : vector<8x8xf32> to vector<8xf32>
    %161 = vector.shape_cast %160 : vector<8xf32> to vector<8x1xf32>
    %162 = tpu.reciprocal %161 {approx = true} : vector<8x1xf32> -> vector<8x1xf32>
    %163 = vector.broadcast %162 : vector<8x1xf32> to vector<8x8xf32>
    %164 = arith.mulf %159, %163 : vector<8x8xf32>
    %165 = arith.truncf %164 : vector<8x8xf32> to vector<8x8xbf16>
    %166 = arith.truncf %148 : vector<8x32xf32> to vector<8x32xbf16>
    %cst_43 = arith.constant dense<0.000000e+00> : vector<8x32xf32>
    %167 = tpu.matmul %165, %166, %cst_43 {dimension_numbers = #tpu.dot_dimension_numbers<[1], [0], [0], [1], [0, 0, 1, 1], [], []>} : vector<8x8xbf16>, vector<8x32xbf16>, vector<8x32xf32> -> vector<8x32xf32>
    %c8 = arith.constant 8 : index
    %c0_44 = arith.constant 0 : index
    %168 = vector.load %arg17[%c8, %c0_44] : memref<16x128xf32, #tpu.memory_space<vmem>>, vector<8x32xf32>
    tpu.vector_store %arg17[%c8, %c0_44], %167 {strides = array<i32>} : memref<16x128xf32, #tpu.memory_space<vmem>>, vector<8x32xf32>,
    %169 = vector.extract_strided_slice %36 {offsets = [8, 32], sizes = [8, 32], strides = [1, 1]} : vector<16x384xf32> to vector<8x32xf32>
    %170 = vector.extract_strided_slice %36 {offsets = [8, 160], sizes = [8, 32], strides = [1, 1]} : vector<16x384xf32> to vector<8x32xf32>
    %171 = vector.extract_strided_slice %36 {offsets = [8, 288], sizes = [8, 32], strides = [1, 1]} : vector<16x384xf32> to vector<8x32xf32>
    %172 = arith.truncf %169 : vector<8x32xf32> to vector<8x32xbf16>
    %173 = arith.truncf %170 : vector<8x32xf32> to vector<8x32xbf16>
    %cst_45 = arith.constant dense<0.000000e+00> : vector<8x8xf32>
    %174 = tpu.matmul %172, %173, %cst_45 {dimension_numbers = #tpu.dot_dimension_numbers<[1], [1], [0], [0], [0, 0, 1, 0], [], []>} : vector<8x32xbf16>, vector<8x32xbf16>, vector<8x8xf32> -> vector<8x8xf32>
    %cst_46 = arith.constant 0.176776692 : f32
    %175 = vector.broadcast %cst_46 : f32 to vector<8x8xf32>
    %176 = arith.mulf %174, %175 : vector<8x8xf32>
    %177 = arith.addf %176, %145 : vector<8x8xf32>
    %cst_47 = arith.constant dense<0xFF800000> : vector<8xf32>
    %178 = vector.multi_reduction <maximumf>, %177, %cst_47 [1] : vector<8x8xf32> to vector<8xf32>
    %179 = vector.shape_cast %178 : vector<8xf32> to vector<8x1xf32>
    %180 = vector.broadcast %179 : vector<8x1xf32> to vector<8x8xf32>
    %181 = arith.subf %177, %180 : vector<8x8xf32>
    %182 = math.exp %181 : vector<8x8xf32>
    %cst_48 = arith.constant dense<0.000000e+00> : vector<8xf32>
    %183 = vector.multi_reduction <add>, %182, %cst_48 [1] : vector<8x8xf32> to vector<8xf32>
    %184 = vector.shape_cast %183 : vector<8xf32> to vector<8x1xf32>
    %185 = tpu.reciprocal %184 {approx = true} : vector<8x1xf32> -> vector<8x1xf32>
    %186 = vector.broadcast %185 : vector<8x1xf32> to vector<8x8xf32>
    %187 = arith.mulf %182, %186 : vector<8x8xf32>
    %188 = arith.truncf %187 : vector<8x8xf32> to vector<8x8xbf16>
    %189 = arith.truncf %171 : vector<8x32xf32> to vector<8x32xbf16>
    %cst_49 = arith.constant dense<0.000000e+00> : vector<8x32xf32>
    %190 = tpu.matmul %188, %189, %cst_49 {dimension_numbers = #tpu.dot_dimension_numbers<[1], [0], [0], [1], [0, 0, 1, 1], [], []>} : vector<8x8xbf16>, vector<8x32xbf16>, vector<8x32xf32> -> vector<8x32xf32>
    %c8_50 = arith.constant 8 : index
    %c32_51 = arith.constant 32 : index
    %191 = vector.load %arg17[%c8_50, %c32_51] : memref<16x128xf32, #tpu.memory_space<vmem>>, vector<8x32xf32>
    tpu.vector_store %arg17[%c8_50, %c32_51], %190 {strides = array<i32>} : memref<16x128xf32, #tpu.memory_space<vmem>>, vector<8x32xf32>,
    %192 = vector.extract_strided_slice %36 {offsets = [8, 64], sizes = [8, 32], strides = [1, 1]} : vector<16x384xf32> to vector<8x32xf32>
    %193 = vector.extract_strided_slice %36 {offsets = [8, 192], sizes = [8, 32], strides = [1, 1]} : vector<16x384xf32> to vector<8x32xf32>
    %194 = vector.extract_strided_slice %36 {offsets = [8, 320], sizes = [8, 32], strides = [1, 1]} : vector<16x384xf32> to vector<8x32xf32>
    %195 = arith.truncf %192 : vector<8x32xf32> to vector<8x32xbf16>
    %196 = arith.truncf %193 : vector<8x32xf32> to vector<8x32xbf16>
    %cst_52 = arith.constant dense<0.000000e+00> : vector<8x8xf32>
    %197 = tpu.matmul %195, %196, %cst_52 {dimension_numbers = #tpu.dot_dimension_numbers<[1], [1], [0], [0], [0, 0, 1, 0], [], []>} : vector<8x32xbf16>, vector<8x32xbf16>, vector<8x8xf32> -> vector<8x8xf32>
    %cst_53 = arith.constant 0.176776692 : f32
    %198 = vector.broadcast %cst_53 : f32 to vector<8x8xf32>
    %199 = arith.mulf %197, %198 : vector<8x8xf32>
    %200 = arith.addf %199, %145 : vector<8x8xf32>
    %cst_54 = arith.constant dense<0xFF800000> : vector<8xf32>
    %201 = vector.multi_reduction <maximumf>, %200, %cst_54 [1] : vector<8x8xf32> to vector<8xf32>
    %202 = vector.shape_cast %201 : vector<8xf32> to vector<8x1xf32>
    %203 = vector.broadcast %202 : vector<8x1xf32> to vector<8x8xf32>
    %204 = arith.subf %200, %203 : vector<8x8xf32>
    %205 = math.exp %204 : vector<8x8xf32>
    %cst_55 = arith.constant dense<0.000000e+00> : vector<8xf32>
    %206 = vector.multi_reduction <add>, %205, %cst_55 [1] : vector<8x8xf32> to vector<8xf32>
    %207 = vector.shape_cast %206 : vector<8xf32> to vector<8x1xf32>
    %208 = tpu.reciprocal %207 {approx = true} : vector<8x1xf32> -> vector<8x1xf32>
    %209 = vector.broadcast %208 : vector<8x1xf32> to vector<8x8xf32>
    %210 = arith.mulf %205, %209 : vector<8x8xf32>
    %211 = arith.truncf %210 : vector<8x8xf32> to vector<8x8xbf16>
    %212 = arith.truncf %194 : vector<8x32xf32> to vector<8x32xbf16>
    %cst_56 = arith.constant dense<0.000000e+00> : vector<8x32xf32>
    %213 = tpu.matmul %211, %212, %cst_56 {dimension_numbers = #tpu.dot_dimension_numbers<[1], [0], [0], [1], [0, 0, 1, 1], [], []>} : vector<8x8xbf16>, vector<8x32xbf16>, vector<8x32xf32> -> vector<8x32xf32>
    %c8_57 = arith.constant 8 : index
    %c64_58 = arith.constant 64 : index
    %214 = vector.load %arg17[%c8_57, %c64_58] : memref<16x128xf32, #tpu.memory_space<vmem>>, vector<8x32xf32>
    tpu.vector_store %arg17[%c8_57, %c64_58], %213 {strides = array<i32>} : memref<16x128xf32, #tpu.memory_space<vmem>>, vector<8x32xf32>,
    %215 = vector.extract_strided_slice %36 {offsets = [8, 96], sizes = [8, 32], strides = [1, 1]} : vector<16x384xf32> to vector<8x32xf32>
    %216 = vector.extract_strided_slice %36 {offsets = [8, 224], sizes = [8, 32], strides = [1, 1]} : vector<16x384xf32> to vector<8x32xf32>
    %217 = vector.extract_strided_slice %36 {offsets = [8, 352], sizes = [8, 32], strides = [1, 1]} : vector<16x384xf32> to vector<8x32xf32>
    %218 = arith.truncf %215 : vector<8x32xf32> to vector<8x32xbf16>
    %219 = arith.truncf %216 : vector<8x32xf32> to vector<8x32xbf16>
    %cst_59 = arith.constant dense<0.000000e+00> : vector<8x8xf32>
    %220 = tpu.matmul %218, %219, %cst_59 {dimension_numbers = #tpu.dot_dimension_numbers<[1], [1], [0], [0], [0, 0, 1, 0], [], []>} : vector<8x32xbf16>, vector<8x32xbf16>, vector<8x8xf32> -> vector<8x8xf32>
    %cst_60 = arith.constant 0.176776692 : f32
    %221 = vector.broadcast %cst_60 : f32 to vector<8x8xf32>
    %222 = arith.mulf %220, %221 : vector<8x8xf32>
    %223 = arith.addf %222, %145 : vector<8x8xf32>
    %cst_61 = arith.constant dense<0xFF800000> : vector<8xf32>
    %224 = vector.multi_reduction <maximumf>, %223, %cst_61 [1] : vector<8x8xf32> to vector<8xf32>
    %225 = vector.shape_cast %224 : vector<8xf32> to vector<8x1xf32>
    %226 = vector.broadcast %225 : vector<8x1xf32> to vector<8x8xf32>
    %227 = arith.subf %223, %226 : vector<8x8xf32>
    %228 = math.exp %227 : vector<8x8xf32>
    %cst_62 = arith.constant dense<0.000000e+00> : vector<8xf32>
    %229 = vector.multi_reduction <add>, %228, %cst_62 [1] : vector<8x8xf32> to vector<8xf32>
    %230 = vector.shape_cast %229 : vector<8xf32> to vector<8x1xf32>
    %231 = tpu.reciprocal %230 {approx = true} : vector<8x1xf32> -> vector<8x1xf32>
    %232 = vector.broadcast %231 : vector<8x1xf32> to vector<8x8xf32>
    %233 = arith.mulf %228, %232 : vector<8x8xf32>
    %234 = arith.truncf %233 : vector<8x8xf32> to vector<8x8xbf16>
    %235 = arith.truncf %217 : vector<8x32xf32> to vector<8x32xbf16>
    %cst_63 = arith.constant dense<0.000000e+00> : vector<8x32xf32>
    %236 = tpu.matmul %234, %235, %cst_63 {dimension_numbers = #tpu.dot_dimension_numbers<[1], [0], [0], [1], [0, 0, 1, 1], [], []>} : vector<8x8xbf16>, vector<8x32xbf16>, vector<8x32xf32> -> vector<8x32xf32>
    %c8_64 = arith.constant 8 : index
    %c96_65 = arith.constant 96 : index
    %237 = vector.load %arg17[%c8_64, %c96_65] : memref<16x128xf32, #tpu.memory_space<vmem>>, vector<8x32xf32>
    tpu.vector_store %arg17[%c8_64, %c96_65], %236 {strides = array<i32>} : memref<16x128xf32, #tpu.memory_space<vmem>>, vector<8x32xf32>,
    %c0_66 = arith.constant 0 : index
    %c0_67 = arith.constant 0 : index
    %238 = vector.load %arg17[%c0_66, %c0_67] : memref<16x128xf32, #tpu.memory_space<vmem>>, vector<16x128xf32>
    %239 = arith.truncf %238 : vector<16x128xf32> to vector<16x128xbf16>
    %c0_68 = arith.constant 0 : index
    %c0_69 = arith.constant 0 : index
    %c0_70 = arith.constant 0 : index
    %240 = vector.load %arg5[%c0_68, %c0_69, %c0_70] : memref<1x128x128xbf16, #tpu.memory_space<vmem>>, vector<1x128x128xbf16>
    %241 = vector.shape_cast %240 : vector<1x128x128xbf16> to vector<128x128xbf16>
    %cst_71 = arith.constant dense<0.000000e+00> : vector<16x128xf32>
    %242 = tpu.matmul %239, %241, %cst_71 {dimension_numbers = #tpu.dot_dimension_numbers<[1], [0], [0], [1], [0, 0, 1, 1], [], []>} : vector<16x128xbf16>, vector<128x128xbf16>, vector<16x128xf32> -> vector<16x128xf32>
    %243 = vector.shape_cast %9 : vector<128xf32> to vector<1x128xf32>
    %244 = vector.broadcast %243 : vector<1x128xf32> to vector<16x128xf32>
    %245 = arith.addf %242, %244 : vector<16x128xf32>
    %246 = arith.addf %3, %245 : vector<16x128xf32>
    %cst_72 = arith.constant dense<0.000000e+00> : vector<16xf32>
    %247 = vector.multi_reduction <add>, %246, %cst_72 [1] : vector<16x128xf32> to vector<16xf32>
    %248 = vector.shape_cast %247 : vector<16xf32> to vector<16x1xf32>
    %cst_73 = arith.constant 1.280000e+02 : f32
    %249 = vector.broadcast %cst_73 : f32 to vector<16x1xf32>
    %250 = arith.divf %248, %249 : vector<16x1xf32>
    %251 = vector.broadcast %250 : vector<16x1xf32> to vector<16x128xf32>
    %252 = arith.subf %246, %251 : vector<16x128xf32>
    %253 = arith.mulf %252, %252 : vector<16x128xf32>
    %cst_74 = arith.constant dense<0.000000e+00> : vector<16xf32>
    %254 = vector.multi_reduction <add>, %253, %cst_74 [1] : vector<16x128xf32> to vector<16xf32>
    %255 = vector.shape_cast %254 : vector<16xf32> to vector<16x1xf32>
    %cst_75 = arith.constant 1.280000e+02 : f32
    %256 = vector.broadcast %cst_75 : f32 to vector<16x1xf32>
    %257 = arith.divf %255, %256 : vector<16x1xf32>
    %cst_76 = arith.constant 9.99999974E-6 : f32
    %258 = vector.broadcast %cst_76 : f32 to vector<16x1xf32>
    %259 = arith.addf %257, %258 : vector<16x1xf32>
    %260 = math.rsqrt %259 : vector<16x1xf32>
    %261 = vector.broadcast %260 : vector<16x1xf32> to vector<16x128xf32>
    %262 = arith.mulf %252, %261 : vector<16x128xf32>
    %263 = vector.shape_cast %11 : vector<128xf32> to vector<1x128xf32>
    %264 = vector.broadcast %263 : vector<1x128xf32> to vector<16x128xf32>
    %265 = arith.mulf %262, %264 : vector<16x128xf32>
    %266 = vector.shape_cast %13 : vector<128xf32> to vector<1x128xf32>
    %267 = vector.broadcast %266 : vector<1x128xf32> to vector<16x128xf32>
    %268 = arith.addf %265, %267 : vector<16x128xf32>
    %c0_77 = arith.constant 0 : index
    %c0_78 = arith.constant 0 : index
    %269 = vector.load %arg2[%c0_77, %c0_78] : memref<2x128xf32, #tpu.memory_space<vmem>>, vector<2x128xf32>
    %270 = arith.truncf %269 : vector<2x128xf32> to vector<2x128xbf16>
    %c0_79 = arith.constant 0 : index
    %c0_80 = arith.constant 0 : index
    %c0_81 = arith.constant 0 : index
    %271 = vector.load %arg6[%c0_79, %c0_80, %c0_81] : memref<1x128x128xbf16, #tpu.memory_space<vmem>>, vector<1x128x128xbf16>
    %272 = vector.shape_cast %271 : vector<1x128x128xbf16> to vector<128x128xbf16>
    %cst_82 = arith.constant dense<0.000000e+00> : vector<2x128xf32>
    %273 = tpu.matmul %270, %272, %cst_82 {dimension_numbers = #tpu.dot_dimension_numbers<[1], [0], [0], [1], [0, 0, 1, 1], [], []>} : vector<2x128xbf16>, vector<128x128xbf16>, vector<2x128xf32> -> vector<2x128xf32>
    %274 = vector.shape_cast %15 : vector<128xf32> to vector<1x128xf32>
    %275 = vector.broadcast %274 : vector<1x128xf32> to vector<2x128xf32>
    %276 = arith.addf %273, %275 : vector<2x128xf32>
    %277 = arith.truncf %276 : vector<2x128xf32> to vector<2x128xbf16>
    %c0_83 = arith.constant 0 : index
    %c0_84 = arith.constant 0 : index
    %c0_85 = arith.constant 0 : index
    %278 = vector.load %arg7[%c0_83, %c0_84, %c0_85] : memref<1x128x128xbf16, #tpu.memory_space<vmem>>, vector<1x128x128xbf16>
    %279 = vector.shape_cast %278 : vector<1x128x128xbf16> to vector<128x128xbf16>
    %cst_86 = arith.constant dense<0.000000e+00> : vector<2x128xf32>
    %280 = tpu.matmul %277, %279, %cst_86 {dimension_numbers = #tpu.dot_dimension_numbers<[1], [0], [0], [1], [0, 0, 1, 1], [], []>} : vector<2x128xbf16>, vector<128x128xbf16>, vector<2x128xf32> -> vector<2x128xf32>
    %281 = vector.shape_cast %17 : vector<128xf32> to vector<1x128xf32>
    %282 = vector.broadcast %281 : vector<1x128xf32> to vector<2x128xf32>
    %283 = arith.addf %280, %282 : vector<2x128xf32>
    %284 = vector.shape_cast %268 : vector<16x128xf32> to vector<2x8x128xf32>
    %285 = vector.shape_cast %283 : vector<2x128xf32> to vector<2x1x128xf32>
    %286 = vector.broadcast %285 : vector<2x1x128xf32> to vector<2x8x128xf32>
    %287 = arith.addf %284, %286 : vector<2x8x128xf32>
    %288 = vector.shape_cast %287 : vector<2x8x128xf32> to vector<16x128xf32>
    %cst_87 = arith.constant dense<0.000000e+00> : vector<16xf32>
    %289 = vector.multi_reduction <add>, %288, %cst_87 [1] : vector<16x128xf32> to vector<16xf32>
    %290 = vector.shape_cast %289 : vector<16xf32> to vector<16x1xf32>
    %cst_88 = arith.constant 1.280000e+02 : f32
    %291 = vector.broadcast %cst_88 : f32 to vector<16x1xf32>
    %292 = arith.divf %290, %291 : vector<16x1xf32>
    %293 = vector.broadcast %292 : vector<16x1xf32> to vector<16x128xf32>
    %294 = arith.subf %288, %293 : vector<16x128xf32>
    %295 = arith.mulf %294, %294 : vector<16x128xf32>
    %cst_89 = arith.constant dense<0.000000e+00> : vector<16xf32>
    %296 = vector.multi_reduction <add>, %295, %cst_89 [1] : vector<16x128xf32> to vector<16xf32>
    %297 = vector.shape_cast %296 : vector<16xf32> to vector<16x1xf32>
    %cst_90 = arith.constant 1.280000e+02 : f32
    %298 = vector.broadcast %cst_90 : f32 to vector<16x1xf32>
    %299 = arith.divf %297, %298 : vector<16x1xf32>
    %cst_91 = arith.constant 9.99999974E-6 : f32
    %300 = vector.broadcast %cst_91 : f32 to vector<16x1xf32>
    %301 = arith.addf %299, %300 : vector<16x1xf32>
    %302 = math.rsqrt %301 : vector<16x1xf32>
    %303 = vector.broadcast %302 : vector<16x1xf32> to vector<16x128xf32>
    %304 = arith.mulf %294, %303 : vector<16x128xf32>
    %305 = vector.shape_cast %19 : vector<128xf32> to vector<1x128xf32>
    %306 = vector.broadcast %305 : vector<1x128xf32> to vector<16x128xf32>
    %307 = arith.mulf %304, %306 : vector<16x128xf32>
    %308 = vector.shape_cast %21 : vector<128xf32> to vector<1x128xf32>
    %309 = vector.broadcast %308 : vector<1x128xf32> to vector<16x128xf32>
    %310 = arith.addf %307, %309 : vector<16x128xf32>
    %311 = arith.truncf %310 : vector<16x128xf32> to vector<16x128xbf16>
    %c0_92 = arith.constant 0 : index
    %c0_93 = arith.constant 0 : index
    %c0_94 = arith.constant 0 : index
    %312 = vector.load %arg8[%c0_92, %c0_93, %c0_94] : memref<1x128x256xbf16, #tpu.memory_space<vmem>>, vector<1x128x256xbf16>
    %313 = vector.shape_cast %312 : vector<1x128x256xbf16> to vector<128x256xbf16>
    %cst_95 = arith.constant dense<0.000000e+00> : vector<16x256xf32>
    %314 = tpu.matmul %311, %313, %cst_95 {dimension_numbers = #tpu.dot_dimension_numbers<[1], [0], [0], [1], [0, 0, 1, 1], [], []>} : vector<16x128xbf16>, vector<128x256xbf16>, vector<16x256xf32> -> vector<16x256xf32>
    %315 = vector.shape_cast %23 : vector<256xf32> to vector<1x256xf32>
    %316 = vector.broadcast %315 : vector<1x256xf32> to vector<16x256xf32>
    %317 = arith.addf %314, %316 : vector<16x256xf32>
    %cst_96 = arith.constant 0.000000e+00 : f32
    %318 = vector.broadcast %cst_96 : f32 to vector<16x256xf32>
    %319 = arith.maximumf %317, %318 : vector<16x256xf32>
    %320 = arith.truncf %319 : vector<16x256xf32> to vector<16x256xbf16>
    %c0_97 = arith.constant 0 : index
    %c0_98 = arith.constant 0 : index
    %c0_99 = arith.constant 0 : index
    %321 = vector.load %arg9[%c0_97, %c0_98, %c0_99] : memref<1x256x128xbf16, #tpu.memory_space<vmem>>, vector<1x256x128xbf16>
    %322 = vector.shape_cast %321 : vector<1x256x128xbf16> to vector<256x128xbf16>
    %cst_100 = arith.constant dense<0.000000e+00> : vector<16x128xf32>
    %323 = tpu.matmul %320, %322, %cst_100 {dimension_numbers = #tpu.dot_dimension_numbers<[1], [0], [0], [1], [0, 0, 1, 1], [], []>} : vector<16x256xbf16>, vector<256x128xbf16>, vector<16x128xf32> -> vector<16x128xf32>
    %324 = vector.shape_cast %25 : vector<128xf32> to vector<1x128xf32>
    %325 = vector.broadcast %324 : vector<1x128xf32> to vector<16x128xf32>
    %326 = arith.addf %323, %325 : vector<16x128xf32>
    %327 = arith.addf %310, %326 : vector<16x128xf32>
    %cst_101 = arith.constant dense<0.000000e+00> : vector<16xf32>
    %328 = vector.multi_reduction <add>, %327, %cst_101 [1] : vector<16x128xf32> to vector<16xf32>
    %329 = vector.shape_cast %328 : vector<16xf32> to vector<16x1xf32>
    %cst_102 = arith.constant 1.280000e+02 : f32
    %330 = vector.broadcast %cst_102 : f32 to vector<16x1xf32>
    %331 = arith.divf %329, %330 : vector<16x1xf32>
    %332 = vector.broadcast %331 : vector<16x1xf32> to vector<16x128xf32>
    %333 = arith.subf %327, %332 : vector<16x128xf32>
    %334 = arith.mulf %333, %333 : vector<16x128xf32>
    %cst_103 = arith.constant dense<0.000000e+00> : vector<16xf32>
    %335 = vector.multi_reduction <add>, %334, %cst_103 [1] : vector<16x128xf32> to vector<16xf32>
    %336 = vector.shape_cast %335 : vector<16xf32> to vector<16x1xf32>
    %cst_104 = arith.constant 1.280000e+02 : f32
    %337 = vector.broadcast %cst_104 : f32 to vector<16x1xf32>
    %338 = arith.divf %336, %337 : vector<16x1xf32>
    %cst_105 = arith.constant 9.99999974E-6 : f32
    %339 = vector.broadcast %cst_105 : f32 to vector<16x1xf32>
    %340 = arith.addf %338, %339 : vector<16x1xf32>
    %341 = math.rsqrt %340 : vector<16x1xf32>
    %342 = vector.broadcast %341 : vector<16x1xf32> to vector<16x128xf32>
    %343 = arith.mulf %333, %342 : vector<16x128xf32>
    %344 = vector.shape_cast %27 : vector<128xf32> to vector<1x128xf32>
    %345 = vector.broadcast %344 : vector<1x128xf32> to vector<16x128xf32>
    %346 = arith.mulf %343, %345 : vector<16x128xf32>
    %347 = vector.shape_cast %29 : vector<128xf32> to vector<1x128xf32>
    %348 = vector.broadcast %347 : vector<1x128xf32> to vector<16x128xf32>
    %349 = arith.addf %346, %348 : vector<16x128xf32>
    %c0_106 = arith.constant 0 : index
    %c0_107 = arith.constant 0 : index
    %350 = vector.load %arg16[%c0_106, %c0_107] : memref<16x128xf32, #tpu.memory_space<vmem>>, vector<16x128xf32>
    tpu.vector_store %arg16[%c0_106, %c0_107], %349 {strides = array<i32>} : memref<16x128xf32, #tpu.memory_space<vmem>>, vector<16x128xf32>,
    %c1_i32 = arith.constant 1 : i32
    %351 = arith.cmpi eq, %arg0, %c1_i32 : i32
    %352 = arith.extui %351 : i1 to i32
    %c0_i32_108 = arith.constant 0 : i32
    %353 = arith.cmpi ne, %352, %c0_i32_108 : i32
    scf.if %353 {
      %c0_109 = arith.constant 0 : index
      %c0_110 = arith.constant 0 : index
      %354 = vector.load %arg13[%c0_109, %c0_110] : memref<1x128xf32, #tpu.memory_space<vmem>>, vector<1x128xf32>
      %355 = vector.shape_cast %354 : vector<1x128xf32> to vector<128xf32>
      %c0_111 = arith.constant 0 : index
      %c0_112 = arith.constant 0 : index
      %356 = vector.load %arg14[%c0_111, %c0_112] : memref<1x128xf32, #tpu.memory_space<vmem>>, vector<1x128xf32>
      %357 = vector.shape_cast %356 : vector<1x128xf32> to vector<128xf32>
      %cst_113 = arith.constant dense<0.000000e+00> : vector<16xf32>
      %358 = vector.multi_reduction <add>, %349, %cst_113 [1] : vector<16x128xf32> to vector<16xf32>
      %359 = vector.shape_cast %358 : vector<16xf32> to vector<16x1xf32>
      %cst_114 = arith.constant 1.280000e+02 : f32
      %360 = vector.broadcast %cst_114 : f32 to vector<16x1xf32>
      %361 = arith.divf %359, %360 : vector<16x1xf32>
      %362 = vector.broadcast %361 : vector<16x1xf32> to vector<16x128xf32>
      %363 = arith.subf %349, %362 : vector<16x128xf32>
      %364 = arith.mulf %363, %363 : vector<16x128xf32>
      %cst_115 = arith.constant dense<0.000000e+00> : vector<16xf32>
      %365 = vector.multi_reduction <add>, %364, %cst_115 [1] : vector<16x128xf32> to vector<16xf32>
      %366 = vector.shape_cast %365 : vector<16xf32> to vector<16x1xf32>
      %cst_116 = arith.constant 1.280000e+02 : f32
      %367 = vector.broadcast %cst_116 : f32 to vector<16x1xf32>
      %368 = arith.divf %366, %367 : vector<16x1xf32>
      %cst_117 = arith.constant 9.99999974E-6 : f32
      %369 = vector.broadcast %cst_117 : f32 to vector<16x1xf32>
      %370 = arith.addf %368, %369 : vector<16x1xf32>
      %371 = math.rsqrt %370 : vector<16x1xf32>
      %372 = vector.broadcast %371 : vector<16x1xf32> to vector<16x128xf32>
      %373 = arith.mulf %363, %372 : vector<16x128xf32>
      %374 = vector.shape_cast %355 : vector<128xf32> to vector<1x128xf32>
      %375 = vector.broadcast %374 : vector<1x128xf32> to vector<16x128xf32>
      %376 = arith.mulf %373, %375 : vector<16x128xf32>
      %377 = vector.shape_cast %357 : vector<128xf32> to vector<1x128xf32>
      %378 = vector.broadcast %377 : vector<1x128xf32> to vector<16x128xf32>
      %379 = arith.addf %376, %378 : vector<16x128xf32>
      %380 = arith.truncf %379 : vector<16x128xf32> to vector<16x128xbf16>
      %c0_118 = arith.constant 0 : index
      %c0_119 = arith.constant 0 : index
      %381 = vector.load %arg11[%c0_118, %c0_119] : memref<128x256xbf16, #tpu.memory_space<vmem>>, vector<128x256xbf16>
      %cst_120 = arith.constant dense<0.000000e+00> : vector<16x256xf32>
      %382 = tpu.matmul %380, %381, %cst_120 {dimension_numbers = #tpu.dot_dimension_numbers<[1], [0], [0], [1], [0, 0, 1, 1], [], []>} : vector<16x128xbf16>, vector<128x256xbf16>, vector<16x256xf32> -> vector<16x256xf32>
      %c0_121 = arith.constant 0 : index
      %c0_122 = arith.constant 0 : index
      %383 = vector.load %arg12[%c0_121, %c0_122] : memref<1x256xf32, #tpu.memory_space<vmem>>, vector<1x256xf32>
      %384 = vector.shape_cast %383 : vector<1x256xf32> to vector<256xf32>
      %385 = vector.shape_cast %384 : vector<256xf32> to vector<1x256xf32>
      %386 = vector.broadcast %385 : vector<1x256xf32> to vector<16x256xf32>
      %387 = arith.addf %382, %386 : vector<16x256xf32>
      %c0_123 = arith.constant 0 : index
      %c0_124 = arith.constant 0 : index
      %388 = vector.load %arg15[%c0_123, %c0_124] : memref<16x256xf32, #tpu.memory_space<vmem>>, vector<16x256xf32>
      tpu.vector_store %arg15[%c0_123, %c0_124], %387 {strides = array<i32>} : memref<16x256xf32, #tpu.memory_space<vmem>>, vector<16x256xf32>,
    } else {
    }
    return
  }
  func.func @transform_0(%arg0: i32) -> (i32, i32) {
    %c0_i32 = arith.constant 0 : i32
    %c0_i32_0 = arith.constant 0 : i32
    %c0_i32_1 = arith.constant 0 : i32
    return %c0_i32, %c0_i32_0 : i32, i32
  }
  func.func @transform_1(%arg0: i32) -> (i32, i32) {
    %c0_i32 = arith.constant 0 : i32
    %c0_i32_0 = arith.constant 0 : i32
    %c0_i32_1 = arith.constant 0 : i32
    return %c0_i32, %c0_i32_0 : i32, i32
  }
  func.func @transform_2(%arg0: i32) -> (i32, i32) {
    %c0_i32 = arith.constant 0 : i32
    %c0_i32_0 = arith.constant 0 : i32
    %c0_i32_1 = arith.constant 0 : i32
    return %c0_i32, %c0_i32_0 : i32, i32
  }
  func.func @transform_3(%arg0: i32) -> (i32, i32, i32) {
    %c0_i32 = arith.constant 0 : i32
    %c0_i32_0 = arith.constant 0 : i32
    %c0_i32_1 = arith.constant 0 : i32
    return %arg0, %c0_i32, %c0_i32_0 : i32, i32, i32
  }
  func.func @transform_4(%arg0: i32) -> (i32, i32, i32) {
    %c0_i32 = arith.constant 0 : i32
    %c0_i32_0 = arith.constant 0 : i32
    %c0_i32_1 = arith.constant 0 : i32
    return %arg0, %c0_i32, %c0_i32_0 : i32, i32, i32
  }
  func.func @transform_5(%arg0: i32) -> (i32, i32, i32) {
    %c0_i32 = arith.constant 0 : i32
    %c0_i32_0 = arith.constant 0 : i32
    %c0_i32_1 = arith.constant 0 : i32
    return %arg0, %c0_i32, %c0_i32_0 : i32, i32, i32
  }
  func.func @transform_6(%arg0: i32) -> (i32, i32, i32) {
    %c0_i32 = arith.constant 0 : i32
    %c0_i32_0 = arith.constant 0 : i32
    %c0_i32_1 = arith.constant 0 : i32
    return %arg0, %c0_i32, %c0_i32_0 : i32, i32, i32
  }
  func.func @transform_7(%arg0: i32) -> (i32, i32, i32) {
    %c0_i32 = arith.constant 0 : i32
    %c0_i32_0 = arith.constant 0 : i32
    %c0_i32_1 = arith.constant 0 : i32
    return %arg0, %c0_i32, %c0_i32_0 : i32, i32, i32
  }
  func.func @transform_8(%arg0: i32) -> (i32, i32, i32) {
    %c0_i32 = arith.constant 0 : i32
    %c0_i32_0 = arith.constant 0 : i32
    %c0_i32_1 = arith.constant 0 : i32
    return %arg0, %c0_i32, %c0_i32_0 : i32, i32, i32
  }
  func.func @transform_9(%arg0: i32) -> (i32, i32, i32) {
    %c0_i32 = arith.constant 0 : i32
    %c0_i32_0 = arith.constant 0 : i32
    %c0_i32_1 = arith.constant 0 : i32
    return %arg0, %c0_i32, %c0_i32_0 : i32, i32, i32
  }
  func.func @transform_10(%arg0: i32) -> (i32, i32) {
    %c0_i32 = arith.constant 0 : i32
    %c0_i32_0 = arith.constant 0 : i32
    %c0_i32_1 = arith.constant 0 : i32
    return %c0_i32, %c0_i32_0 : i32, i32
  }
  func.func @transform_11(%arg0: i32) -> (i32, i32) {
    %c0_i32 = arith.constant 0 : i32
    %c0_i32_0 = arith.constant 0 : i32
    %c0_i32_1 = arith.constant 0 : i32
    return %c0_i32, %c0_i32_0 : i32, i32
  }
  func.func @transform_12(%arg0: i32) -> (i32, i32) {
    %c0_i32 = arith.constant 0 : i32
    %c0_i32_0 = arith.constant 0 : i32
    %c0_i32_1 = arith.constant 0 : i32
    return %c0_i32, %c0_i32_0 : i32, i32
  }
  func.func @transform_13(%arg0: i32) -> (i32, i32) {
    %c0_i32 = arith.constant 0 : i32
    %c0_i32_0 = arith.constant 0 : i32
    %c0_i32_1 = arith.constant 0 : i32
    return %c0_i32, %c0_i32_0 : i32, i32
  }
  func.func @transform_14(%arg0: i32) -> (i32, i32) {
    %c0_i32 = arith.constant 0 : i32
    %c0_i32_0 = arith.constant 0 : i32
    %c0_i32_1 = arith.constant 0 : i32
    return %c0_i32, %c0_i32_0 : i32, i32
  }
}

</mosaic_0001>

<llo_original>
// kernel: tpu_custom_call.1
$region0: #{tpu_custom_call.1}
  #allocation0 [shape = 'u32[]', space=smem, size = 0x4, offset = 0x4, fixed_abs, tag = 'smem constant byte address 0x4 - core index']
  #allocation1 [shape = 'u32[72,128]{1,0:T(1,128)}', space=vmem, size = 0x9000, scoped, tag = 'internal scratch']
  #allocation2 [shape = 'f32[16,128]{1,0:T(8,128)}', space=vmem, size = 0x2000, scoped, tag = 'scratch operand']
  #allocation3 [shape = 'f32[16,128]{1,0:T(8,128)}', space=vmem, size = 0x2000, scoped, tag = 'scratch operand']
  %s0 = inlined_call_operand.vmem [shape: f32[16,128], index: 0, kind: input, shape index: {}]
  %s1 = inlined_call_operand.vmem [shape: f32[2,128], index: 1, kind: input, shape index: {}]
  %s2 = inlined_call_operand.vmem [shape: f32[2,8], index: 2, kind: input, shape index: {}]
  %s3 = inlined_call_operand.hbm [shape: bf16[2,128,384], index: 3, kind: input, shape index: {}]
  %s4 = inlined_call_operand.vmem [shape: bf16[2,128,128], index: 4, kind: input, shape index: {}]
  %s5 = inlined_call_operand.hbm [shape: bf16[2,128,128], index: 5, kind: input, shape index: {}]
  %s6 = inlined_call_operand.hbm [shape: bf16[2,128,128], index: 6, kind: input, shape index: {}]
  %s7 = inlined_call_operand.hbm [shape: bf16[2,128,256], index: 7, kind: input, shape index: {}]
  %s8 = inlined_call_operand.hbm [shape: bf16[2,256,128], index: 8, kind: input, shape index: {}]
  %s9 = inlined_call_operand.vmem [shape: f32[2,12,384], index: 9, kind: input, shape index: {}]
  %s10 = inlined_call_operand.hbm [shape: bf16[128,256], index: 10, kind: input, shape index: {}]
  %s11 = inlined_call_operand.vmem [shape: f32[1,256], index: 11, kind: input, shape index: {}]
  %s12 = inlined_call_operand.vmem [shape: f32[1,128], index: 12, kind: input, shape index: {}]
  %s13 = inlined_call_operand.vmem [shape: f32[1,128], index: 13, kind: input, shape index: {}]
  %s14 = inlined_call_operand.hbm [shape: f32[16,256], index: 14, kind: output, shape index: {}]
  %s15 = sld [smem:[#allocation0]]
  $region121: #{tpu_custom_call.1} parent=0
    _
  %s17 = ssub.s32 1, %s15
  %s18 = scalar_select 0, %s17, %s15
  $region1: #{tpu_custom_call.1} parent=0
    #allocation4 [shape = 'u8[196608]{0}', space=vmem, size = 0x30000, scoped, tag = 'input window, operand 3']
    #allocation5 [shape = 's32[2]{0}', space=sflag, size = 0x8, scoped, tag = 'scoped memory for tpu_custom_call.1']
    #allocation6 [shape = 's32[2]{0}', space=sflag, size = 0x8, scoped, tag = 'scoped memory for tpu_custom_call.1']
    #allocation7 [shape = 'u8[65536]{0}', space=vmem, size = 0x10000, scoped, tag = 'input window, operand 5']
    #allocation8 [shape = 's32[2]{0}', space=sflag, size = 0x8, scoped, tag = 'scoped memory for tpu_custom_call.1']
    #allocation9 [shape = 'u8[65536]{0}', space=vmem, size = 0x10000, scoped, tag = 'input window, operand 6']
    #allocation10 [shape = 'u8[131072]{0}', space=vmem, size = 0x20000, scoped, tag = 'input window, operand 7']
    #allocation11 [shape = 's32[2]{0}', space=sflag, size = 0x8, scoped, tag = 'scoped memory for tpu_custom_call.1']
    #allocation12 [shape = 'u8[131072]{0}', space=vmem, size = 0x20000, scoped, tag = 'input window, operand 8']
    #allocation13 [shape = 'u8[65536]{0}', space=vmem, size = 0x10000, scoped, tag = 'input window, operand 10, single buffered']
    #allocation14 [shape = 's32[1]{0}', space=sflag, size = 0x4, scoped, tag = 'scoped memory for tpu_custom_call.1']
    #allocation15 [shape = 'u8[16384]{0}', space=vmem, size = 0x4000, scoped, tag = 'output window, operand 0, single buffered']
    %19 = vsyncpa [#allocation5], 0
    %s20 = scalar_lea.sflag [#allocation5], 1
    %21 = vsyncpa %s20, 0
    %22 = vsyncpa [#allocation8], 0
    %s23 = scalar_lea.sflag [#allocation8], 1
    %24 = vsyncpa %s23, 0
    %25 = vsyncpa [#allocation11], 0
    %s26 = scalar_lea.sflag [#allocation11], 1
    %27 = vsyncpa %s26, 0
    %28 = vsyncpa [#allocation14], 0
    %29 = vsyncpa [#allocation6], 0
    loop: start=0, step=1, limit=4
    $region2: #{tpu_custom_call.1} parent=1 // loop_pre_header
      _
    $region3: #{tpu_custom_call.1} parent=1 // loop_header
      %s31 = sphi 0, %s35
      %p32 = scmp.ge.s32.totalorder %s31, 4
      %s39 = sphi 0, %s39
      %s41 = sphi 0, %s39
      %s42 = sphi 0, %s41
      %s56 = sphi 0, %s42
      %s60 = sphi 0, %s60
      %s62 = sphi 0, %s60
      %s63 = sphi 0, %s62
      %s77 = sphi 0, %s63
      %s81 = sphi 0, %s81
      %s83 = sphi 0, %s81
      %s84 = sphi 0, %s83
      %s98 = sphi 0, %s84
      %s104 = sphi 0, %s106
      %s107 = sphi 0, %s104
      %s108 = sphi 0, %s107
      %s124 = sphi 0, %s108
      %s130 = sphi 0, %s132
      %s133 = sphi 0, %s130
      %s134 = sphi 0, %s133
      %s150 = sphi 0, %s134
      %s156 = sphi 0, %s158
      %s159 = sphi 0, %s156
      %s160 = sphi 0, %s159
      %s176 = sphi 0, %s160
      %s182 = sphi 0, %s184
      %s185 = sphi 0, %s182
      %s186 = sphi 0, %s185
      %s202 = sphi 0, %s186
      %s208 = sphi 0, %s210
      %s211 = sphi 0, %s208
      %s212 = sphi 0, %s211
      %s228 = sphi 0, %s212
      %s234 = sphi 0, %s236
      %s237 = sphi 0, %s234
      %s238 = sphi 0, %s237
      %s254 = sphi 0, %s238
      %s260 = sphi 0, %s262
      %s263 = sphi 0, %s260
      %s264 = sphi 0, %s263
      %s280 = sphi 0, %s264
      %s284 = sphi 0, %s284
      %s286 = sphi 0, %s284
      %s287 = sphi 0, %s286
      %s301 = sphi 0, %s287
      %s305 = sphi 0, %s305
      %s307 = sphi 0, %s305
      %s308 = sphi 0, %s307
      %s322 = sphi 0, %s308
      %s326 = sphi 0, %s326
      %s328 = sphi 0, %s326
      %s329 = sphi 0, %s328
      %s343 = sphi 0, %s329
      %s347 = sphi 0, %s347
      %s349 = sphi 0, %s347
      %s350 = sphi 0, %s349
      %s364 = sphi 0, %s350
      %s368 = sphi 0, %s368
      %s370 = sphi 0, %s368
      %s371 = sphi 0, %s370
      %s385 = sphi 0, %s371
    $region4: #{tpu_custom_call.1} parent=1 // loop_header_branch
      %34 = sbr.rel (%p32) target = $region8
    $region5: #{tpu_custom_call.1} parent=1 // loop_body
      %s36 = ssub.s32 %s31, 1
      %s37 = ssub.s32 %s31, 2
      %s38 = sadd.s32 %s31, 1
      %s40 = sadd.s32 %s39, 1
      %p43 = scmp.eq.s32.totalorder %s31, 1
      %p44 = scmp.ne.s32.totalorder %s39, %s41
      %p45 = scmp.eq.s32.totalorder %s31, 0
      %p46 = por %p44, %p45
      %p47 = scmp.ne.s32.totalorder %s39, %s41
      %p48 = scmp.eq.s32.totalorder %s36, 1
      %p49 = por %p47, %p48
      %p50 = scmp.ne.s32.totalorder %s41, %s42
      %p51 = scmp.eq.s32.totalorder %s36, 0
      %p52 = por %p50, %p51
      %p53 = scmp.ne.s32.totalorder %s41, %s42
      %p54 = scmp.eq.s32.totalorder %s37, 1
      %p55 = por %p53, %p54
      %p57 = scmp.ne.s32.totalorder %s42, %s56
      %p58 = scmp.eq.s32.totalorder %s37, 0
      %p59 = por %p57, %p58
      %s61 = sadd.s32 %s60, 1
      %p64 = scmp.eq.s32.totalorder %s31, 1
      %p65 = scmp.ne.s32.totalorder %s60, %s62
      %p66 = scmp.eq.s32.totalorder %s31, 0
      %p67 = por %p65, %p66
      %p68 = scmp.ne.s32.totalorder %s60, %s62
      %p69 = scmp.eq.s32.totalorder %s36, 1
      %p70 = por %p68, %p69
      %p71 = scmp.ne.s32.totalorder %s62, %s63
      %p72 = scmp.eq.s32.totalorder %s36, 0
      %p73 = por %p71, %p72
      %p74 = scmp.ne.s32.totalorder %s62, %s63
      %p75 = scmp.eq.s32.totalorder %s37, 1
      %p76 = por %p74, %p75
      %p78 = scmp.ne.s32.totalorder %s63, %s77
      %p79 = scmp.eq.s32.totalorder %s37, 0
      %p80 = por %p78, %p79
      %s82 = sadd.s32 %s81, 1
      %p85 = scmp.eq.s32.totalorder %s31, 1
      %p86 = scmp.ne.s32.totalorder %s81, %s83
      %p87 = scmp.eq.s32.totalorder %s31, 0
      %p88 = por %p86, %p87
      %p89 = scmp.ne.s32.totalorder %s81, %s83
      %p90 = scmp.eq.s32.totalorder %s36, 1
      %p91 = por %p89, %p90
      %p92 = scmp.ne.s32.totalorder %s83, %s84
      %p93 = scmp.eq.s32.totalorder %s36, 0
      %p94 = por %p92, %p93
      %p95 = scmp.ne.s32.totalorder %s83, %s84
      %p96 = scmp.eq.s32.totalorder %s37, 1
      %p97 = por %p95, %p96
      %p99 = scmp.ne.s32.totalorder %s84, %s98
      %p100 = scmp.eq.s32.totalorder %s37, 0
      %p101 = por %p99, %p100
      %s102 = ssub.s32 %s31, %s38
      %p103 = scmp.eq.s32.totalorder %s102, 0
      %s105 = sadd.s32 %s104, 1
      %s106 = scalar_select %p103, %s104, %s105
      %p109 = pneg %p103
      %p110 = scmp.eq.s32.totalorder %s31, 1
      %p111 = por %p109, %p110
      %p112 = scmp.ne.s32.totalorder %s104, %s107
      %p113 = scmp.eq.s32.totalorder %s31, 0
      %p114 = por %p112, %p113
      %p115 = scmp.ne.s32.totalorder %s104, %s107
      %p116 = scmp.eq.s32.totalorder %s36, 1
      %p117 = por %p115, %p116
      %p118 = scmp.ne.s32.totalorder %s107, %s108
      %p119 = scmp.eq.s32.totalorder %s36, 0
      %p120 = por %p118, %p119
      %p121 = scmp.ne.s32.totalorder %s107, %s108
      %p122 = scmp.eq.s32.totalorder %s37, 1
      %p123 = por %p121, %p122
      %p125 = scmp.ne.s32.totalorder %s108, %s124
      %p126 = scmp.eq.s32.totalorder %s37, 0
      %p127 = por %p125, %p126
      %s128 = ssub.s32 %s31, %s38
      %p129 = scmp.eq.s32.totalorder %s128, 0
      %s131 = sadd.s32 %s130, 1
      %s132 = scalar_select %p129, %s130, %s131
      %p135 = pneg %p129
      %p136 = scmp.eq.s32.totalorder %s31, 1
      %p137 = por %p135, %p136
      %p138 = scmp.ne.s32.totalorder %s130, %s133
      %p139 = scmp.eq.s32.totalorder %s31, 0
      %p140 = por %p138, %p139
      %p141 = scmp.ne.s32.totalorder %s130, %s133
      %p142 = scmp.eq.s32.totalorder %s36, 1
      %p143 = por %p141, %p142
      %p144 = scmp.ne.s32.totalorder %s133, %s134
      %p145 = scmp.eq.s32.totalorder %s36, 0
      %p146 = por %p144, %p145
      %p147 = scmp.ne.s32.totalorder %s133, %s134
      %p148 = scmp.eq.s32.totalorder %s37, 1
      %p149 = por %p147, %p148
      %p151 = scmp.ne.s32.totalorder %s134, %s150
      %p152 = scmp.eq.s32.totalorder %s37, 0
      %p153 = por %p151, %p152
      %s154 = ssub.s32 %s31, %s38
      %p155 = scmp.eq.s32.totalorder %s154, 0
      %s157 = sadd.s32 %s156, 1
      %s158 = scalar_select %p155, %s156, %s157
      %p161 = pneg %p155
      %p162 = scmp.eq.s32.totalorder %s31, 1
      %p163 = por %p161, %p162
      %p164 = scmp.ne.s32.totalorder %s156, %s159
      %p165 = scmp.eq.s32.totalorder %s31, 0
      %p166 = por %p164, %p165
      %p167 = scmp.ne.s32.totalorder %s156, %s159
      %p168 = scmp.eq.s32.totalorder %s36, 1
      %p169 = por %p167, %p168
      %p170 = scmp.ne.s32.totalorder %s159, %s160
      %p171 = scmp.eq.s32.totalorder %s36, 0
      %p172 = por %p170, %p171
      %p173 = scmp.ne.s32.totalorder %s159, %s160
      %p174 = scmp.eq.s32.totalorder %s37, 1
      %p175 = por %p173, %p174
      %p177 = scmp.ne.s32.totalorder %s160, %s176
      %p178 = scmp.eq.s32.totalorder %s37, 0
      %p179 = por %p177, %p178
      %s180 = ssub.s32 %s31, %s38
      %p181 = scmp.eq.s32.totalorder %s180, 0
      %s183 = sadd.s32 %s182, 1
      %s184 = scalar_select %p181, %s182, %s183
      %p187 = pneg %p181
      %p188 = scmp.eq.s32.totalorder %s31, 1
      %p189 = por %p187, %p188
      %p190 = scmp.ne.s32.totalorder %s182, %s185
      %p191 = scmp.eq.s32.totalorder %s31, 0
      %p192 = por %p190, %p191
      %p193 = scmp.ne.s32.totalorder %s182, %s185
      %p194 = scmp.eq.s32.totalorder %s36, 1
      %p195 = por %p193, %p194
      %p196 = scmp.ne.s32.totalorder %s185, %s186
      %p197 = scmp.eq.s32.totalorder %s36, 0
      %p198 = por %p196, %p197
      %p199 = scmp.ne.s32.totalorder %s185, %s186
      %p200 = scmp.eq.s32.totalorder %s37, 1
      %p201 = por %p199, %p200
      %p203 = scmp.ne.s32.totalorder %s186, %s202
      %p204 = scmp.eq.s32.totalorder %s37, 0
      %p205 = por %p203, %p204
      %s206 = ssub.s32 %s31, %s38
      %p207 = scmp.eq.s32.totalorder %s206, 0
      %s209 = sadd.s32 %s208, 1
      %s210 = scalar_select %p207, %s208, %s209
      %p213 = pneg %p207
      %p214 = scmp.eq.s32.totalorder %s31, 1
      %p215 = por %p213, %p214
      %p216 = scmp.ne.s32.totalorder %s208, %s211
      %p217 = scmp.eq.s32.totalorder %s31, 0
      %p218 = por %p216, %p217
      %p219 = scmp.ne.s32.totalorder %s208, %s211
      %p220 = scmp.eq.s32.totalorder %s36, 1
      %p221 = por %p219, %p220
      %p222 = scmp.ne.s32.totalorder %s211, %s212
      %p223 = scmp.eq.s32.totalorder %s36, 0
      %p224 = por %p222, %p223
      %p225 = scmp.ne.s32.totalorder %s211, %s212
      %p226 = scmp.eq.s32.totalorder %s37, 1
      %p227 = por %p225, %p226
      %p229 = scmp.ne.s32.totalorder %s212, %s228
      %p230 = scmp.eq.s32.totalorder %s37, 0
      %p231 = por %p229, %p230
      %s232 = ssub.s32 %s31, %s38
      %p233 = scmp.eq.s32.totalorder %s232, 0
      %s235 = sadd.s32 %s234, 1
      %s236 = scalar_select %p233, %s234, %s235
      %p239 = pneg %p233
      %p240 = scmp.eq.s32.totalorder %s31, 1
      %p241 = por %p239, %p240
      %p242 = scmp.ne.s32.totalorder %s234, %s237
      %p243 = scmp.eq.s32.totalorder %s31, 0
      %p244 = por %p242, %p243
      %p245 = scmp.ne.s32.totalorder %s234, %s237
      %p246 = scmp.eq.s32.totalorder %s36, 1
      %p247 = por %p245, %p246
      %p248 = scmp.ne.s32.totalorder %s237, %s238
      %p249 = scmp.eq.s32.totalorder %s36, 0
      %p250 = por %p248, %p249
      %p251 = scmp.ne.s32.totalorder %s237, %s238
      %p252 = scmp.eq.s32.totalorder %s37, 1
      %p253 = por %p251, %p252
      %p255 = scmp.ne.s32.totalorder %s238, %s254
      %p256 = scmp.eq.s32.totalorder %s37, 0
      %p257 = por %p255, %p256
      %s258 = ssub.s32 %s31, %s38
      %p259 = scmp.eq.s32.totalorder %s258, 0
      %s261 = sadd.s32 %s260, 1
      %s262 = scalar_select %p259, %s260, %s261
      %p265 = pneg %p259
      %p266 = scmp.eq.s32.totalorder %s31, 1
      %p267 = por %p265, %p266
      %p268 = scmp.ne.s32.totalorder %s260, %s263
      %p269 = scmp.eq.s32.totalorder %s31, 0
      %p270 = por %p268, %p269
      %p271 = scmp.ne.s32.totalorder %s260, %s263
      %p272 = scmp.eq.s32.totalorder %s36, 1
      %p273 = por %p271, %p272
      %p274 = scmp.ne.s32.totalorder %s263, %s264
      %p275 = scmp.eq.s32.totalorder %s36, 0
      %p276 = por %p274, %p275
      %p277 = scmp.ne.s32.totalorder %s263, %s264
      %p278 = scmp.eq.s32.totalorder %s37, 1
      %p279 = por %p277, %p278
      %p281 = scmp.ne.s32.totalorder %s264, %s280
      %p282 = scmp.eq.s32.totalorder %s37, 0
      %p283 = por %p281, %p282
      %s285 = sadd.s32 %s284, 1
      %p288 = scmp.eq.s32.totalorder %s31, 1
      %p289 = scmp.ne.s32.totalorder %s284, %s286
      %p290 = scmp.eq.s32.totalorder %s31, 0
      %p291 = por %p289, %p290
      %p292 = scmp.ne.s32.totalorder %s284, %s286
      %p293 = scmp.eq.s32.totalorder %s36, 1
      %p294 = por %p292, %p293
      %p295 = scmp.ne.s32.totalorder %s286, %s287
      %p296 = scmp.eq.s32.totalorder %s36, 0
      %p297 = por %p295, %p296
      %p298 = scmp.ne.s32.totalorder %s286, %s287
      %p299 = scmp.eq.s32.totalorder %s37, 1
      %p300 = por %p298, %p299
      %p302 = scmp.ne.s32.totalorder %s287, %s301
      %p303 = scmp.eq.s32.totalorder %s37, 0
      %p304 = por %p302, %p303
      %s306 = sadd.s32 %s305, 1
      %p309 = scmp.eq.s32.totalorder %s31, 1
      %p310 = scmp.ne.s32.totalorder %s305, %s307
      %p311 = scmp.eq.s32.totalorder %s31, 0
      %p312 = por %p310, %p311
      %p313 = scmp.ne.s32.totalorder %s305, %s307
      %p314 = scmp.eq.s32.totalorder %s36, 1
      %p315 = por %p313, %p314
      %p316 = scmp.ne.s32.totalorder %s307, %s308
      %p317 = scmp.eq.s32.totalorder %s36, 0
      %p318 = por %p316, %p317
      %p319 = scmp.ne.s32.totalorder %s307, %s308
      %p320 = scmp.eq.s32.totalorder %s37, 1
      %p321 = por %p319, %p320
      %p323 = scmp.ne.s32.totalorder %s308, %s322
      %p324 = scmp.eq.s32.totalorder %s37, 0
      %p325 = por %p323, %p324
      %s327 = sadd.s32 %s326, 1
      %p330 = scmp.eq.s32.totalorder %s31, 1
      %p331 = scmp.ne.s32.totalorder %s326, %s328
      %p332 = scmp.eq.s32.totalorder %s31, 0
      %p333 = por %p331, %p332
      %p334 = scmp.ne.s32.totalorder %s326, %s328
      %p335 = scmp.eq.s32.totalorder %s36, 1
      %p336 = por %p334, %p335
      %p337 = scmp.ne.s32.totalorder %s328, %s329
      %p338 = scmp.eq.s32.totalorder %s36, 0
      %p339 = por %p337, %p338
      %p340 = scmp.ne.s32.totalorder %s328, %s329
      %p341 = scmp.eq.s32.totalorder %s37, 1
      %p342 = por %p340, %p341
      %p344 = scmp.ne.s32.totalorder %s329, %s343
      %p345 = scmp.eq.s32.totalorder %s37, 0
      %p346 = por %p344, %p345
      %s348 = sadd.s32 %s347, 1
      %p351 = scmp.eq.s32.totalorder %s31, 1
      %p352 = scmp.ne.s32.totalorder %s347, %s349
      %p353 = scmp.eq.s32.totalorder %s31, 0
      %p354 = por %p352, %p353
      %p355 = scmp.ne.s32.totalorder %s347, %s349
      %p356 = scmp.eq.s32.totalorder %s36, 1
      %p357 = por %p355, %p356
      %p358 = scmp.ne.s32.totalorder %s349, %s350
      %p359 = scmp.eq.s32.totalorder %s36, 0
      %p360 = por %p358, %p359
      %p361 = scmp.ne.s32.totalorder %s349, %s350
      %p362 = scmp.eq.s32.totalorder %s37, 1
      %p363 = por %p361, %p362
      %p365 = scmp.ne.s32.totalorder %s350, %s364
      %p366 = scmp.eq.s32.totalorder %s37, 0
      %p367 = por %p365, %p366
      %s369 = sadd.s32 %s368, 1
      %p372 = scmp.eq.s32.totalorder %s31, 1
      %p373 = scmp.ne.s32.totalorder %s368, %s370
      %p374 = scmp.eq.s32.totalorder %s31, 0
      %p375 = por %p373, %p374
      %p376 = scmp.ne.s32.totalorder %s368, %s370
      %p377 = scmp.eq.s32.totalorder %s36, 1
      %p378 = por %p376, %p377
      %p379 = scmp.ne.s32.totalorder %s370, %s371
      %p380 = scmp.eq.s32.totalorder %s36, 0
      %p381 = por %p379, %p380
      %p382 = scmp.ne.s32.totalorder %s370, %s371
      %p383 = scmp.eq.s32.totalorder %s37, 1
      %p384 = por %p382, %p383
      %p386 = scmp.ne.s32.totalorder %s371, %s385
      %p387 = scmp.eq.s32.totalorder %s37, 0
      %p388 = por %p386, %p387
      %p389 = scmp.le.s32.totalorder 1, %s31
      %p390 = scmp.lt.s32.totalorder %s31, 3
      %p391 = pnand %p389, %p390
      %p392 = pneg %p391
      // Predicated region
      $region9: #{tpu_custom_call.1} parent=5 // pred_check
        _
      $region10: #{tpu_custom_call.1} parent=5 // pred_check_branch
        %394 = sbr.rel (%p391) target = $region12
      $region11: #{tpu_custom_call.1} parent=5 // pred_region
        %s395 = ssub.s32 %s31, 1
        // Predicated region
        $region13: #{tpu_custom_call.1} parent=11 // pred_check
          %p396 = pneg %p52
        $region14: #{tpu_custom_call.1} parent=11 // pred_check_branch
          %398 = sbr.rel (%p396) target = $region16
        $region15: #{tpu_custom_call.1} parent=11 // pred_region
          _
        $region16: #{tpu_custom_call.1} parent=11 // pred_fallthru
          _
        // Predicated region
        $region17: #{tpu_custom_call.1} parent=11 // pred_check
          %p399 = pneg %p73
        $region18: #{tpu_custom_call.1} parent=11 // pred_check_branch
          %401 = sbr.rel (%p399) target = $region20
        $region19: #{tpu_custom_call.1} parent=11 // pred_region
          _
        $region20: #{tpu_custom_call.1} parent=11 // pred_fallthru
          _
        // Predicated region
        $region21: #{tpu_custom_call.1} parent=11 // pred_check
          %p402 = pneg %p94
        $region22: #{tpu_custom_call.1} parent=11 // pred_check_branch
          %404 = sbr.rel (%p402) target = $region24
        $region23: #{tpu_custom_call.1} parent=11 // pred_region
          _
        $region24: #{tpu_custom_call.1} parent=11 // pred_fallthru
          _
        // Predicated region
        $region25: #{tpu_custom_call.1} parent=11 // pred_check
          %p405 = pneg %p297
        $region26: #{tpu_custom_call.1} parent=11 // pred_check_branch
          %407 = sbr.rel (%p405) target = $region28
        $region27: #{tpu_custom_call.1} parent=11 // pred_region
          %409 = vsyncadd [#allocation14], 0
          %s410 = sshll.u32 %s10, 4
          %s411 = int_to_ptr.hbm [resolvable:$true] %s410
          %s412 = sshll.u32 [#allocation13], 4
          %s413 = int_to_ptr.vmem [resolvable:$true] %s412
          %418 = dma.hbm_to_vmem [thread:$0]  %s411, 2048, %s413, [#allocation14], 128, 128, 8
        $region28: #{tpu_custom_call.1} parent=11 // pred_fallthru
          _
        // Predicated region
        $region29: #{tpu_custom_call.1} parent=11 // pred_check
          %p419 = pneg %p318
        $region30: #{tpu_custom_call.1} parent=11 // pred_check_branch
          %421 = sbr.rel (%p419) target = $region32
        $region31: #{tpu_custom_call.1} parent=11 // pred_region
          _
        $region32: #{tpu_custom_call.1} parent=11 // pred_fallthru
          _
        // Predicated region
        $region33: #{tpu_custom_call.1} parent=11 // pred_check
          %p422 = pneg %p339
        $region34: #{tpu_custom_call.1} parent=11 // pred_check_branch
          %424 = sbr.rel (%p422) target = $region36
        $region35: #{tpu_custom_call.1} parent=11 // pred_region
          _
        $region36: #{tpu_custom_call.1} parent=11 // pred_fallthru
          _
        // Predicated region
        $region37: #{tpu_custom_call.1} parent=11 // pred_check
          %p425 = pneg %p360
        $region38: #{tpu_custom_call.1} parent=11 // pred_check_branch
          %427 = sbr.rel (%p425) target = $region40
        $region39: #{tpu_custom_call.1} parent=11 // pred_region
          _
        $region40: #{tpu_custom_call.1} parent=11 // pred_fallthru
          _
      $region12: #{tpu_custom_call.1} parent=5 // pred_fallthru
        _
      %p428 = scmp.lt.s32.totalorder %s31, 2
      // Predicated region
      $region41: #{tpu_custom_call.1} parent=5 // pred_check
        %p429 = pneg %p428
      $region42: #{tpu_custom_call.1} parent=5 // pred_check_branch
        %431 = sbr.rel (%p429) target = $region44
      $region43: #{tpu_custom_call.1} parent=5 // pred_region
        // Predicated region
        $region45: #{tpu_custom_call.1} parent=43 // pred_check
          %p432 = pneg %p114
        $region46: #{tpu_custom_call.1} parent=43 // pred_check_branch
          %434 = sbr.rel (%p432) target = $region48
        $region47: #{tpu_custom_call.1} parent=43 // pred_region
          %s435 = sand.u32 %s104, 1
          %s436 = scalar_lea.sflag [#allocation5], %s435
          %s437 = sand.u32 %s104, 1
          %s438 = smul.addr %s437, 192
          %s439 = scalar_lea.vmem [#allocation4], %s438
          %441 = vsyncadd %s436, 0
          %s442 = smul.addr %s31, 48
          %s443 = smul.addr %s442, 4
          %s444 = scalar_lea.hbm %s3, %s443
          %s445 = sshll.u32 %s444, 4
          %s446 = int_to_ptr.hbm [resolvable:$true] %s445
          %s447 = sshll.u32 %s439, 4
          %s448 = int_to_ptr.vmem [resolvable:$true] %s447
          %453 = dma.hbm_to_vmem [thread:$0]  %s446, 3072, %s448, %s436, 192, 192, 12
        $region48: #{tpu_custom_call.1} parent=43 // pred_fallthru
          _
        // Predicated region
        $region49: #{tpu_custom_call.1} parent=43 // pred_check
          %p454 = pneg %p140
        $region50: #{tpu_custom_call.1} parent=43 // pred_check_branch
          %456 = sbr.rel (%p454) target = $region52
        $region51: #{tpu_custom_call.1} parent=43 // pred_region
          %p457 = scmp.lt.s32.totalorder %s31, 1
          %s458 = scalar_select %p457, %s31, 1
          %s459 = smul.addr %s458, 16
          %s460 = smul.addr %s459, 4
          %s461 = scalar_lea.vmem %s4, %s460
        $region52: #{tpu_custom_call.1} parent=43 // pred_fallthru
          _
        // Predicated region
        $region53: #{tpu_custom_call.1} parent=43 // pred_check
          %p462 = pneg %p166
        $region54: #{tpu_custom_call.1} parent=43 // pred_check_branch
          %464 = sbr.rel (%p462) target = $region56
        $region55: #{tpu_custom_call.1} parent=43 // pred_region
          %s465 = sand.u32 %s31, 1
          %s466 = scalar_lea.sflag [#allocation8], %s465
          %s467 = sand.u32 %s156, 1
          %s468 = smul.addr %s467, 64
          %s469 = scalar_lea.vmem [#allocation7], %s468
          %471 = vsyncadd %s466, 0
          %s472 = smul.addr %s31, 16
          %s473 = smul.addr %s472, 4
          %s474 = scalar_lea.hbm %s5, %s473
          %s475 = sshll.u32 %s474, 4
          %s476 = int_to_ptr.hbm [resolvable:$true] %s475
          %s477 = sshll.u32 %s469, 4
          %s478 = int_to_ptr.vmem [resolvable:$true] %s477
          %483 = dma.hbm_to_vmem [thread:$0]  %s476, 1024, %s478, %s466, 64, 64, 4
        $region56: #{tpu_custom_call.1} parent=43 // pred_fallthru
          _
        // Predicated region
        $region57: #{tpu_custom_call.1} parent=43 // pred_check
          %p484 = pneg %p192
        $region58: #{tpu_custom_call.1} parent=43 // pred_check_branch
          %486 = sbr.rel (%p484) target = $region60
        $region59: #{tpu_custom_call.1} parent=43 // pred_region
          %s487 = sand.u32 %s31, 1
          %s488 = scalar_lea.sflag [#allocation8], %s487
          %s489 = sand.u32 %s182, 1
          %s490 = smul.addr %s489, 64
          %s491 = scalar_lea.vmem [#allocation9], %s490
          %493 = vsyncadd %s488, 0
          %s494 = smul.addr %s31, 16
          %s495 = smul.addr %s494, 4
          %s496 = scalar_lea.hbm %s6, %s495
          %s497 = sshll.u32 %s496, 4
          %s498 = int_to_ptr.hbm [resolvable:$true] %s497
          %s499 = sshll.u32 %s491, 4
          %s500 = int_to_ptr.vmem [resolvable:$true] %s499
          %505 = dma.hbm_to_vmem [thread:$0]  %s498, 1024, %s500, %s488, 64, 64, 4
        $region60: #{tpu_custom_call.1} parent=43 // pred_fallthru
          _
        // Predicated region
        $region61: #{tpu_custom_call.1} parent=43 // pred_check
          %p506 = pneg %p218
        $region62: #{tpu_custom_call.1} parent=43 // pred_check_branch
          %508 = sbr.rel (%p506) target = $region64
        $region63: #{tpu_custom_call.1} parent=43 // pred_region
          %s509 = sand.u32 %s31, 1
          %s510 = scalar_lea.sflag [#allocation11], %s509
          %s511 = sand.u32 %s208, 1
          %s512 = smul.addr %s511, 128
          %s513 = scalar_lea.vmem [#allocation10], %s512
          %515 = vsyncadd %s510, 0
          %s516 = smul.addr %s31, 32
          %s517 = smul.addr %s516, 4
          %s518 = scalar_lea.hbm %s7, %s517
          %s519 = sshll.u32 %s518, 4
          %s520 = int_to_ptr.hbm [resolvable:$true] %s519
          %s521 = sshll.u32 %s513, 4
          %s522 = int_to_ptr.vmem [resolvable:$true] %s521
          %527 = dma.hbm_to_vmem [thread:$0]  %s520, 2048, %s522, %s510, 128, 128, 8
        $region64: #{tpu_custom_call.1} parent=43 // pred_fallthru
          _
        // Predicated region
        $region65: #{tpu_custom_call.1} parent=43 // pred_check
          %p528 = pneg %p244
        $region66: #{tpu_custom_call.1} parent=43 // pred_check_branch
          %530 = sbr.rel (%p528) target = $region68
        $region67: #{tpu_custom_call.1} parent=43 // pred_region
          %s531 = sand.u32 %s31, 1
          %s532 = scalar_lea.sflag [#allocation11], %s531
          %s533 = sand.u32 %s234, 1
          %s534 = smul.addr %s533, 128
          %s535 = scalar_lea.vmem [#allocation12], %s534
          %537 = vsyncadd %s532, 0
          %s538 = smul.addr %s31, 32
          %s539 = smul.addr %s538, 4
          %s540 = scalar_lea.hbm %s8, %s539
          %s541 = sshll.u32 %s540, 4
          %s542 = int_to_ptr.hbm [resolvable:$true] %s541
          %s543 = sshll.u32 %s535, 4
          %s544 = int_to_ptr.vmem [resolvable:$true] %s543
          %549 = dma.hbm_to_vmem [thread:$0]  %s542, 2048, %s544, %s532, 64, 64, 4
        $region68: #{tpu_custom_call.1} parent=43 // pred_fallthru
          _
        // Predicated region
        $region69: #{tpu_custom_call.1} parent=43 // pred_check
          %p550 = pneg %p270
        $region70: #{tpu_custom_call.1} parent=43 // pred_check_branch
          %552 = sbr.rel (%p550) target = $region72
        $region71: #{tpu_custom_call.1} parent=43 // pred_region
          %p553 = scmp.lt.s32.totalorder %s31, 1
          %s554 = scalar_select %p553, %s31, 1
          %s555 = smul.addr %s554, 6
          %s556 = smul.addr %s555, 8
          %s557 = scalar_lea.vmem %s9, %s556
        $region72: #{tpu_custom_call.1} parent=43 // pred_fallthru
          _
      $region44: #{tpu_custom_call.1} parent=5 // pred_fallthru
        _
      %p558 = scmp.le.s32.totalorder 1, %s31
      %p559 = scmp.lt.s32.totalorder %s31, 3
      %p560 = pnand %p558, %p559
      %p561 = pneg %p560
      // Predicated region
      $region73: #{tpu_custom_call.1} parent=5 // pred_check
        _
      $region74: #{tpu_custom_call.1} parent=5 // pred_check_branch
        %563 = sbr.rel (%p560) target = $region76
      $region75: #{tpu_custom_call.1} parent=5 // pred_region
        %s564 = ssub.s32 %s31, 1
        %s565 = sand.u32 %s107, 1
        %s566 = scalar_lea.sflag [#allocation5], %s565
        %s567 = sand.u32 %s107, 1
        %s568 = smul.addr %s567, 192
        %s569 = scalar_lea.vmem [#allocation4], %s568
        // Predicated region
        $region77: #{tpu_custom_call.1} parent=75 // pred_check
          %p570 = pneg %p120
        $region78: #{tpu_custom_call.1} parent=75 // pred_check_branch
          %572 = sbr.rel (%p570) target = $region80
        $region79: #{tpu_custom_call.1} parent=75 // pred_region
          %574 = dma.done %s566, 3072
        $region80: #{tpu_custom_call.1} parent=75 // pred_fallthru
          _
        %s575 = sand.u32 %s36, 1
        %s576 = scalar_lea.sflag [#allocation8], %s575
        %s577 = sand.u32 %s159, 1
        %s578 = smul.addr %s577, 64
        %s579 = scalar_lea.vmem [#allocation7], %s578
        // Predicated region
        $region81: #{tpu_custom_call.1} parent=75 // pred_check
          %p580 = pneg %p172
        $region82: #{tpu_custom_call.1} parent=75 // pred_check_branch
          %582 = sbr.rel (%p580) target = $region84
        $region83: #{tpu_custom_call.1} parent=75 // pred_region
          %584 = dma.done %s576, 1024
        $region84: #{tpu_custom_call.1} parent=75 // pred_fallthru
          _
        %s585 = sand.u32 %s36, 1
        %s586 = scalar_lea.sflag [#allocation8], %s585
        %s587 = sand.u32 %s185, 1
        %s588 = smul.addr %s587, 64
        %s589 = scalar_lea.vmem [#allocation9], %s588
        // Predicated region
        $region85: #{tpu_custom_call.1} parent=75 // pred_check
          %p590 = pneg %p198
        $region86: #{tpu_custom_call.1} parent=75 // pred_check_branch
          %592 = sbr.rel (%p590) target = $region88
        $region87: #{tpu_custom_call.1} parent=75 // pred_region
          %594 = dma.done %s586, 1024
        $region88: #{tpu_custom_call.1} parent=75 // pred_fallthru
          _
        %s595 = sand.u32 %s36, 1
        %s596 = scalar_lea.sflag [#allocation11], %s595
        %s597 = sand.u32 %s211, 1
        %s598 = smul.addr %s597, 128
        %s599 = scalar_lea.vmem [#allocation10], %s598
        // Predicated region
        $region89: #{tpu_custom_call.1} parent=75 // pred_check
          %p600 = pneg %p224
        $region90: #{tpu_custom_call.1} parent=75 // pred_check_branch
          %602 = sbr.rel (%p600) target = $region92
        $region91: #{tpu_custom_call.1} parent=75 // pred_region
          %604 = dma.done %s596, 2048
        $region92: #{tpu_custom_call.1} parent=75 // pred_fallthru
          _
        %s605 = sand.u32 %s36, 1
        %s606 = scalar_lea.sflag [#allocation11], %s605
        %s607 = sand.u32 %s237, 1
        %s608 = smul.addr %s607, 128
        %s609 = scalar_lea.vmem [#allocation12], %s608
        // Predicated region
        $region93: #{tpu_custom_call.1} parent=75 // pred_check
          %p610 = pneg %p250
        $region94: #{tpu_custom_call.1} parent=75 // pred_check_branch
          %612 = sbr.rel (%p610) target = $region96
        $region95: #{tpu_custom_call.1} parent=75 // pred_region
          %614 = dma.done %s606, 2048
        $region96: #{tpu_custom_call.1} parent=75 // pred_fallthru
          _
        // Predicated region
        $region97: #{tpu_custom_call.1} parent=75 // pred_check
          %p615 = pneg %p297
        $region98: #{tpu_custom_call.1} parent=75 // pred_check_branch
          %617 = sbr.rel (%p615) target = $region100
        $region99: #{tpu_custom_call.1} parent=75 // pred_region
          %619 = dma.done [#allocation14], 2048
        $region100: #{tpu_custom_call.1} parent=75 // pred_fallthru
          _
        %p620 = pneg %p52
        %p621 = pneg %p49
        %p622 = pneg %p73
        %p623 = pneg %p70
        %p624 = pneg %p94
        %p625 = pneg %p91
        %s626 = sand.u32 %s107, 1
        %s627 = scalar_lea.sflag [#allocation5], %s626
        %s628 = sand.u32 %s107, 1
        %s629 = smul.addr %s628, 192
        %s630 = scalar_lea.vmem [#allocation4], %s629
        %p631 = pneg %p120
        %p632 = pneg %p117
        %p633 = scmp.lt.s32.totalorder %s36, 1
        %s634 = scalar_select %p633, %s36, 1
        %s635 = smul.addr %s634, 16
        %s636 = smul.addr %s635, 4
        %s637 = scalar_lea.vmem %s4, %s636
        %p638 = pneg %p146
        %p639 = pneg %p143
        %s640 = sand.u32 %s36, 1
        %s641 = scalar_lea.sflag [#allocation8], %s640
        %s642 = sand.u32 %s159, 1
        %s643 = smul.addr %s642, 64
        %s644 = scalar_lea.vmem [#allocation7], %s643
        %p645 = pneg %p172
        %p646 = pneg %p169
        %s647 = sand.u32 %s36, 1
        %s648 = scalar_lea.sflag [#allocation8], %s647
        %s649 = sand.u32 %s185, 1
        %s650 = smul.addr %s649, 64
        %s651 = scalar_lea.vmem [#allocation9], %s650
        %p652 = pneg %p198
        %p653 = pneg %p195
        %s654 = sand.u32 %s36, 1
        %s655 = scalar_lea.sflag [#allocation11], %s654
        %s656 = sand.u32 %s211, 1
        %s657 = smul.addr %s656, 128
        %s658 = scalar_lea.vmem [#allocation10], %s657
        %p659 = pneg %p224
        %p660 = pneg %p221
        %s661 = sand.u32 %s36, 1
        %s662 = scalar_lea.sflag [#allocation11], %s661
        %s663 = sand.u32 %s237, 1
        %s664 = smul.addr %s663, 128
        %s665 = scalar_lea.vmem [#allocation12], %s664
        %p666 = pneg %p250
        %p667 = pneg %p247
        %p668 = scmp.lt.s32.totalorder %s36, 1
        %s669 = scalar_select %p668, %s36, 1
        %s670 = smul.addr %s669, 6
        %s671 = smul.addr %s670, 8
        %s672 = scalar_lea.vmem %s9, %s671
        %p673 = pneg %p276
        %p674 = pneg %p273
        %p675 = pneg %p297
        %p676 = pneg %p294
        %p677 = pneg %p318
        %p678 = pneg %p315
        %p679 = pneg %p339
        %p680 = pneg %p336
        %p681 = pneg %p360
        %p682 = pneg %p357
        %p683 = pneg %p381
        %p684 = pneg %p378
        %p685 = scmp.lt.s32.totalorder %s36, 1
        %s686 = scalar_select %p685, %s36, 1
        %s687 = smul.addr %s686, 16
        %s688 = smul.addr %s687, 4
        %s689 = scalar_lea.vmem %s4, %s688
        %p690 = scmp.lt.s32.totalorder %s36, 1
        %s691 = scalar_select %p690, %s36, 1
        %s692 = smul.addr %s691, 6
        %s693 = smul.addr %s692, 8
        %s694 = scalar_lea.vmem %s9, %s693
        %p696 = scmp.eq.s32.totalorder %s36, 0
        // Predicated region
        $region101: #{tpu_custom_call.1} parent=75 // pred_check
          %p697 = pneg %p696
        $region102: #{tpu_custom_call.1} parent=75 // pred_check_branch
          %699 = sbr.rel (%p697) target = $region104
        $region103: #{tpu_custom_call.1} parent=75 // pred_region
          %v700 = vld [vmem:[%s0] sm:$0xff]
          %v701 = vld [vmem:[%s0 + $0x8] sm:$0xff]
          %702 = vst [vmem:[#allocation2] sm:$0xff] %v700
          %703 = vst [vmem:[#allocation2 + $0x8] sm:$0xff] %v701
        $region104: #{tpu_custom_call.1} parent=75 // pred_fallthru
          _
        %v704 = vld [vmem:[#allocation2] sm:$0xff]
        %v705 = vld [vmem:[#allocation2 + $0x8] sm:$0xff]
        %v706 = vld [vmem:[%s694] sm:$0xff]
        %v707 = vld [vmem:[%s694 + $0x8] sm:$0xff]
        %v708 = vld [vmem:[%s694 + $0x10] sm:$0xff]
        %v709 = vld [vmem:[%s694 + $0x18] sm:$0xf]
        %v710 = vld [vmem:[%s694 + $0x20] sm:$0xf]
        %v711 = vpack.c.bf16 %v705, %v704
        %v712 = vld [vmem:[%s569] sm:$0xff]
        %v713 = vld [vmem:[%s569 + $0x8] sm:$0xf]
        %v714 = vld [vmem:[%s569 + $0xc] sm:$0xff]
        %v715 = vld [vmem:[%s569 + $0x14] sm:$0xf]
        %v716 = vld [vmem:[%s569 + $0x18] sm:$0xff]
        %v717 = vld [vmem:[%s569 + $0x20] sm:$0xf]
        %v718 = vld [vmem:[%s569 + $0x24] sm:$0xff]
        %v719 = vld [vmem:[%s569 + $0x2c] sm:$0xf]
        %v720 = vld [vmem:[%s569 + $0x30] sm:$0xff]
        %v721 = vld [vmem:[%s569 + $0x38] sm:$0xf]
        %v722 = vld [vmem:[%s569 + $0x3c] sm:$0xff]
        %v723 = vld [vmem:[%s569 + $0x44] sm:$0xf]
        %v724 = vld [vmem:[%s569 + $0x48] sm:$0xff]
        %v725 = vld [vmem:[%s569 + $0x50] sm:$0xf]
        %v726 = vld [vmem:[%s569 + $0x54] sm:$0xff]
        %v727 = vld [vmem:[%s569 + $0x5c] sm:$0xf]
        %v728 = vld [vmem:[%s569 + $0x60] sm:$0xff]
        %v729 = vld [vmem:[%s569 + $0x68] sm:$0xf]
        %v730 = vld [vmem:[%s569 + $0x6c] sm:$0xff]
        %v731 = vld [vmem:[%s569 + $0x74] sm:$0xf]
        %v732 = vld [vmem:[%s569 + $0x78] sm:$0xff]
        %v733 = vld [vmem:[%s569 + $0x80] sm:$0xf]
        %v734 = vld [vmem:[%s569 + $0x84] sm:$0xff]
        %v735 = vld [vmem:[%s569 + $0x8c] sm:$0xf]
        %v736 = vld [vmem:[%s569 + $0x90] sm:$0xff]
        %v737 = vld [vmem:[%s569 + $0x98] sm:$0xf]
        %v738 = vld [vmem:[%s569 + $0x9c] sm:$0xff]
        %v739 = vld [vmem:[%s569 + $0xa4] sm:$0xf]
        %v740 = vld [vmem:[%s569 + $0xa8] sm:$0xff]
        %v741 = vld [vmem:[%s569 + $0xb0] sm:$0xf]
        %v742 = vld [vmem:[%s569 + $0xb4] sm:$0xff]
        %v743 = vld [vmem:[%s569 + $0xbc] sm:$0xf]
        %v744 = vperm.slane %v706, 0
        %v745 = vperm.slane %v707, 0
        %v746 = vperm.slane %v708, 0
        %v779 = vunpack.c.l.b16 %v712
        %v780 = vunpack.c.h.b16 %v712
        %v781 = vunpack.c.l.b16 %v713
        %v782 = vunpack.c.l.b16 %v714
        %v783 = vunpack.c.h.b16 %v714
        %v784 = vunpack.c.l.b16 %v715
        %v785 = vunpack.c.l.b16 %v716
        %v786 = vunpack.c.h.b16 %v716
        %v787 = vunpack.c.l.b16 %v717
        %v788 = vunpack.c.l.b16 %v718
        %v789 = vunpack.c.h.b16 %v718
        %v790 = vunpack.c.l.b16 %v719
        %v791 = vunpack.c.l.b16 %v720
        %v792 = vunpack.c.h.b16 %v720
        %v793 = vunpack.c.l.b16 %v721
        %v794 = vunpack.c.l.b16 %v722
        %v795 = vunpack.c.h.b16 %v722
        %v796 = vunpack.c.l.b16 %v723
        %v797 = vunpack.c.l.b16 %v724
        %v798 = vunpack.c.h.b16 %v724
        %v799 = vunpack.c.l.b16 %v725
        %v800 = vunpack.c.l.b16 %v726
        %v801 = vunpack.c.h.b16 %v726
        %v802 = vunpack.c.l.b16 %v727
        %v803 = vunpack.c.l.b16 %v728
        %v804 = vunpack.c.h.b16 %v728
        %v805 = vunpack.c.l.b16 %v729
        %v806 = vunpack.c.l.b16 %v730
        %v807 = vunpack.c.h.b16 %v730
        %v808 = vunpack.c.l.b16 %v731
        %v809 = vunpack.c.l.b16 %v732
        %v810 = vunpack.c.h.b16 %v732
        %v811 = vunpack.c.l.b16 %v733
        %v812 = vunpack.c.l.b16 %v734
        %v813 = vunpack.c.h.b16 %v734
        %v814 = vunpack.c.l.b16 %v735
        %v815 = vunpack.c.l.b16 %v736
        %v816 = vunpack.c.h.b16 %v736
        %v817 = vunpack.c.l.b16 %v737
        %v818 = vunpack.c.l.b16 %v738
        %v819 = vunpack.c.h.b16 %v738
        %v820 = vunpack.c.l.b16 %v739
        %v821 = vunpack.c.l.b16 %v740
        %v822 = vunpack.c.h.b16 %v740
        %v823 = vunpack.c.l.b16 %v741
        %v824 = vunpack.c.l.b16 %v742
        %v825 = vunpack.c.h.b16 %v742
        %v826 = vunpack.c.l.b16 %v743
        %v827 = vpack.c.b16 %v782, %v779
        %v828 = vpack.c.b16 %v783, %v780
        %v829 = vpack.c.b16 %v784, %v781
        %v830 = vpack.c.b16 %v788, %v785
        %v831 = vpack.c.b16 %v789, %v786
        %v832 = vpack.c.b16 %v790, %v787
        %v833 = vpack.c.b16 %v794, %v791
        %v834 = vpack.c.b16 %v795, %v792
        %v835 = vpack.c.b16 %v796, %v793
        %v836 = vpack.c.b16 %v800, %v797
        %v837 = vpack.c.b16 %v801, %v798
        %v838 = vpack.c.b16 %v802, %v799
        %v839 = vpack.c.b16 %v806, %v803
        %v840 = vpack.c.b16 %v807, %v804
        %v841 = vpack.c.b16 %v808, %v805
        %v842 = vpack.c.b16 %v812, %v809
        %v843 = vpack.c.b16 %v813, %v810
        %v844 = vpack.c.b16 %v814, %v811
        %v845 = vpack.c.b16 %v818, %v815
        %v846 = vpack.c.b16 %v819, %v816
        %v847 = vpack.c.b16 %v820, %v817
        %v848 = vpack.c.b16 %v824, %v821
        %v849 = vpack.c.b16 %v825, %v822
        %v850 = vpack.c.b16 %v826, %v823
        %875 = vmatpush.bf16.msra.mxu0 %v848
        %876 = vmatpush.bf16.msra.mxu0 %v845
        %877 = vmatpush.bf16.msra.mxu0 %v842
        %878 = vmatpush.bf16.msra.mxu0 %v839
        %879 = vmatpush.bf16.msra.mxu0 %v836
        %880 = vmatpush.bf16.msra.mxu0 %v833
        %881 = vmatpush.bf16.msra.mxu0 %v830
        %882 = vmatpush.bf16.msra.mxu0 %v827
        %883 = vmatmul.bf16.gmra.mxu0 %v711
        %v884 = vpop.f32.mrf.mxu0
        %v885 = vadd.f32 %v744, %v884
        %v886 = vpop.f32.mrf.mxu0
        %v887 = vadd.f32 %v744, %v886
        %888 = vdwg.mxu0
        %889 = vmatpush.bf16.msra.mxu0 %v849
        %890 = vmatpush.bf16.msra.mxu0 %v846
        %891 = vmatpush.bf16.msra.mxu0 %v843
        %892 = vmatpush.bf16.msra.mxu0 %v840
        %893 = vmatpush.bf16.msra.mxu0 %v837
        %894 = vmatpush.bf16.msra.mxu0 %v834
        %895 = vmatpush.bf16.msra.mxu0 %v831
        %896 = vmatpush.bf16.msra.mxu0 %v828
        %897 = vmatmul.bf16.gmra.mxu0 %v711
        %v898 = vpop.f32.mrf.mxu0
        %v899 = vadd.f32 %v745, %v898
        %v900 = vpop.f32.mrf.mxu0
        %v901 = vadd.f32 %v745, %v900
        %902 = vdwg.mxu0
        %903 = vmatpush.bf16.msra.mxu0 %v850
        %904 = vmatpush.bf16.msra.mxu0 %v847
        %905 = vmatpush.bf16.msra.mxu0 %v844
        %906 = vmatpush.bf16.msra.mxu0 %v841
        %907 = vmatpush.bf16.msra.mxu0 %v838
        %908 = vmatpush.bf16.msra.mxu0 %v835
        %909 = vmatpush.bf16.msra.mxu0 %v832
        %910 = vmatpush.bf16.msra.mxu0 %v829
        %911 = vmatmul.bf16.gmra.mxu0 %v711
        %v912 = vpop.f32.mrf.mxu0
        %v913 = vadd.f32 %v746, %v912
        %v914 = vpop.f32.mrf.mxu0
        %v915 = vadd.f32 %v746, %v914
        %916 = vdwg.mxu0
        %v917 = vlaneseq
        %v918 = vshrl.u32 %v917, 7
        %v919 = vlaneseq
        %v920 = vand.u32 %v919, 127
        %vm921 = vcmp.ge.s32.totalorder %v918, %v920
        %v922 = vsel %vm921, 0.0, -1e+30
        %v923 = vld [vmem:[%s2] sm:$0x3]
        %v924 = vperm.slane %v923, 0
        %v925 = vadd.f32 %v922, %v924
        %v926 = vmax.f32 %v925, -1e+30
        %v927 = vpack.c.bf16 %v885, %v885
        %v928 = vpack.c.bf16 %v899, %v899
        %vm929 = vcmask 261120
        %v931 = vsel %vm929, %v927, 0
        %v934 = vsel %vm929, %v928, 0
        %936 = vmatpush.bf16.xpose.msra.mxu0 0
        %937 = vmatpush.bf16.xpose.msra.mxu0 0
        %938 = vmatpush.bf16.xpose.msra.mxu0 0
        %939 = vmatpush.bf16.xpose.msra.mxu0 0
        %940 = vmatpush.bf16.xpose.msra.mxu0 0
        %941 = vmatpush.bf16.xpose.msra.mxu0 0
        %942 = vmatpush.bf16.xpose.msra.mxu0 0
        %943 = vmatpush.bf16.xpose.msra.mxu0 %v934
        %944 = vmatmul.bf16.gmra.mxu0 %v931
        %v945 = vpop.f32.mrf.mxu0
        %v946 = vadd.f32 0.0, %v945
        %v947 = vpop.f32.mrf.mxu0
        %948 = vdwg.mxu0
        %v949 = vmul.f32 %v946, 0.17677669
        %v950 = vadd.f32 %v949, %v926
        %vm951 = vcmask 64512
        %v952 = vsel %vm951, %v950, -inf
        %953 = vmax.xlane.f32.xlu0 %v952
        %v954 = vpop.xlane.xlu0 %953
        %v955 = vsub.f32 %v950, %v954
        %v956 = vmul.f32 %v955, 1.442695
        %v957 = vpow.pop %v956
        %v958 = vsel %vm951, %v957, 0.0
        %959 = vadd.xlane.f32.xlu0 %v958
        %v960 = vpop.xlane.xlu0 %959
        %v961 = vrcp.pop %v960
        %v962 = vmul.f32 %v957, %v961
        %v963 = vpack.c.bf16 %v962, %v962
        %v964 = vpack.c.bf16 %v913, %v913
        %v966 = vsel %vm951, %v963, 0
        %vm968 = vcmask 1043456
        %v970 = vsel %vm968, %v964, 0
        %972 = vmatpush.bf16.msra.mxu0 0
        %973 = vmatpush.bf16.msra.mxu0 0
        %974 = vmatpush.bf16.msra.mxu0 0
        %975 = vmatpush.bf16.msra.mxu0 0
        %976 = vmatpush.bf16.msra.mxu0 0
        %977 = vmatpush.bf16.msra.mxu0 0
        %978 = vmatpush.bf16.msra.mxu0 0
        %979 = vmatpush.bf16.msra.mxu0 %v970
        %980 = vmatmul.bf16.gmra.mxu0 %v966
        %v981 = vpop.f32.mrf.mxu0
        %v982 = vadd.f32 0.0, %v981
        %v983 = vpop.f32.mrf.mxu0
        %984 = vdwg.mxu0
        %985 = vst.msk [vmem:[#allocation3] sm:$0xff] %vm929, %v982
        %987 = vrot.lane.b32.xlu0 %v927, 96
        %v988 = vpop.permute.xlu0 %987
        %990 = vrot.lane.b32.xlu0 %v928, 96
        %v991 = vpop.permute.xlu0 %990
        %v993 = vsel %vm929, %v988, 0
        %v996 = vsel %vm929, %v991, 0
        %998 = vmatpush.bf16.xpose.msra.mxu0 0
        %999 = vmatpush.bf16.xpose.msra.mxu0 0
        %1000 = vmatpush.bf16.xpose.msra.mxu0 0
        %1001 = vmatpush.bf16.xpose.msra.mxu0 0
        %1002 = vmatpush.bf16.xpose.msra.mxu0 0
        %1003 = vmatpush.bf16.xpose.msra.mxu0 0
        %1004 = vmatpush.bf16.xpose.msra.mxu0 0
        %1005 = vmatpush.bf16.xpose.msra.mxu0 %v996
        %1006 = vmatmul.bf16.gmra.mxu0 %v993
        %v1007 = vpop.f32.mrf.mxu0
        %v1008 = vadd.f32 0.0, %v1007
        %v1009 = vpop.f32.mrf.mxu0
        %1010 = vdwg.mxu0
        %v1011 = vmul.f32 %v1008, 0.17677669
        %v1012 = vadd.f32 %v1011, %v926
        %v1013 = vsel %vm951, %v1012, -inf
        %1014 = vmax.xlane.f32.xlu0 %v1013
        %v1015 = vpop.xlane.xlu0 %1014
        %v1016 = vsub.f32 %v1012, %v1015
        %v1017 = vmul.f32 %v1016, 1.442695
        %v1018 = vpow.pop %v1017
        %v1019 = vsel %vm951, %v1018, 0.0
        %1020 = vadd.xlane.f32.xlu0 %v1019
        %v1021 = vpop.xlane.xlu0 %1020
        %v1022 = vrcp.pop %v1021
        %v1023 = vmul.f32 %v1018, %v1022
        %v1024 = vpack.c.bf16 %v1023, %v1023
        %1026 = vrot.lane.b32.xlu0 %v964, 96
        %v1027 = vpop.permute.xlu0 %1026
        %v1029 = vsel %vm951, %v1024, 0
        %v1032 = vsel %vm968, %v1027, 0
        %1034 = vmatpush.bf16.msra.mxu0 0
        %1035 = vmatpush.bf16.msra.mxu0 0
        %1036 = vmatpush.bf16.msra.mxu0 0
        %1037 = vmatpush.bf16.msra.mxu0 0
        %1038 = vmatpush.bf16.msra.mxu0 0
        %1039 = vmatpush.bf16.msra.mxu0 0
        %1040 = vmatpush.bf16.msra.mxu0 0
        %1041 = vmatpush.bf16.msra.mxu0 %v1032
        %1042 = vmatmul.bf16.gmra.mxu0 %v1029
        %v1043 = vpop.f32.mrf.mxu0
        %v1044 = vadd.f32 0.0, %v1043
        %v1045 = vpop.f32.mrf.mxu0
        %1046 = vdwg.mxu0
        %1048 = vrot.lane.b32.xlu0 %v1044, 32
        %v1049 = vpop.permute.xlu0 %1048
        %vm1051 = vcmask 523520
        %1052 = vst.msk [vmem:[#allocation3] sm:$0xff] %vm1051, %v1049
        %1053 = vrot.lane.b32.xlu0 %v927, 64
        %v1054 = vpop.permute.xlu0 %1053
        %1055 = vrot.lane.b32.xlu0 %v928, 64
        %v1056 = vpop.permute.xlu0 %1055
        %v1058 = vsel %vm929, %v1054, 0
        %v1061 = vsel %vm929, %v1056, 0
        %1063 = vmatpush.bf16.xpose.msra.mxu0 0
        %1064 = vmatpush.bf16.xpose.msra.mxu0 0
        %1065 = vmatpush.bf16.xpose.msra.mxu0 0
        %1066 = vmatpush.bf16.xpose.msra.mxu0 0
        %1067 = vmatpush.bf16.xpose.msra.mxu0 0
        %1068 = vmatpush.bf16.xpose.msra.mxu0 0
        %1069 = vmatpush.bf16.xpose.msra.mxu0 0
        %1070 = vmatpush.bf16.xpose.msra.mxu0 %v1061
        %1071 = vmatmul.bf16.gmra.mxu0 %v1058
        %v1072 = vpop.f32.mrf.mxu0
        %v1073 = vadd.f32 0.0, %v1072
        %v1074 = vpop.f32.mrf.mxu0
        %1075 = vdwg.mxu0
        %v1076 = vmul.f32 %v1073, 0.17677669
        %v1077 = vadd.f32 %v1076, %v926
        %v1078 = vsel %vm951, %v1077, -inf
        %1079 = vmax.xlane.f32.xlu0 %v1078
        %v1080 = vpop.xlane.xlu0 %1079
        %v1081 = vsub.f32 %v1077, %v1080
        %v1082 = vmul.f32 %v1081, 1.442695
        %v1083 = vpow.pop %v1082
        %v1084 = vsel %vm951, %v1083, 0.0
        %1085 = vadd.xlane.f32.xlu0 %v1084
        %v1086 = vpop.xlane.xlu0 %1085
        %v1087 = vrcp.pop %v1086
        %v1088 = vmul.f32 %v1083, %v1087
        %v1089 = vpack.c.bf16 %v1088, %v1088
        %1090 = vrot.lane.b32.xlu0 %v964, 64
        %v1091 = vpop.permute.xlu0 %1090
        %v1093 = vsel %vm951, %v1089, 0
        %v1096 = vsel %vm968, %v1091, 0
        %1098 = vmatpush.bf16.msra.mxu0 0
        %1099 = vmatpush.bf16.msra.mxu0 0
        %1100 = vmatpush.bf16.msra.mxu0 0
        %1101 = vmatpush.bf16.msra.mxu0 0
        %1102 = vmatpush.bf16.msra.mxu0 0
        %1103 = vmatpush.bf16.msra.mxu0 0
        %1104 = vmatpush.bf16.msra.mxu0 0
        %1105 = vmatpush.bf16.msra.mxu0 %v1096
        %1106 = vmatmul.bf16.gmra.mxu0 %v1093
        %v1107 = vpop.f32.mrf.mxu0
        %v1108 = vadd.f32 0.0, %v1107
        %v1109 = vpop.f32.mrf.mxu0
        %1110 = vdwg.mxu0
        %1112 = vrot.lane.b32.xlu0 %v1108, 64
        %v1113 = vpop.permute.xlu0 %1112
        %vm1115 = vcmask 785920
        %1116 = vst.msk [vmem:[#allocation3] sm:$0xff] %vm1115, %v1113
        %1117 = vrot.lane.b32.xlu0 %v927, 32
        %v1118 = vpop.permute.xlu0 %1117
        %1119 = vrot.lane.b32.xlu0 %v928, 32
        %v1120 = vpop.permute.xlu0 %1119
        %v1122 = vsel %vm929, %v1118, 0
        %v1125 = vsel %vm929, %v1120, 0
        %1127 = vmatpush.bf16.xpose.msra.mxu0 0
        %1128 = vmatpush.bf16.xpose.msra.mxu0 0
        %1129 = vmatpush.bf16.xpose.msra.mxu0 0
        %1130 = vmatpush.bf16.xpose.msra.mxu0 0
        %1131 = vmatpush.bf16.xpose.msra.mxu0 0
        %1132 = vmatpush.bf16.xpose.msra.mxu0 0
        %1133 = vmatpush.bf16.xpose.msra.mxu0 0
        %1134 = vmatpush.bf16.xpose.msra.mxu0 %v1125
        %1135 = vmatmul.bf16.gmra.mxu0 %v1122
        %v1136 = vpop.f32.mrf.mxu0
        %v1137 = vadd.f32 0.0, %v1136
        %v1138 = vpop.f32.mrf.mxu0
        %1139 = vdwg.mxu0
        %v1140 = vmul.f32 %v1137, 0.17677669
        %v1141 = vadd.f32 %v1140, %v926
        %v1142 = vsel %vm951, %v1141, -inf
        %1143 = vmax.xlane.f32.xlu0 %v1142
        %v1144 = vpop.xlane.xlu0 %1143
        %v1145 = vsub.f32 %v1141, %v1144
        %v1146 = vmul.f32 %v1145, 1.442695
        %v1147 = vpow.pop %v1146
        %v1148 = vsel %vm951, %v1147, 0.0
        %1149 = vadd.xlane.f32.xlu0 %v1148
        %v1150 = vpop.xlane.xlu0 %1149
        %v1151 = vrcp.pop %v1150
        %v1152 = vmul.f32 %v1147, %v1151
        %v1153 = vpack.c.bf16 %v1152, %v1152
        %1154 = vrot.lane.b32.xlu0 %v964, 32
        %v1155 = vpop.permute.xlu0 %1154
        %v1157 = vsel %vm951, %v1153, 0
        %v1160 = vsel %vm968, %v1155, 0
        %1162 = vmatpush.bf16.msra.mxu0 0
        %1163 = vmatpush.bf16.msra.mxu0 0
        %1164 = vmatpush.bf16.msra.mxu0 0
        %1165 = vmatpush.bf16.msra.mxu0 0
        %1166 = vmatpush.bf16.msra.mxu0 0
        %1167 = vmatpush.bf16.msra.mxu0 0
        %1168 = vmatpush.bf16.msra.mxu0 0
        %1169 = vmatpush.bf16.msra.mxu0 %v1160
        %1170 = vmatmul.bf16.gmra.mxu0 %v1157
        %v1171 = vpop.f32.mrf.mxu0
        %v1172 = vadd.f32 0.0, %v1171
        %v1173 = vpop.f32.mrf.mxu0
        %1174 = vdwg.mxu0
        %1176 = vrot.lane.b32.xlu0 %v1172, 96
        %v1177 = vpop.permute.xlu0 %1176
        %vm1179 = vcmask 1048320
        %1180 = vst.msk [vmem:[#allocation3] sm:$0xff] %vm1179, %v1177
        %v1181 = vperm.slane %v923, 1
        %v1182 = vadd.f32 %v922, %v1181
        %v1183 = vmax.f32 %v1182, -1e+30
        %v1184 = vpack.c.bf16 %v887, %v887
        %v1185 = vpack.c.bf16 %v901, %v901
        %v1187 = vsel %vm929, %v1184, 0
        %v1190 = vsel %vm929, %v1185, 0
        %1192 = vmatpush.bf16.xpose.msra.mxu0 0
        %1193 = vmatpush.bf16.xpose.msra.mxu0 0
        %1194 = vmatpush.bf16.xpose.msra.mxu0 0
        %1195 = vmatpush.bf16.xpose.msra.mxu0 0
        %1196 = vmatpush.bf16.xpose.msra.mxu0 0
        %1197 = vmatpush.bf16.xpose.msra.mxu0 0
        %1198 = vmatpush.bf16.xpose.msra.mxu0 0
        %1199 = vmatpush.bf16.xpose.msra.mxu0 %v1190
        %1200 = vmatmul.bf16.gmra.mxu0 %v1187
        %v1201 = vpop.f32.mrf.mxu0
        %v1202 = vadd.f32 0.0, %v1201
        %v1203 = vpop.f32.mrf.mxu0
        %1204 = vdwg.mxu0
        %v1205 = vmul.f32 %v1202, 0.17677669
        %v1206 = vadd.f32 %v1205, %v1183
        %v1207 = vsel %vm951, %v1206, -inf
        %1208 = vmax.xlane.f32.xlu0 %v1207
        %v1209 = vpop.xlane.xlu0 %1208
        %v1210 = vsub.f32 %v1206, %v1209
        %v1211 = vmul.f32 %v1210, 1.442695
        %v1212 = vpow.pop %v1211
        %v1213 = vsel %vm951, %v1212, 0.0
        %1214 = vadd.xlane.f32.xlu0 %v1213
        %v1215 = vpop.xlane.xlu0 %1214
        %v1216 = vrcp.pop %v1215
        %v1217 = vmul.f32 %v1212, %v1216
        %v1218 = vpack.c.bf16 %v1217, %v1217
        %v1219 = vpack.c.bf16 %v915, %v915
        %v1221 = vsel %vm951, %v1218, 0
        %v1224 = vsel %vm968, %v1219, 0
        %1226 = vmatpush.bf16.msra.mxu0 0
        %1227 = vmatpush.bf16.msra.mxu0 0
        %1228 = vmatpush.bf16.msra.mxu0 0
        %1229 = vmatpush.bf16.msra.mxu0 0
        %1230 = vmatpush.bf16.msra.mxu0 0
        %1231 = vmatpush.bf16.msra.mxu0 0
        %1232 = vmatpush.bf16.msra.mxu0 0
        %1233 = vmatpush.bf16.msra.mxu0 %v1224
        %1234 = vmatmul.bf16.gmra.mxu0 %v1221
        %v1235 = vpop.f32.mrf.mxu0
        %v1236 = vadd.f32 0.0, %v1235
        %v1237 = vpop.f32.mrf.mxu0
        %1238 = vdwg.mxu0
        %1239 = vst.msk [vmem:[#allocation3 + $0x8] sm:$0xff] %vm929, %v1236
        %1241 = vrot.lane.b32.xlu0 %v1184, 96
        %v1242 = vpop.permute.xlu0 %1241
        %1244 = vrot.lane.b32.xlu0 %v1185, 96
        %v1245 = vpop.permute.xlu0 %1244
        %v1247 = vsel %vm929, %v1242, 0
        %v1250 = vsel %vm929, %v1245, 0
        %1252 = vmatpush.bf16.xpose.msra.mxu0 0
        %1253 = vmatpush.bf16.xpose.msra.mxu0 0
        %1254 = vmatpush.bf16.xpose.msra.mxu0 0
        %1255 = vmatpush.bf16.xpose.msra.mxu0 0
        %1256 = vmatpush.bf16.xpose.msra.mxu0 0
        %1257 = vmatpush.bf16.xpose.msra.mxu0 0
        %1258 = vmatpush.bf16.xpose.msra.mxu0 0
        %1259 = vmatpush.bf16.xpose.msra.mxu0 %v1250
        %1260 = vmatmul.bf16.gmra.mxu0 %v1247
        %v1261 = vpop.f32.mrf.mxu0
        %v1262 = vadd.f32 0.0, %v1261
        %v1263 = vpop.f32.mrf.mxu0
        %1264 = vdwg.mxu0
        %v1265 = vmul.f32 %v1262, 0.17677669
        %v1266 = vadd.f32 %v1265, %v1183
        %v1267 = vsel %vm951, %v1266, -inf
        %1268 = vmax.xlane.f32.xlu0 %v1267
        %v1269 = vpop.xlane.xlu0 %1268
        %v1270 = vsub.f32 %v1266, %v1269
        %v1271 = vmul.f32 %v1270, 1.442695
        %v1272 = vpow.pop %v1271
        %v1273 = vsel %vm951, %v1272, 0.0
        %1274 = vadd.xlane.f32.xlu0 %v1273
        %v1275 = vpop.xlane.xlu0 %1274
        %v1276 = vrcp.pop %v1275
        %v1277 = vmul.f32 %v1272, %v1276
        %v1278 = vpack.c.bf16 %v1277, %v1277
        %1280 = vrot.lane.b32.xlu0 %v1219, 96
        %v1281 = vpop.permute.xlu0 %1280
        %v1283 = vsel %vm951, %v1278, 0
        %v1286 = vsel %vm968, %v1281, 0
        %1288 = vmatpush.bf16.msra.mxu0 0
        %1289 = vmatpush.bf16.msra.mxu0 0
        %1290 = vmatpush.bf16.msra.mxu0 0
        %1291 = vmatpush.bf16.msra.mxu0 0
        %1292 = vmatpush.bf16.msra.mxu0 0
        %1293 = vmatpush.bf16.msra.mxu0 0
        %1294 = vmatpush.bf16.msra.mxu0 0
        %1295 = vmatpush.bf16.msra.mxu0 %v1286
        %1296 = vmatmul.bf16.gmra.mxu0 %v1283
        %v1297 = vpop.f32.mrf.mxu0
        %v1298 = vadd.f32 0.0, %v1297
        %v1299 = vpop.f32.mrf.mxu0
        %1300 = vdwg.mxu0
        %1302 = vrot.lane.b32.xlu0 %v1298, 32
        %v1303 = vpop.permute.xlu0 %1302
        %1305 = vst.msk [vmem:[#allocation3 + $0x8] sm:$0xff] %vm1051, %v1303
        %1306 = vrot.lane.b32.xlu0 %v1184, 64
        %v1307 = vpop.permute.xlu0 %1306
        %1308 = vrot.lane.b32.xlu0 %v1185, 64
        %v1309 = vpop.permute.xlu0 %1308
        %v1311 = vsel %vm929, %v1307, 0
        %v1314 = vsel %vm929, %v1309, 0
        %1316 = vmatpush.bf16.xpose.msra.mxu0 0
        %1317 = vmatpush.bf16.xpose.msra.mxu0 0
        %1318 = vmatpush.bf16.xpose.msra.mxu0 0
        %1319 = vmatpush.bf16.xpose.msra.mxu0 0
        %1320 = vmatpush.bf16.xpose.msra.mxu0 0
        %1321 = vmatpush.bf16.xpose.msra.mxu0 0
        %1322 = vmatpush.bf16.xpose.msra.mxu0 0
        %1323 = vmatpush.bf16.xpose.msra.mxu0 %v1314
        %1324 = vmatmul.bf16.gmra.mxu0 %v1311
        %v1325 = vpop.f32.mrf.mxu0
        %v1326 = vadd.f32 0.0, %v1325
        %v1327 = vpop.f32.mrf.mxu0
        %1328 = vdwg.mxu0
        %v1329 = vmul.f32 %v1326, 0.17677669
        %v1330 = vadd.f32 %v1329, %v1183
        %v1331 = vsel %vm951, %v1330, -inf
        %1332 = vmax.xlane.f32.xlu0 %v1331
        %v1333 = vpop.xlane.xlu0 %1332
        %v1334 = vsub.f32 %v1330, %v1333
        %v1335 = vmul.f32 %v1334, 1.442695
        %v1336 = vpow.pop %v1335
        %v1337 = vsel %vm951, %v1336, 0.0
        %1338 = vadd.xlane.f32.xlu0 %v1337
        %v1339 = vpop.xlane.xlu0 %1338
        %v1340 = vrcp.pop %v1339
        %v1341 = vmul.f32 %v1336, %v1340
        %v1342 = vpack.c.bf16 %v1341, %v1341
        %1343 = vrot.lane.b32.xlu0 %v1219, 64
        %v1344 = vpop.permute.xlu0 %1343
        %v1346 = vsel %vm951, %v1342, 0
        %v1349 = vsel %vm968, %v1344, 0
        %1351 = vmatpush.bf16.msra.mxu0 0
        %1352 = vmatpush.bf16.msra.mxu0 0
        %1353 = vmatpush.bf16.msra.mxu0 0
        %1354 = vmatpush.bf16.msra.mxu0 0
        %1355 = vmatpush.bf16.msra.mxu0 0
        %1356 = vmatpush.bf16.msra.mxu0 0
        %1357 = vmatpush.bf16.msra.mxu0 0
        %1358 = vmatpush.bf16.msra.mxu0 %v1349
        %1359 = vmatmul.bf16.gmra.mxu0 %v1346
        %v1360 = vpop.f32.mrf.mxu0
        %v1361 = vadd.f32 0.0, %v1360
        %v1362 = vpop.f32.mrf.mxu0
        %1363 = vdwg.mxu0
        %1365 = vrot.lane.b32.xlu0 %v1361, 64
        %v1366 = vpop.permute.xlu0 %1365
        %1368 = vst.msk [vmem:[#allocation3 + $0x8] sm:$0xff] %vm1115, %v1366
        %1369 = vrot.lane.b32.xlu0 %v1184, 32
        %v1370 = vpop.permute.xlu0 %1369
        %1371 = vrot.lane.b32.xlu0 %v1185, 32
        %v1372 = vpop.permute.xlu0 %1371
        %v1374 = vsel %vm929, %v1370, 0
        %v1377 = vsel %vm929, %v1372, 0
        %1379 = vmatpush.bf16.xpose.msra.mxu0 0
        %1380 = vmatpush.bf16.xpose.msra.mxu0 0
        %1381 = vmatpush.bf16.xpose.msra.mxu0 0
        %1382 = vmatpush.bf16.xpose.msra.mxu0 0
        %1383 = vmatpush.bf16.xpose.msra.mxu0 0
        %1384 = vmatpush.bf16.xpose.msra.mxu0 0
        %1385 = vmatpush.bf16.xpose.msra.mxu0 0
        %1386 = vmatpush.bf16.xpose.msra.mxu0 %v1377
        %1387 = vmatmul.bf16.gmra.mxu0 %v1374
        %v1388 = vpop.f32.mrf.mxu0
        %v1389 = vadd.f32 0.0, %v1388
        %v1390 = vpop.f32.mrf.mxu0
        %1391 = vdwg.mxu0
        %v1392 = vmul.f32 %v1389, 0.17677669
        %v1393 = vadd.f32 %v1392, %v1183
        %v1394 = vsel %vm951, %v1393, -inf
        %1395 = vmax.xlane.f32.xlu0 %v1394
        %v1396 = vpop.xlane.xlu0 %1395
        %v1397 = vsub.f32 %v1393, %v1396
        %v1398 = vmul.f32 %v1397, 1.442695
        %v1399 = vpow.pop %v1398
        %v1400 = vsel %vm951, %v1399, 0.0
        %1401 = vadd.xlane.f32.xlu0 %v1400
        %v1402 = vpop.xlane.xlu0 %1401
        %v1403 = vrcp.pop %v1402
        %v1404 = vmul.f32 %v1399, %v1403
        %v1405 = vpack.c.bf16 %v1404, %v1404
        %1406 = vrot.lane.b32.xlu0 %v1219, 32
        %v1407 = vpop.permute.xlu0 %1406
        %v1409 = vsel %vm951, %v1405, 0
        %v1412 = vsel %vm968, %v1407, 0
        %1414 = vmatpush.bf16.msra.mxu0 0
        %1415 = vmatpush.bf16.msra.mxu0 0
        %1416 = vmatpush.bf16.msra.mxu0 0
        %1417 = vmatpush.bf16.msra.mxu0 0
        %1418 = vmatpush.bf16.msra.mxu0 0
        %1419 = vmatpush.bf16.msra.mxu0 0
        %1420 = vmatpush.bf16.msra.mxu0 0
        %1421 = vmatpush.bf16.msra.mxu0 %v1412
        %1422 = vmatmul.bf16.gmra.mxu0 %v1409
        %v1423 = vpop.f32.mrf.mxu0
        %v1424 = vadd.f32 0.0, %v1423
        %v1425 = vpop.f32.mrf.mxu0
        %1426 = vdwg.mxu0
        %1428 = vrot.lane.b32.xlu0 %v1424, 96
        %v1429 = vpop.permute.xlu0 %1428
        %1431 = vst.msk [vmem:[#allocation3 + $0x8] sm:$0xff] %vm1179, %v1429
        %v1432 = vld [vmem:[#allocation3] sm:$0xff]
        %v1433 = vld [vmem:[#allocation3 + $0x8] sm:$0xff]
        %v1434 = vpack.c.bf16 %v1433, %v1432
        %v1435 = vld [vmem:[%s689] sm:$0xf]
        %v1436 = vld [vmem:[%s689 + $0x4] sm:$0xf]
        %v1437 = vld [vmem:[%s689 + $0x8] sm:$0xf]
        %v1438 = vld [vmem:[%s689 + $0xc] sm:$0xf]
        %v1439 = vld [vmem:[%s689 + $0x10] sm:$0xf]
        %v1440 = vld [vmem:[%s689 + $0x14] sm:$0xf]
        %v1441 = vld [vmem:[%s689 + $0x18] sm:$0xf]
        %v1442 = vld [vmem:[%s689 + $0x1c] sm:$0xf]
        %v1443 = vld [vmem:[%s689 + $0x20] sm:$0xf]
        %v1444 = vld [vmem:[%s689 + $0x24] sm:$0xf]
        %v1445 = vld [vmem:[%s689 + $0x28] sm:$0xf]
        %v1446 = vld [vmem:[%s689 + $0x2c] sm:$0xf]
        %v1447 = vld [vmem:[%s689 + $0x30] sm:$0xf]
        %v1448 = vld [vmem:[%s689 + $0x34] sm:$0xf]
        %v1449 = vld [vmem:[%s689 + $0x38] sm:$0xf]
        %v1450 = vld [vmem:[%s689 + $0x3c] sm:$0xf]
        %v1451 = vperm.slane %v706, 1
        %v1468 = vunpack.c.l.b16 %v1435
        %v1469 = vunpack.c.l.b16 %v1436
        %v1470 = vunpack.c.l.b16 %v1437
        %v1471 = vunpack.c.l.b16 %v1438
        %v1472 = vunpack.c.l.b16 %v1439
        %v1473 = vunpack.c.l.b16 %v1440
        %v1474 = vunpack.c.l.b16 %v1441
        %v1475 = vunpack.c.l.b16 %v1442
        %v1476 = vunpack.c.l.b16 %v1443
        %v1477 = vunpack.c.l.b16 %v1444
        %v1478 = vunpack.c.l.b16 %v1445
        %v1479 = vunpack.c.l.b16 %v1446
        %v1480 = vunpack.c.l.b16 %v1447
        %v1481 = vunpack.c.l.b16 %v1448
        %v1482 = vunpack.c.l.b16 %v1449
        %v1483 = vunpack.c.l.b16 %v1450
        %v1484 = vpack.c.b16 %v1469, %v1468
        %v1485 = vpack.c.b16 %v1471, %v1470
        %v1486 = vpack.c.b16 %v1473, %v1472
        %v1487 = vpack.c.b16 %v1475, %v1474
        %v1488 = vpack.c.b16 %v1477, %v1476
        %v1489 = vpack.c.b16 %v1479, %v1478
        %v1490 = vpack.c.b16 %v1481, %v1480
        %v1491 = vpack.c.b16 %v1483, %v1482
        %1500 = vmatpush.bf16.msra.mxu0 %v1491
        %1501 = vmatpush.bf16.msra.mxu0 %v1490
        %1502 = vmatpush.bf16.msra.mxu0 %v1489
        %1503 = vmatpush.bf16.msra.mxu0 %v1488
        %1504 = vmatpush.bf16.msra.mxu0 %v1487
        %1505 = vmatpush.bf16.msra.mxu0 %v1486
        %1506 = vmatpush.bf16.msra.mxu0 %v1485
        %1507 = vmatpush.bf16.msra.mxu0 %v1484
        %1508 = vmatmul.bf16.gmra.mxu0 %v1434
        %v1509 = vpop.f32.mrf.mxu0
        %v1510 = vadd.f32 %v1451, %v1509
        %v1511 = vpop.f32.mrf.mxu0
        %v1512 = vadd.f32 %v1451, %v1511
        %1513 = vdwg.mxu0
        %v1514 = vadd.f32 %v704, %v1510
        %v1515 = vadd.f32 %v705, %v1512
        %1516 = vadd.xlane.f32.xlu0 %v1514
        %v1517 = vpop.xlane.xlu0 %1516
        %1518 = vadd.xlane.f32.xlu0 %v1515
        %v1519 = vpop.xlane.xlu0 %1518
        %v1520 = vrcp.pop 128.0
        %v1521 = vmul.f32 128.0, %v1520
        %v1522 = vsub.f32 1.0, %v1521
        %v1523 = vmul.f32 %v1520, %v1522
        %v1524 = vadd.f32 %v1520, %v1523
        %vm1525 = vweird.f32 %v1520
        %v1526 = vsel %vm1525, %v1520, %v1524
        %v1527 = vmul.f32 %v1517, %v1526
        %v1528 = vmul.f32 %v1519, %v1526
        %v1529 = vsub.f32 %v1514, %v1527
        %v1530 = vsub.f32 %v1515, %v1528
        %v1531 = vmul.f32 %v1529, %v1529
        %v1532 = vmul.f32 %v1530, %v1530
        %1533 = vadd.xlane.f32.xlu0 %v1531
        %v1534 = vpop.xlane.xlu0 %1533
        %1535 = vadd.xlane.f32.xlu0 %v1532
        %v1536 = vpop.xlane.xlu0 %1535
        %v1537 = vmul.f32 %v1534, %v1526
        %v1538 = vmul.f32 %v1536, %v1526
        %v1539 = vadd.f32 %v1537, 1e-05
        %v1540 = vadd.f32 %v1538, 1e-05
        %v1541 = vrsqrt.pop %v1539
        %v1542 = vmul.f32 %v1541, %v1539
        %v1543 = vmul.f32 %v1542, %v1541
        %v1544 = vmul.f32 0.5, %v1543
        %v1545 = vsub.f32 1.5, %v1544
        %v1546 = vmul.f32 %v1541, %v1545
        %vm1547 = vweird.f32 %v1539
        %vm1548 = vweird.f32 %v1541
        %vm1549 = vmor %vm1547, %vm1548
        %v1550 = vsel %vm1549, %v1541, %v1546
        %v1551 = vrsqrt.pop %v1540
        %v1552 = vmul.f32 %v1551, %v1540
        %v1553 = vmul.f32 %v1552, %v1551
        %v1554 = vmul.f32 0.5, %v1553
        %v1555 = vsub.f32 1.5, %v1554
        %v1556 = vmul.f32 %v1551, %v1555
        %vm1557 = vweird.f32 %v1540
        %vm1558 = vweird.f32 %v1551
        %vm1559 = vmor %vm1557, %vm1558
        %v1560 = vsel %vm1559, %v1551, %v1556
        %v1561 = vmul.f32 %v1529, %v1550
        %v1562 = vmul.f32 %v1530, %v1560
        %v1563 = vperm.slane %v706, 2
        %v1564 = vmul.f32 %v1561, %v1563
        %v1565 = vmul.f32 %v1562, %v1563
        %v1566 = vperm.slane %v706, 3
        %v1567 = vadd.f32 %v1564, %v1566
        %v1568 = vadd.f32 %v1565, %v1566
        %v1569 = vld [vmem:[%s1] sm:$0x3]
        %v1570 = vpack.c.bf16 %v1569, %v1569
        %v1571 = vld [vmem:[%s579] sm:$0xf]
        %v1572 = vld [vmem:[%s579 + $0x4] sm:$0xf]
        %v1573 = vld [vmem:[%s579 + $0x8] sm:$0xf]
        %v1574 = vld [vmem:[%s579 + $0xc] sm:$0xf]
        %v1575 = vld [vmem:[%s579 + $0x10] sm:$0xf]
        %v1576 = vld [vmem:[%s579 + $0x14] sm:$0xf]
        %v1577 = vld [vmem:[%s579 + $0x18] sm:$0xf]
        %v1578 = vld [vmem:[%s579 + $0x1c] sm:$0xf]
        %v1579 = vld [vmem:[%s579 + $0x20] sm:$0xf]
        %v1580 = vld [vmem:[%s579 + $0x24] sm:$0xf]
        %v1581 = vld [vmem:[%s579 + $0x28] sm:$0xf]
        %v1582 = vld [vmem:[%s579 + $0x2c] sm:$0xf]
        %v1583 = vld [vmem:[%s579 + $0x30] sm:$0xf]
        %v1584 = vld [vmem:[%s579 + $0x34] sm:$0xf]
        %v1585 = vld [vmem:[%s579 + $0x38] sm:$0xf]
        %v1586 = vld [vmem:[%s579 + $0x3c] sm:$0xf]
        %v1587 = vperm.slane %v706, 4
        %v1604 = vunpack.c.l.b16 %v1571
        %v1605 = vunpack.c.l.b16 %v1572
        %v1606 = vunpack.c.l.b16 %v1573
        %v1607 = vunpack.c.l.b16 %v1574
        %v1608 = vunpack.c.l.b16 %v1575
        %v1609 = vunpack.c.l.b16 %v1576
        %v1610 = vunpack.c.l.b16 %v1577
        %v1611 = vunpack.c.l.b16 %v1578
        %v1612 = vunpack.c.l.b16 %v1579
        %v1613 = vunpack.c.l.b16 %v1580
        %v1614 = vunpack.c.l.b16 %v1581
        %v1615 = vunpack.c.l.b16 %v1582
        %v1616 = vunpack.c.l.b16 %v1583
        %v1617 = vunpack.c.l.b16 %v1584
        %v1618 = vunpack.c.l.b16 %v1585
        %v1619 = vunpack.c.l.b16 %v1586
        %v1620 = vpack.c.b16 %v1605, %v1604
        %v1621 = vpack.c.b16 %v1607, %v1606
        %v1622 = vpack.c.b16 %v1609, %v1608
        %v1623 = vpack.c.b16 %v1611, %v1610
        %v1624 = vpack.c.b16 %v1613, %v1612
        %v1625 = vpack.c.b16 %v1615, %v1614
        %v1626 = vpack.c.b16 %v1617, %v1616
        %v1627 = vpack.c.b16 %v1619, %v1618
        %1636 = vmatpush.bf16.msra.mxu0 %v1627
        %1637 = vmatpush.bf16.msra.mxu0 %v1626
        %1638 = vmatpush.bf16.msra.mxu0 %v1625
        %1639 = vmatpush.bf16.msra.mxu0 %v1624
        %1640 = vmatpush.bf16.msra.mxu0 %v1623
        %1641 = vmatpush.bf16.msra.mxu0 %v1622
        %1642 = vmatpush.bf16.msra.mxu0 %v1621
        %1643 = vmatpush.bf16.msra.mxu0 %v1620
        %1644 = vmatmul.bf16.gmra.mxu0 %v1570
        %v1645 = vpop.f32.mrf.mxu0
        %v1646 = vadd.f32 %v1587, %v1645
        %v1647 = vpop.f32.mrf.mxu0
        %1648 = vdwg.mxu0
        %v1649 = vpack.c.bf16 %v1646, %v1646
        %v1650 = vld [vmem:[%s589] sm:$0xf]
        %v1651 = vld [vmem:[%s589 + $0x4] sm:$0xf]
        %v1652 = vld [vmem:[%s589 + $0x8] sm:$0xf]
        %v1653 = vld [vmem:[%s589 + $0xc] sm:$0xf]
        %v1654 = vld [vmem:[%s589 + $0x10] sm:$0xf]
        %v1655 = vld [vmem:[%s589 + $0x14] sm:$0xf]
        %v1656 = vld [vmem:[%s589 + $0x18] sm:$0xf]
        %v1657 = vld [vmem:[%s589 + $0x1c] sm:$0xf]
        %v1658 = vld [vmem:[%s589 + $0x20] sm:$0xf]
        %v1659 = vld [vmem:[%s589 + $0x24] sm:$0xf]
        %v1660 = vld [vmem:[%s589 + $0x28] sm:$0xf]
        %v1661 = vld [vmem:[%s589 + $0x2c] sm:$0xf]
        %v1662 = vld [vmem:[%s589 + $0x30] sm:$0xf]
        %v1663 = vld [vmem:[%s589 + $0x34] sm:$0xf]
        %v1664 = vld [vmem:[%s589 + $0x38] sm:$0xf]
        %v1665 = vld [vmem:[%s589 + $0x3c] sm:$0xf]
        %v1666 = vperm.slane %v706, 5
        %v1683 = vunpack.c.l.b16 %v1650
        %v1684 = vunpack.c.l.b16 %v1651
        %v1685 = vunpack.c.l.b16 %v1652
        %v1686 = vunpack.c.l.b16 %v1653
        %v1687 = vunpack.c.l.b16 %v1654
        %v1688 = vunpack.c.l.b16 %v1655
        %v1689 = vunpack.c.l.b16 %v1656
        %v1690 = vunpack.c.l.b16 %v1657
        %v1691 = vunpack.c.l.b16 %v1658
        %v1692 = vunpack.c.l.b16 %v1659
        %v1693 = vunpack.c.l.b16 %v1660
        %v1694 = vunpack.c.l.b16 %v1661
        %v1695 = vunpack.c.l.b16 %v1662
        %v1696 = vunpack.c.l.b16 %v1663
        %v1697 = vunpack.c.l.b16 %v1664
        %v1698 = vunpack.c.l.b16 %v1665
        %v1699 = vpack.c.b16 %v1684, %v1683
        %v1700 = vpack.c.b16 %v1686, %v1685
        %v1701 = vpack.c.b16 %v1688, %v1687
        %v1702 = vpack.c.b16 %v1690, %v1689
        %v1703 = vpack.c.b16 %v1692, %v1691
        %v1704 = vpack.c.b16 %v1694, %v1693
        %v1705 = vpack.c.b16 %v1696, %v1695
        %v1706 = vpack.c.b16 %v1698, %v1697
        %1715 = vmatpush.bf16.msra.mxu0 %v1706
        %1716 = vmatpush.bf16.msra.mxu0 %v1705
        %1717 = vmatpush.bf16.msra.mxu0 %v1704
        %1718 = vmatpush.bf16.msra.mxu0 %v1703
        %1719 = vmatpush.bf16.msra.mxu0 %v1702
        %1720 = vmatpush.bf16.msra.mxu0 %v1701
        %1721 = vmatpush.bf16.msra.mxu0 %v1700
        %1722 = vmatpush.bf16.msra.mxu0 %v1699
        %1723 = vmatmul.bf16.gmra.mxu0 %v1649
        %v1724 = vpop.f32.mrf.mxu0
        %v1725 = vadd.f32 %v1666, %v1724
        %v1726 = vpop.f32.mrf.mxu0
        %1727 = vdwg.mxu0
        %v1729 = vrot.slane %v1725, 1
        %v1730 = vperm.slane %v1725, 0
        %v1731 = vperm.slane %v1729, 0
        %v1734 = vadd.f32 %v1567, %v1730
        %v1735 = vadd.f32 %v1568, %v1731
        %1736 = vadd.xlane.f32.xlu0 %v1734
        %v1737 = vpop.xlane.xlu0 %1736
        %1738 = vadd.xlane.f32.xlu0 %v1735
        %v1739 = vpop.xlane.xlu0 %1738
        %v1740 = vmul.f32 %v1737, %v1526
        %v1741 = vmul.f32 %v1739, %v1526
        %v1742 = vsub.f32 %v1734, %v1740
        %v1743 = vsub.f32 %v1735, %v1741
        %v1744 = vmul.f32 %v1742, %v1742
        %v1745 = vmul.f32 %v1743, %v1743
        %1746 = vadd.xlane.f32.xlu0 %v1744
        %v1747 = vpop.xlane.xlu0 %1746
        %1748 = vadd.xlane.f32.xlu0 %v1745
        %v1749 = vpop.xlane.xlu0 %1748
        %v1750 = vmul.f32 %v1747, %v1526
        %v1751 = vmul.f32 %v1749, %v1526
        %v1752 = vadd.f32 %v1750, 1e-05
        %v1753 = vadd.f32 %v1751, 1e-05
        %v1754 = vrsqrt.pop %v1752
        %v1755 = vmul.f32 %v1754, %v1752
        %v1756 = vmul.f32 %v1755, %v1754
        %v1757 = vmul.f32 0.5, %v1756
        %v1758 = vsub.f32 1.5, %v1757
        %v1759 = vmul.f32 %v1754, %v1758
        %vm1760 = vweird.f32 %v1752
        %vm1761 = vweird.f32 %v1754
        %vm1762 = vmor %vm1760, %vm1761
        %v1763 = vsel %vm1762, %v1754, %v1759
        %v1764 = vrsqrt.pop %v1753
        %v1765 = vmul.f32 %v1764, %v1753
        %v1766 = vmul.f32 %v1765, %v1764
        %v1767 = vmul.f32 0.5, %v1766
        %v1768 = vsub.f32 1.5, %v1767
        %v1769 = vmul.f32 %v1764, %v1768
        %vm1770 = vweird.f32 %v1753
        %vm1771 = vweird.f32 %v1764
        %vm1772 = vmor %vm1770, %vm1771
        %v1773 = vsel %vm1772, %v1764, %v1769
        %v1774 = vmul.f32 %v1742, %v1763
        %v1775 = vmul.f32 %v1743, %v1773
        %v1776 = vperm.slane %v706, 6
        %v1777 = vmul.f32 %v1774, %v1776
        %v1778 = vmul.f32 %v1775, %v1776
        %v1779 = vperm.slane %v706, 7
        %v1780 = vadd.f32 %v1777, %v1779
        %v1781 = vadd.f32 %v1778, %v1779
        %v1782 = vpack.c.bf16 %v1781, %v1780
        %v1783 = vld [vmem:[%s599] sm:$0xff]
        %v1784 = vld [vmem:[%s599 + $0x8] sm:$0xff]
        %v1785 = vld [vmem:[%s599 + $0x10] sm:$0xff]
        %v1786 = vld [vmem:[%s599 + $0x18] sm:$0xff]
        %v1787 = vld [vmem:[%s599 + $0x20] sm:$0xff]
        %v1788 = vld [vmem:[%s599 + $0x28] sm:$0xff]
        %v1789 = vld [vmem:[%s599 + $0x30] sm:$0xff]
        %v1790 = vld [vmem:[%s599 + $0x38] sm:$0xff]
        %v1791 = vld [vmem:[%s599 + $0x40] sm:$0xff]
        %v1792 = vld [vmem:[%s599 + $0x48] sm:$0xff]
        %v1793 = vld [vmem:[%s599 + $0x50] sm:$0xff]
        %v1794 = vld [vmem:[%s599 + $0x58] sm:$0xff]
        %v1795 = vld [vmem:[%s599 + $0x60] sm:$0xff]
        %v1796 = vld [vmem:[%s599 + $0x68] sm:$0xff]
        %v1797 = vld [vmem:[%s599 + $0x70] sm:$0xff]
        %v1798 = vld [vmem:[%s599 + $0x78] sm:$0xff]
        %v1799 = vperm.slane %v709, 0
        %v1800 = vperm.slane %v710, 0
        %v1817 = vunpack.c.l.b16 %v1783
        %v1818 = vunpack.c.h.b16 %v1783
        %v1819 = vunpack.c.l.b16 %v1784
        %v1820 = vunpack.c.h.b16 %v1784
        %v1821 = vunpack.c.l.b16 %v1785
        %v1822 = vunpack.c.h.b16 %v1785
        %v1823 = vunpack.c.l.b16 %v1786
        %v1824 = vunpack.c.h.b16 %v1786
        %v1825 = vunpack.c.l.b16 %v1787
        %v1826 = vunpack.c.h.b16 %v1787
        %v1827 = vunpack.c.l.b16 %v1788
        %v1828 = vunpack.c.h.b16 %v1788
        %v1829 = vunpack.c.l.b16 %v1789
        %v1830 = vunpack.c.h.b16 %v1789
        %v1831 = vunpack.c.l.b16 %v1790
        %v1832 = vunpack.c.h.b16 %v1790
        %v1833 = vunpack.c.l.b16 %v1791
        %v1834 = vunpack.c.h.b16 %v1791
        %v1835 = vunpack.c.l.b16 %v1792
        %v1836 = vunpack.c.h.b16 %v1792
        %v1837 = vunpack.c.l.b16 %v1793
        %v1838 = vunpack.c.h.b16 %v1793
        %v1839 = vunpack.c.l.b16 %v1794
        %v1840 = vunpack.c.h.b16 %v1794
        %v1841 = vunpack.c.l.b16 %v1795
        %v1842 = vunpack.c.h.b16 %v1795
        %v1843 = vunpack.c.l.b16 %v1796
        %v1844 = vunpack.c.h.b16 %v1796
        %v1845 = vunpack.c.l.b16 %v1797
        %v1846 = vunpack.c.h.b16 %v1797
        %v1847 = vunpack.c.l.b16 %v1798
        %v1848 = vunpack.c.h.b16 %v1798
        %v1849 = vpack.c.b16 %v1819, %v1817
        %v1850 = vpack.c.b16 %v1820, %v1818
        %v1851 = vpack.c.b16 %v1823, %v1821
        %v1852 = vpack.c.b16 %v1824, %v1822
        %v1853 = vpack.c.b16 %v1827, %v1825
        %v1854 = vpack.c.b16 %v1828, %v1826
        %v1855 = vpack.c.b16 %v1831, %v1829
        %v1856 = vpack.c.b16 %v1832, %v1830
        %v1857 = vpack.c.b16 %v1835, %v1833
        %v1858 = vpack.c.b16 %v1836, %v1834
        %v1859 = vpack.c.b16 %v1839, %v1837
        %v1860 = vpack.c.b16 %v1840, %v1838
        %v1861 = vpack.c.b16 %v1843, %v1841
        %v1862 = vpack.c.b16 %v1844, %v1842
        %v1863 = vpack.c.b16 %v1847, %v1845
        %v1864 = vpack.c.b16 %v1848, %v1846
        %1881 = vmatpush.bf16.msra.mxu0 %v1863
        %1882 = vmatpush.bf16.msra.mxu0 %v1861
        %1883 = vmatpush.bf16.msra.mxu0 %v1859
        %1884 = vmatpush.bf16.msra.mxu0 %v1857
        %1885 = vmatpush.bf16.msra.mxu0 %v1855
        %1886 = vmatpush.bf16.msra.mxu0 %v1853
        %1887 = vmatpush.bf16.msra.mxu0 %v1851
        %1888 = vmatpush.bf16.msra.mxu0 %v1849
        %1889 = vmatmul.bf16.gmra.mxu0 %v1782
        %v1890 = vpop.f32.mrf.mxu0
        %v1891 = vadd.f32 %v1799, %v1890
        %v1892 = vpop.f32.mrf.mxu0
        %v1893 = vadd.f32 %v1799, %v1892
        %1894 = vdwg.mxu0
        %1895 = vmatpush.bf16.msra.mxu0 %v1864
        %1896 = vmatpush.bf16.msra.mxu0 %v1862
        %1897 = vmatpush.bf16.msra.mxu0 %v1860
        %1898 = vmatpush.bf16.msra.mxu0 %v1858
        %1899 = vmatpush.bf16.msra.mxu0 %v1856
        %1900 = vmatpush.bf16.msra.mxu0 %v1854
        %1901 = vmatpush.bf16.msra.mxu0 %v1852
        %1902 = vmatpush.bf16.msra.mxu0 %v1850
        %1903 = vmatmul.bf16.gmra.mxu0 %v1782
        %v1904 = vpop.f32.mrf.mxu0
        %v1905 = vadd.f32 %v1800, %v1904
        %v1906 = vpop.f32.mrf.mxu0
        %v1907 = vadd.f32 %v1800, %v1906
        %1908 = vdwg.mxu0
        %v1909 = vmax.f32 %v1891, 0.0
        %v1910 = vmax.f32 %v1905, 0.0
        %v1911 = vmax.f32 %v1893, 0.0
        %v1912 = vmax.f32 %v1907, 0.0
        %v1913 = vpack.c.bf16 %v1911, %v1909
        %v1914 = vpack.c.bf16 %v1912, %v1910
        %v1915 = vld [vmem:[%s609] sm:$0xf]
        %v1916 = vld [vmem:[%s609 + $0x4] sm:$0xf]
        %v1917 = vld [vmem:[%s609 + $0x8] sm:$0xf]
        %v1918 = vld [vmem:[%s609 + $0xc] sm:$0xf]
        %v1919 = vld [vmem:[%s609 + $0x10] sm:$0xf]
        %v1920 = vld [vmem:[%s609 + $0x14] sm:$0xf]
        %v1921 = vld [vmem:[%s609 + $0x18] sm:$0xf]
        %v1922 = vld [vmem:[%s609 + $0x1c] sm:$0xf]
        %v1923 = vld [vmem:[%s609 + $0x20] sm:$0xf]
        %v1924 = vld [vmem:[%s609 + $0x24] sm:$0xf]
        %v1925 = vld [vmem:[%s609 + $0x28] sm:$0xf]
        %v1926 = vld [vmem:[%s609 + $0x2c] sm:$0xf]
        %v1927 = vld [vmem:[%s609 + $0x30] sm:$0xf]
        %v1928 = vld [vmem:[%s609 + $0x34] sm:$0xf]
        %v1929 = vld [vmem:[%s609 + $0x38] sm:$0xf]
        %v1930 = vld [vmem:[%s609 + $0x3c] sm:$0xf]
        %v1931 = vld [vmem:[%s609 + $0x40] sm:$0xf]
        %v1932 = vld [vmem:[%s609 + $0x44] sm:$0xf]
        %v1933 = vld [vmem:[%s609 + $0x48] sm:$0xf]
        %v1934 = vld [vmem:[%s609 + $0x4c] sm:$0xf]
        %v1935 = vld [vmem:[%s609 + $0x50] sm:$0xf]
        %v1936 = vld [vmem:[%s609 + $0x54] sm:$0xf]
        %v1937 = vld [vmem:[%s609 + $0x58] sm:$0xf]
        %v1938 = vld [vmem:[%s609 + $0x5c] sm:$0xf]
        %v1939 = vld [vmem:[%s609 + $0x60] sm:$0xf]
        %v1940 = vld [vmem:[%s609 + $0x64] sm:$0xf]
        %v1941 = vld [vmem:[%s609 + $0x68] sm:$0xf]
        %v1942 = vld [vmem:[%s609 + $0x6c] sm:$0xf]
        %v1943 = vld [vmem:[%s609 + $0x70] sm:$0xf]
        %v1944 = vld [vmem:[%s609 + $0x74] sm:$0xf]
        %v1945 = vld [vmem:[%s609 + $0x78] sm:$0xf]
        %v1946 = vld [vmem:[%s609 + $0x7c] sm:$0xf]
        %v1947 = vperm.slane %v709, 1
        %v1980 = vunpack.c.l.b16 %v1915
        %v1981 = vunpack.c.l.b16 %v1916
        %v1982 = vunpack.c.l.b16 %v1917
        %v1983 = vunpack.c.l.b16 %v1918
        %v1984 = vunpack.c.l.b16 %v1919
        %v1985 = vunpack.c.l.b16 %v1920
        %v1986 = vunpack.c.l.b16 %v1921
        %v1987 = vunpack.c.l.b16 %v1922
        %v1988 = vunpack.c.l.b16 %v1923
        %v1989 = vunpack.c.l.b16 %v1924
        %v1990 = vunpack.c.l.b16 %v1925
        %v1991 = vunpack.c.l.b16 %v1926
        %v1992 = vunpack.c.l.b16 %v1927
        %v1993 = vunpack.c.l.b16 %v1928
        %v1994 = vunpack.c.l.b16 %v1929
        %v1995 = vunpack.c.l.b16 %v1930
        %v1996 = vunpack.c.l.b16 %v1931
        %v1997 = vunpack.c.l.b16 %v1932
        %v1998 = vunpack.c.l.b16 %v1933
        %v1999 = vunpack.c.l.b16 %v1934
        %v2000 = vunpack.c.l.b16 %v1935
        %v2001 = vunpack.c.l.b16 %v1936
        %v2002 = vunpack.c.l.b16 %v1937
        %v2003 = vunpack.c.l.b16 %v1938
        %v2004 = vunpack.c.l.b16 %v1939
        %v2005 = vunpack.c.l.b16 %v1940
        %v2006 = vunpack.c.l.b16 %v1941
        %v2007 = vunpack.c.l.b16 %v1942
        %v2008 = vunpack.c.l.b16 %v1943
        %v2009 = vunpack.c.l.b16 %v1944
        %v2010 = vunpack.c.l.b16 %v1945
        %v2011 = vunpack.c.l.b16 %v1946
        %v2012 = vpack.c.b16 %v1981, %v1980
        %v2013 = vpack.c.b16 %v1983, %v1982
        %v2014 = vpack.c.b16 %v1985, %v1984
        %v2015 = vpack.c.b16 %v1987, %v1986
        %v2016 = vpack.c.b16 %v1989, %v1988
        %v2017 = vpack.c.b16 %v1991, %v1990
        %v2018 = vpack.c.b16 %v1993, %v1992
        %v2019 = vpack.c.b16 %v1995, %v1994
        %v2020 = vpack.c.b16 %v1997, %v1996
        %v2021 = vpack.c.b16 %v1999, %v1998
        %v2022 = vpack.c.b16 %v2001, %v2000
        %v2023 = vpack.c.b16 %v2003, %v2002
        %v2024 = vpack.c.b16 %v2005, %v2004
        %v2025 = vpack.c.b16 %v2007, %v2006
        %v2026 = vpack.c.b16 %v2009, %v2008
        %v2027 = vpack.c.b16 %v2011, %v2010
        %2044 = vmatpush.bf16.msra.mxu0 %v2019
        %2045 = vmatpush.bf16.msra.mxu0 %v2018
        %2046 = vmatpush.bf16.msra.mxu0 %v2017
        %2047 = vmatpush.bf16.msra.mxu0 %v2016
        %2048 = vmatpush.bf16.msra.mxu0 %v2015
        %2049 = vmatpush.bf16.msra.mxu0 %v2014
        %2050 = vmatpush.bf16.msra.mxu0 %v2013
        %2051 = vmatpush.bf16.msra.mxu0 %v2012
        %2052 = vmatmul.bf16.gmra.mxu0 %v1913
        %v2053 = vpop.f32.mrf.mxu0
        %v2054 = vadd.f32 %v1947, %v2053
        %v2055 = vpop.f32.mrf.mxu0
        %v2056 = vadd.f32 %v1947, %v2055
        %2057 = vdwg.mxu0
        %2058 = vmatpush.bf16.msra.mxu0 %v2027
        %2059 = vmatpush.bf16.msra.mxu0 %v2026
        %2060 = vmatpush.bf16.msra.mxu0 %v2025
        %2061 = vmatpush.bf16.msra.mxu0 %v2024
        %2062 = vmatpush.bf16.msra.mxu0 %v2023
        %2063 = vmatpush.bf16.msra.mxu0 %v2022
        %2064 = vmatpush.bf16.msra.mxu0 %v2021
        %2065 = vmatpush.bf16.msra.mxu0 %v2020
        %2066 = vmatmul.bf16.gmra.mxu0 %v1914
        %v2067 = vpop.f32.mrf.mxu0
        %v2068 = vadd.f32 %v2054, %v2067
        %v2069 = vpop.f32.mrf.mxu0
        %v2070 = vadd.f32 %v2056, %v2069
        %2071 = vdwg.mxu0
        %v2072 = vadd.f32 %v1780, %v2068
        %v2073 = vadd.f32 %v1781, %v2070
        %2074 = vadd.xlane.f32.xlu0 %v2072
        %v2075 = vpop.xlane.xlu0 %2074
        %2076 = vadd.xlane.f32.xlu0 %v2073
        %v2077 = vpop.xlane.xlu0 %2076
        %v2078 = vmul.f32 %v2075, %v1526
        %v2079 = vmul.f32 %v2077, %v1526
        %v2080 = vsub.f32 %v2072, %v2078
        %v2081 = vsub.f32 %v2073, %v2079
        %v2082 = vmul.f32 %v2080, %v2080
        %v2083 = vmul.f32 %v2081, %v2081
        %2084 = vadd.xlane.f32.xlu0 %v2082
        %v2085 = vpop.xlane.xlu0 %2084
        %2086 = vadd.xlane.f32.xlu0 %v2083
        %v2087 = vpop.xlane.xlu0 %2086
        %v2088 = vmul.f32 %v2085, %v1526
        %v2089 = vmul.f32 %v2087, %v1526
        %v2090 = vadd.f32 %v2088, 1e-05
        %v2091 = vadd.f32 %v2089, 1e-05
        %v2092 = vrsqrt.pop %v2090
        %v2093 = vmul.f32 %v2092, %v2090
        %v2094 = vmul.f32 %v2093, %v2092
        %v2095 = vmul.f32 0.5, %v2094
        %v2096 = vsub.f32 1.5, %v2095
        %v2097 = vmul.f32 %v2092, %v2096
        %vm2098 = vweird.f32 %v2090
        %vm2099 = vweird.f32 %v2092
        %vm2100 = vmor %vm2098, %vm2099
        %v2101 = vsel %vm2100, %v2092, %v2097
        %v2102 = vrsqrt.pop %v2091
        %v2103 = vmul.f32 %v2102, %v2091
        %v2104 = vmul.f32 %v2103, %v2102
        %v2105 = vmul.f32 0.5, %v2104
        %v2106 = vsub.f32 1.5, %v2105
        %v2107 = vmul.f32 %v2102, %v2106
        %vm2108 = vweird.f32 %v2091
        %vm2109 = vweird.f32 %v2102
        %vm2110 = vmor %vm2108, %vm2109
        %v2111 = vsel %vm2110, %v2102, %v2107
        %v2112 = vmul.f32 %v2080, %v2101
        %v2113 = vmul.f32 %v2081, %v2111
        %v2114 = vperm.slane %v709, 2
        %v2115 = vmul.f32 %v2112, %v2114
        %v2116 = vmul.f32 %v2113, %v2114
        %v2117 = vperm.slane %v709, 3
        %v2118 = vadd.f32 %v2115, %v2117
        %v2119 = vadd.f32 %v2116, %v2117
        %2120 = vst [vmem:[#allocation2] sm:$0xff] %v2118
        %2121 = vst [vmem:[#allocation2 + $0x8] sm:$0xff] %v2119
        %p2122 = scmp.eq.s32.totalorder %s36, 1
        // Predicated region
        $region105: #{tpu_custom_call.1} parent=75 // pred_check
          %p2123 = pneg %p2122
        $region106: #{tpu_custom_call.1} parent=75 // pred_check_branch
          %2125 = sbr.rel (%p2123) target = $region108
        $region107: #{tpu_custom_call.1} parent=75 // pred_region
          %v2126 = vld [vmem:[%s12] sm:$0x1]
          %v2127 = vld [vmem:[%s13] sm:$0x1]
          %2128 = vadd.xlane.f32.xlu0 %v2118
          %v2129 = vpop.xlane.xlu0 %2128
          %2130 = vadd.xlane.f32.xlu0 %v2119
          %v2131 = vpop.xlane.xlu0 %2130
          %v2132 = vmul.f32 %v2129, %v1526
          %v2133 = vmul.f32 %v2131, %v1526
          %v2134 = vsub.f32 %v2118, %v2132
          %v2135 = vsub.f32 %v2119, %v2133
          %v2136 = vmul.f32 %v2134, %v2134
          %v2137 = vmul.f32 %v2135, %v2135
          %2138 = vadd.xlane.f32.xlu0 %v2136
          %v2139 = vpop.xlane.xlu0 %2138
          %2140 = vadd.xlane.f32.xlu0 %v2137
          %v2141 = vpop.xlane.xlu0 %2140
          %v2142 = vmul.f32 %v2139, %v1526
          %v2143 = vmul.f32 %v2141, %v1526
          %v2144 = vadd.f32 %v2142, 1e-05
          %v2145 = vadd.f32 %v2143, 1e-05
          %v2146 = vrsqrt.pop %v2144
          %v2147 = vmul.f32 %v2146, %v2144
          %v2148 = vmul.f32 %v2147, %v2146
          %v2149 = vmul.f32 0.5, %v2148
          %v2150 = vsub.f32 1.5, %v2149
          %v2151 = vmul.f32 %v2146, %v2150
          %vm2152 = vweird.f32 %v2144
          %vm2153 = vweird.f32 %v2146
          %vm2154 = vmor %vm2152, %vm2153
          %v2155 = vsel %vm2154, %v2146, %v2151
          %v2156 = vrsqrt.pop %v2145
          %v2157 = vmul.f32 %v2156, %v2145
          %v2158 = vmul.f32 %v2157, %v2156
          %v2159 = vmul.f32 0.5, %v2158
          %v2160 = vsub.f32 1.5, %v2159
          %v2161 = vmul.f32 %v2156, %v2160
          %vm2162 = vweird.f32 %v2145
          %vm2163 = vweird.f32 %v2156
          %vm2164 = vmor %vm2162, %vm2163
          %v2165 = vsel %vm2164, %v2156, %v2161
          %v2166 = vmul.f32 %v2134, %v2155
          %v2167 = vmul.f32 %v2135, %v2165
          %v2169 = vperm.slane %v2126, 0
          %v2171 = vmul.f32 %v2166, %v2169
          %v2172 = vmul.f32 %v2167, %v2169
          %v2174 = vperm.slane %v2127, 0
          %v2176 = vadd.f32 %v2171, %v2174
          %v2177 = vadd.f32 %v2172, %v2174
          %v2178 = vpack.c.bf16 %v2177, %v2176
          %v2179 = vld [vmem:[#allocation13] sm:$0xff]
          %v2180 = vld [vmem:[#allocation13 + $0x8] sm:$0xff]
          %v2181 = vld [vmem:[#allocation13 + $0x10] sm:$0xff]
          %v2182 = vld [vmem:[#allocation13 + $0x18] sm:$0xff]
          %v2183 = vld [vmem:[#allocation13 + $0x20] sm:$0xff]
          %v2184 = vld [vmem:[#allocation13 + $0x28] sm:$0xff]
          %v2185 = vld [vmem:[#allocation13 + $0x30] sm:$0xff]
          %v2186 = vld [vmem:[#allocation13 + $0x38] sm:$0xff]
          %v2187 = vld [vmem:[#allocation13 + $0x40] sm:$0xff]
          %v2188 = vld [vmem:[#allocation13 + $0x48] sm:$0xff]
          %v2189 = vld [vmem:[#allocation13 + $0x50] sm:$0xff]
          %v2190 = vld [vmem:[#allocation13 + $0x58] sm:$0xff]
          %v2191 = vld [vmem:[#allocation13 + $0x60] sm:$0xff]
          %v2192 = vld [vmem:[#allocation13 + $0x68] sm:$0xff]
          %v2193 = vld [vmem:[#allocation13 + $0x70] sm:$0xff]
          %v2194 = vld [vmem:[#allocation13 + $0x78] sm:$0xff]
          %v2195 = vld [vmem:[%s11] sm:$0x3]
          %v2197 = vperm.slane %v2195, 0
          %v2198 = vperm.slane %v2195, 1
          %v2217 = vunpack.c.l.b16 %v2179
          %v2218 = vunpack.c.h.b16 %v2179
          %v2219 = vunpack.c.l.b16 %v2180
          %v2220 = vunpack.c.h.b16 %v2180
          %v2221 = vunpack.c.l.b16 %v2181
          %v2222 = vunpack.c.h.b16 %v2181
          %v2223 = vunpack.c.l.b16 %v2182
          %v2224 = vunpack.c.h.b16 %v2182
          %v2225 = vunpack.c.l.b16 %v2183
          %v2226 = vunpack.c.h.b16 %v2183
          %v2227 = vunpack.c.l.b16 %v2184
          %v2228 = vunpack.c.h.b16 %v2184
          %v2229 = vunpack.c.l.b16 %v2185
          %v2230 = vunpack.c.h.b16 %v2185
          %v2231 = vunpack.c.l.b16 %v2186
          %v2232 = vunpack.c.h.b16 %v2186
          %v2233 = vunpack.c.l.b16 %v2187
          %v2234 = vunpack.c.h.b16 %v2187
          %v2235 = vunpack.c.l.b16 %v2188
          %v2236 = vunpack.c.h.b16 %v2188
          %v2237 = vunpack.c.l.b16 %v2189
          %v2238 = vunpack.c.h.b16 %v2189
          %v2239 = vunpack.c.l.b16 %v2190
          %v2240 = vunpack.c.h.b16 %v2190
          %v2241 = vunpack.c.l.b16 %v2191
          %v2242 = vunpack.c.h.b16 %v2191
          %v2243 = vunpack.c.l.b16 %v2192
          %v2244 = vunpack.c.h.b16 %v2192
          %v2245 = vunpack.c.l.b16 %v2193
          %v2246 = vunpack.c.h.b16 %v2193
          %v2247 = vunpack.c.l.b16 %v2194
          %v2248 = vunpack.c.h.b16 %v2194
          %v2249 = vpack.c.b16 %v2219, %v2217
          %v2250 = vpack.c.b16 %v2220, %v2218
          %v2251 = vpack.c.b16 %v2223, %v2221
          %v2252 = vpack.c.b16 %v2224, %v2222
          %v2253 = vpack.c.b16 %v2227, %v2225
          %v2254 = vpack.c.b16 %v2228, %v2226
          %v2255 = vpack.c.b16 %v2231, %v2229
          %v2256 = vpack.c.b16 %v2232, %v2230
          %v2257 = vpack.c.b16 %v2235, %v2233
          %v2258 = vpack.c.b16 %v2236, %v2234
          %v2259 = vpack.c.b16 %v2239, %v2237
          %v2260 = vpack.c.b16 %v2240, %v2238
          %v2261 = vpack.c.b16 %v2243, %v2241
          %v2262 = vpack.c.b16 %v2244, %v2242
          %v2263 = vpack.c.b16 %v2247, %v2245
          %v2264 = vpack.c.b16 %v2248, %v2246
          %2281 = vmatpush.bf16.msra.mxu0 %v2263
          %2282 = vmatpush.bf16.msra.mxu0 %v2261
          %2283 = vmatpush.bf16.msra.mxu0 %v2259
          %2284 = vmatpush.bf16.msra.mxu0 %v2257
          %2285 = vmatpush.bf16.msra.mxu0 %v2255
          %2286 = vmatpush.bf16.msra.mxu0 %v2253
          %2287 = vmatpush.bf16.msra.mxu0 %v2251
          %2288 = vmatpush.bf16.msra.mxu0 %v2249
          %2289 = vmatmul.bf16.gmra.mxu0 %v2178
          %v2290 = vpop.f32.mrf.mxu0
          %v2291 = vadd.f32 %v2197, %v2290
          %v2292 = vpop.f32.mrf.mxu0
          %v2293 = vadd.f32 %v2197, %v2292
          %2294 = vdwg.mxu0
          %2295 = vmatpush.bf16.msra.mxu0 %v2264
          %2296 = vmatpush.bf16.msra.mxu0 %v2262
          %2297 = vmatpush.bf16.msra.mxu0 %v2260
          %2298 = vmatpush.bf16.msra.mxu0 %v2258
          %2299 = vmatpush.bf16.msra.mxu0 %v2256
          %2300 = vmatpush.bf16.msra.mxu0 %v2254
          %2301 = vmatpush.bf16.msra.mxu0 %v2252
          %2302 = vmatpush.bf16.msra.mxu0 %v2250
          %2303 = vmatmul.bf16.gmra.mxu0 %v2178
          %v2304 = vpop.f32.mrf.mxu0
          %v2305 = vadd.f32 %v2198, %v2304
          %v2306 = vpop.f32.mrf.mxu0
          %v2307 = vadd.f32 %v2198, %v2306
          %2308 = vdwg.mxu0
          %2309 = vst [vmem:[#allocation15] sm:$0xff] %v2291
          %2310 = vst [vmem:[#allocation15 + $0x8] sm:$0xff] %v2305
          %2311 = vst [vmem:[#allocation15 + $0x10] sm:$0xff] %v2293
          %2312 = vst [vmem:[#allocation15 + $0x18] sm:$0xff] %v2307
        $region108: #{tpu_custom_call.1} parent=75 // pred_fallthru
          _
        // Predicated region
        $region109: #{tpu_custom_call.1} parent=75 // pred_check
          %p2313 = pneg %p378
        $region110: #{tpu_custom_call.1} parent=75 // pred_check_branch
          %2315 = sbr.rel (%p2313) target = $region112
        $region111: #{tpu_custom_call.1} parent=75 // pred_region
          %2317 = vsyncadd [#allocation6], 0
          %s2318 = sshll.u32 [#allocation15], 4
          %s2319 = int_to_ptr.vmem [resolvable:$true] %s2318
          %s2320 = sshll.u32 %s14, 4
          %s2321 = int_to_ptr.hbm [resolvable:$true] %s2320
          %2326 = dma.vmem_to_hbm [thread:$0]  %s2319, 512, %s2321, [#allocation6], 256, 256, 16
        $region112: #{tpu_custom_call.1} parent=75 // pred_fallthru
          _
        // Predicated region
        $region113: #{tpu_custom_call.1} parent=75 // pred_check
          %p2327 = pneg %p378
        $region114: #{tpu_custom_call.1} parent=75 // pred_check_branch
          %2329 = sbr.rel (%p2327) target = $region116
        $region115: #{tpu_custom_call.1} parent=75 // pred_region
          %2331 = dma.done [#allocation6], 512
        $region116: #{tpu_custom_call.1} parent=75 // pred_fallthru
          _
      $region76: #{tpu_custom_call.1} parent=5 // pred_fallthru
        _
      %p2332 = scmp.le.s32.totalorder 2, %s31
      // Predicated region
      $region117: #{tpu_custom_call.1} parent=5 // pred_check
        %p2333 = pneg %p2332
      $region118: #{tpu_custom_call.1} parent=5 // pred_check_branch
        %2335 = sbr.rel (%p2333) target = $region120
      $region119: #{tpu_custom_call.1} parent=5 // pred_region
        %s2336 = ssub.s32 %s31, 2
      $region120: #{tpu_custom_call.1} parent=5 // pred_fallthru
        _
    $region6: #{tpu_custom_call.1} parent=1 // loop_footer
      %s35 = sadd.s32 1, %s31
    $region7: #{tpu_custom_call.1} parent=1 // loop_footer_branch
      %30 = sbr.rel target = $region3
    $region8: #{tpu_custom_call.1} parent=1 // loop_exit
      _
    %2337 = vsyncpa [#allocation5], 1
    %s2338 = scalar_lea.sflag [#allocation5], 1
    %2339 = vsyncpa %s2338, 1
    %2340 = vsyncpa [#allocation8], 1
    %s2341 = scalar_lea.sflag [#allocation8], 1
    %2342 = vsyncpa %s2341, 1
    %2343 = vsyncpa [#allocation11], 1
    %s2344 = scalar_lea.sflag [#allocation11], 1
    %2345 = vsyncpa %s2344, 1
    %2346 = vsyncpa [#allocation14], 1
    %2347 = vsyncpa [#allocation6], 1
    %s2348 = scalar_lea.sflag [#allocation6], 1
    %2349 = vsyncpa %s2348, 1

</llo_original>
